<compile_context>
chip_gen: v5e
topology: v5e:2x2
jax: 0.10.0
libtpu: 0.0.40
codegen_flags: <defaults>
</compile_context>

<pallas_src>
import functools

import jax
import jax.numpy as jnp
from jax.experimental import pallas as pl
from jax.experimental.pallas import tpu as pltpu

_LANE = 128


def _round_up(x, m):
    return ((x + m - 1) // m) * m


def _self_lstm_kernel(
    x_ref,        # (1, Tc, N, C_in)  bf16  input pixels for this (batch, time chunk)
    wxb_ref,      # (C_in, Wbig)      bf16  fused weight, x rows
    whb_ref,      # (Hp,  Wbig)       bf16  fused weight, h rows (zero-padded rows >= Hd)
    bb_ref,       # (1, Wbig)         f32   fused bias
    woa_ref,      # (Cp, 4*Hp)        bf16  output-conv weight, attention path
    h_out_ref,    # (1, Tc, N, Hp)    f32
    c_out_ref,    # (1, N, Hp)        f32   (resident across the time axis)
    h_s, c_s,     # VMEM scratch (N, Hp) f32 — recurrent state carried across time chunks
    *, seq_chunk, cp, hp, kv_tile,
):
    n_pix = h_s.shape[0]

    # Per-batch recurrent-state init: only at the first time chunk.
    @pl.when(pl.program_id(1) == 0)
    def _():
        h_s[...] = jnp.zeros_like(h_s)
        c_s[...] = jnp.zeros_like(c_s)

    wxb = wxb_ref[...]
    whb = whb_ref[...]
    woa = woa_ref[...]
    bb = bb_ref[...]          # stays (1, Wbig): broadcast by the add (cheap sublane replicate)
    cdt = wxb.dtype           # bf16 MXU-operand dtype

    kv_starts = tuple(range(0, n_pix, kv_tile))

    def step(t, carry):
        x = x_ref[0, t]                          # (N, C_in) bf16
        h = h_s[...]                             # (N, Hp)   f32

        # One fused matmul pair produces [q | k | gamma*v | residual gates],
        # each segment padded to a 128-lane multiple (pad lanes are exactly 0).
        big = (jnp.dot(x, wxb, preferred_element_type=jnp.float32)
               + jnp.dot(h.astype(cdt), whb, preferred_element_type=jnp.float32)
               + bb)                             # (N, Wbig) f32
        q = big[:, 0 * cp:1 * cp]
        k = big[:, 1 * cp:2 * cp]
        v = big[:, 2 * cp:3 * cp]                # gamma already folded into V
        res = big[:, 3 * cp:]                    # x@Wo_x + h@Wo_h + bo   (N, 4*Hp)

        # Flash-style self-attention over pixels: online softmax over key tiles,
        # never materialising the full (N, N) score matrix.
        q_b = q.astype(cdt)
        m_i = jnp.full((n_pix, 1), -jnp.inf, jnp.float32)
        l_i = jnp.zeros((n_pix, 1), jnp.float32)
        acc = jnp.zeros((n_pix, cp), jnp.float32)
        for s0 in kv_starts:
            s1 = min(s0 + kv_tile, n_pix)
            k_t = k[s0:s1].astype(cdt)
            v_t = v[s0:s1].astype(cdt)
            # contract the lane dims of q and k (pl.dot trans_b=True semantics),
            # so no per-step relayout of k is required.
            s = jax.lax.dot_general(q_b, k_t, (((1,), (1,)), ((), ())),
                                    preferred_element_type=jnp.float32)  # (N, nk)
            m_new = jnp.maximum(m_i, jnp.max(s, axis=-1, keepdims=True))
            alpha = jnp.exp(m_i - m_new)
            # TODO(synk): on v6e/v7x the exp could take bf16 inputs (~2x EUP
            # rate); kept f32 so the identical kernel also runs exact-ish on v5e.
            p = jnp.exp(s - m_new)
            l_i = alpha * l_i + jnp.sum(p, axis=-1, keepdims=True)
            acc = alpha * acc + jnp.dot(p.astype(cdt), v_t,
                                        preferred_element_type=jnp.float32)
            m_i = m_new
        att = acc * pl.reciprocal(l_i, approx=False)        # (N, Cp) f32, exact

        # Output 1x1 conv -> gates; residual path already sits in `res`.
        gates = (jnp.dot(att.astype(cdt), woa, preferred_element_type=jnp.float32)
                 + res)                          # (N, 4*Hp), 128-aligned gate slices

        i_g = jax.nn.sigmoid(gates[:, 0 * hp:1 * hp])
        f_g = jax.nn.sigmoid(gates[:, 1 * hp:2 * hp])
        o_g = jax.nn.sigmoid(gates[:, 2 * hp:3 * hp])
        g_g = jnp.tanh(gates[:, 3 * hp:4 * hp])

        c_next = f_g * c_s[...] + i_g * g_g      # pad lanes remain exactly 0
        h_next = o_g * jnp.tanh(c_next)

        h_s[...] = h_next
        c_s[...] = c_next
        h_out_ref[0, t] = h_next.astype(h_out_ref.dtype)    # lane-dense (Hp) store
        return carry

    jax.lax.fori_loop(0, seq_chunk, step, 0, unroll=min(seq_chunk, 4))

    @pl.when(pl.program_id(1) == pl.num_programs(1) - 1)
    def _():
        c_out_ref[0] = c_s[...]


def self_lstm_forward(x_tbchw, params, hidden_dim, *, time_chunk=None, kv_tile=512):
    """Forward of SelfLSTM (num_layers=1, batch_first=False, bidirectional=False).

    Returns (h_seq, (h_last, c_last)) with h_seq of shape (B, T, Hd, H, W),
    matching layer_outputs[:, -1] of the PyTorch module.
    """
    T, B, C_in, H, W = x_tbchw.shape
    N = H * W
    Hd = hidden_dim
    C = C_in + Hd
    wq, bq, wk, bk, wv, bv, gamma, wo, bo = params

    f32 = jnp.float32
    cdt = jnp.bfloat16

    Cp = _round_up(C, _LANE)          # padded q/k/v segment width
    Hp = _round_up(Hd, _LANE)         # padded per-gate segment width
    Wbig = 3 * Cp + 4 * Hp

    g = gamma.reshape(-1)[0]
    woT = wo.T                                                      # (C, 4*Hd)

    # Fused, lane-aligned weight/bias layout. gamma folds exactly into the V
    # slice: gamma*(A@v) == A@(gamma*v). Padding columns are zero, so padded
    # output lanes of q/k/v/gates are exactly zero.
    w_x = jnp.zeros((C_in, Wbig), f32)
    w_h = jnp.zeros((Hp, Wbig), f32)          # rows >= Hd stay zero
    b_b = jnp.zeros((1, Wbig), f32)
    segments = [(0 * Cp, wq.T, bq), (1 * Cp, wk.T, bk), (2 * Cp, (g * wv).T, g * bv)]
    for j in range(4):
        segments.append((3 * Cp + j * Hp, woT[:, j * Hd:(j + 1) * Hd],
                         bo[:, j * Hd:(j + 1) * Hd]))
    for col0, w_full, b_full in segments:
        width = w_full.shape[1]
        w_x = w_x.at[:, col0:col0 + width].set(w_full[:C_in])
        w_h = w_h.at[:Hd, col0:col0 + width].set(w_full[C_in:])
        b_b = b_b.at[:, col0:col0 + width].set(b_full)

    woa = jnp.zeros((Cp, 4 * Hp), f32)       # attention-path output weight
    for j in range(4):
        woa = woa.at[:C, j * Hp:j * Hp + Hd].set(woT[:, j * Hd:(j + 1) * Hd])

    # bf16 MXU operands (f32 accumulation inside the kernel).
    w_x = w_x.astype(cdt)
    w_h = w_h.astype(cdt)
    woa = woa.astype(cdt)

    # NCHW -> pixel-major (B, T, N, C_in); bf16 in HBM halves the x DMA.
    x = jnp.transpose(x_tbchw, (1, 0, 3, 4, 2)).reshape(B, T, N, C_in).astype(cdt)

    # Time-chunk size: largest divisor of T whose chunk blocks fit the budget.
    if time_chunk is None:
        per_t = 2 * N * (C_in * 2 + Hp * 4)            # double-buffered x + h_out per step
        time_chunk = max(1, (8 << 20) // max(per_t, 1))
    time_chunk = max(d for d in range(1, min(time_chunk, T) + 1) if T % d == 0)
    n_tc = T // time_chunk
    kv_tile = max(8, min(kv_tile, N))

    # Explicit scoped-VMEM limit from the actual block/scratch sizes (+2x
    # headroom), capped so it also fits v7x's 64 MiB physical VMEM.
    blk_bytes = (2 * time_chunk * N * C_in * 2                         # x blocks (bf16)
                 + 2 * time_chunk * N * Hp * 4                         # h_out blocks
                 + 2 * N * Hp * 4                                      # c_out block
                 + 2 * ((C_in + Hp) * Wbig * 2 + Cp * 4 * Hp * 2 + Wbig * 4)  # weights/bias
                 + 2 * N * Hp * 4)                                     # h/c scratch
    vmem_limit = int(min(48 << 20, max(32 << 20, 2 * blk_bytes)))

    kernel = functools.partial(_self_lstm_kernel, seq_chunk=time_chunk,
                               cp=Cp, hp=Hp, kv_tile=kv_tile)

    full2 = lambda shape: pl.BlockSpec(shape, lambda b, tc: (0, 0))

    h_out, c_out = pl.pallas_call(
        kernel,
        out_shape=(
            jax.ShapeDtypeStruct((B, T, N, Hp), jnp.float32),
            jax.ShapeDtypeStruct((B, N, Hp), jnp.float32),
        ),
        grid_spec=pltpu.PrefetchScalarGridSpec(
            num_scalar_prefetch=0,
            grid=(B, n_tc),
            in_specs=[
                pl.BlockSpec((1, time_chunk, N, C_in), lambda b, tc: (b, tc, 0, 0)),
                full2((C_in, Wbig)),             # fused weight, x rows
                full2((Hp, Wbig)),               # fused weight, h rows
                full2((1, Wbig)),                # fused bias
                full2((Cp, 4 * Hp)),             # output weight, attention path
            ],
            out_specs=[
                pl.BlockSpec((1, time_chunk, N, Hp), lambda b, tc: (b, tc, 0, 0)),
                pl.BlockSpec((1, N, Hp), lambda b, tc: (b, 0, 0)),
            ],
            scratch_shapes=[
                pltpu.VMEM((N, Hp), jnp.float32),    # h state
                pltpu.VMEM((N, Hp), jnp.float32),    # c state
            ],
        ),
        compiler_params=pltpu.CompilerParams(
            dimension_semantics=("parallel", "arbitrary"),
            vmem_limit_bytes=vmem_limit),
    )(x, w_x, w_h, b_b, woa)

    # Strip the lane padding and return NCHW-style outputs.
    h_out = h_out[..., :Hd]
    c_out = c_out[..., :Hd]
    h_seq = jnp.transpose(h_out.reshape(B, T, H, W, Hd), (0, 1, 4, 2, 3))   # (B,T,Hd,H,W)
    h_last = h_seq[:, -1]                                                   # (B,Hd,H,W)
    c_last = jnp.transpose(c_out.reshape(B, H, W, Hd), (0, 3, 1, 2))        # (B,Hd,H,W)
    return h_seq, (h_last, c_last)


def self_lstm_reference(x_tbchw, params, hidden_dim):
    """Pure-JAX f32 reference mirroring the PyTorch forward exactly."""
    T, B, C_in, H, W = x_tbchw.shape
    N = H * W
    Hd = hidden_dim
    wq, bq, wk, bk, wv, bv, gamma, wo, bo = params
    x = jnp.transpose(x_tbchw, (1, 0, 3, 4, 2)).reshape(B, T, N, C_in)

    h = jnp.zeros((B, N, Hd), jnp.float32)
    c = jnp.zeros((B, N, Hd), jnp.float32)
    outs = []
    for t in range(T):
        comb = jnp.concatenate([x[:, t], h], axis=-1)           # (B, N, C)
        q = comb @ wq.T + bq
        k = comb @ wk.T + bk
        v = comb @ wv.T + bv
        s = jnp.einsum('bnc,bmc->bnm', q, k)
        a = jax.nn.softmax(s, axis=-1)
        sa = jnp.einsum('bnm,bmc->bnc', a, v)
        sa = gamma[0, 0] * sa + comb
        gates = sa @ wo.T + bo
        i = jax.nn.sigmoid(gates[..., 0 * Hd:1 * Hd])
        f = jax.nn.sigmoid(gates[..., 1 * Hd:2 * Hd])
        o = jax.nn.sigmoid(gates[..., 2 * Hd:3 * Hd])
        g = jnp.tanh(gates[..., 3 * Hd:4 * Hd])
        c = f * c + i * g
        h = o * jnp.tanh(c)
        outs.append(h)
    h_out = jnp.stack(outs, axis=1)                             # (B, T, N, Hd)
    h_seq = jnp.transpose(h_out.reshape(B, T, H, W, Hd), (0, 1, 4, 2, 3))
    h_last = h_seq[:, -1]
    c_last = jnp.transpose(c.reshape(B, H, W, Hd), (0, 3, 1, 2))
    return h_seq, (h_last, c_last)


if __name__ == "__main__":
    key = jax.random.PRNGKey(0)
    T, B, C_in, H, W = 8, 2, 4, 4, 4
    Hd = 8
    C = C_in + Hd

    kx, k0, k1, k2, k3, k4, k5, k6, k7 = jax.random.split(key, 9)
    x = jax.random.normal(kx, (T, B, C_in, H, W), dtype=jnp.float32)

    def wmat(k, shape):
        return 0.1 * jax.random.normal(k, shape, dtype=jnp.float32)

    params = (
        wmat(k0, (C, C)), wmat(k1, (1, C)),            # Q 1x1 conv weight/bias
        wmat(k2, (C, C)), wmat(k3, (1, C)),            # K
        wmat(k4, (C, C)), wmat(k5, (1, C)),            # V
        jnp.ones((1, 1), jnp.float32),                 # gamma (torch.ones(1))
        wmat(k6, (4 * Hd, C)), wmat(k7, (1, 4 * Hd)),  # output 1x1 conv -> 4*Hd gates
    )

    # time_chunk=4 -> grid=(B=2, T/Tc=2): exercises both the carried-state
    # ("arbitrary") time axis and the "parallel" batch axis.
    h_seq, (h_last, c_last) = self_lstm_forward(x, params, Hd, time_chunk=4)
    jax.block_until_ready((h_seq, h_last, c_last))

    h_ref, (hl_ref, cl_ref) = self_lstm_reference(x, params, Hd)
    # bf16 MXU operands with f32 accumulation / f32 recurrent state -> ~1e-3
    # level error; tolerance leaves ample margin.
    assert jnp.allclose(h_seq, h_ref, atol=2e-2, rtol=2e-2)
    assert jnp.allclose(h_last, hl_ref, atol=2e-2, rtol=2e-2)
    assert jnp.allclose(c_last, cl_ref, atol=2e-2, rtol=2e-2)

    print("KERNEL_OK")
</pallas_src>

<mosaic_0001>
module attributes {stable_mosaic.version = 11 : i64} {
  func.func @_self_lstm_kernel(%arg0: i32, %arg1: i32, %arg2: memref<1x4x16x4xbf16, #tpu.memory_space<vmem>>, %arg3: memref<4x896xbf16, #tpu.memory_space<vmem>>, %arg4: memref<128x896xbf16, #tpu.memory_space<vmem>>, %arg5: memref<1x896xf32, #tpu.memory_space<vmem>>, %arg6: memref<128x512xbf16, #tpu.memory_space<vmem>>, %arg7: memref<1x4x16x128xf32, #tpu.memory_space<vmem>>, %arg8: memref<1x16x128xf32, #tpu.memory_space<vmem>>, %arg9: memref<16x128xf32, #tpu.memory_space<vmem>>, %arg10: memref<16x128xf32, #tpu.memory_space<vmem>>) attributes {dimension_semantics = [#tpu.dimension_semantics<parallel>, #tpu.dimension_semantics<arbitrary>], iteration_bounds = array<i64: 2, 2>, scalar_prefetch = 0 : i64, scratch_operands = 2 : i64, tpu.core_type = #tpu.core_type<tc>, window_params = [{transform_indices = @transform_0, window_bounds = array<i64: 1, 4, 16, 4>}, {pipeline_mode = #tpu.pipeline_mode<synchronous>, transform_indices = @transform_1, window_bounds = array<i64: 4, 896>}, {pipeline_mode = #tpu.pipeline_mode<synchronous>, transform_indices = @transform_2, window_bounds = array<i64: 128, 896>}, {pipeline_mode = #tpu.pipeline_mode<synchronous>, transform_indices = @transform_3, window_bounds = array<i64: 1, 896>}, {pipeline_mode = #tpu.pipeline_mode<synchronous>, transform_indices = @transform_4, window_bounds = array<i64: 128, 512>}, {transform_indices = @transform_5, window_bounds = array<i64: 1, 4, 16, 128>}, {transform_indices = @transform_6, window_bounds = array<i64: 1, 16, 128>}]} {
    %c0_i32 = arith.constant 0 : i32
    %0 = arith.cmpi eq, %arg1, %c0_i32 : i32
    %1 = arith.extui %0 : i1 to i32
    %c0_i32_0 = arith.constant 0 : i32
    %2 = arith.cmpi ne, %1, %c0_i32_0 : i32
    scf.if %2 {
      %cst_118 = arith.constant 0.000000e+00 : f32
      %314 = vector.broadcast %cst_118 : f32 to vector<16x128xf32>
      %c0_119 = arith.constant 0 : index
      %c0_120 = arith.constant 0 : index
      %315 = vector.load %arg9[%c0_119, %c0_120] : memref<16x128xf32, #tpu.memory_space<vmem>>, vector<16x128xf32>
      tpu.vector_store %arg9[%c0_119, %c0_120], %314 {strides = array<i32>} : memref<16x128xf32, #tpu.memory_space<vmem>>, vector<16x128xf32>,
      %cst_121 = arith.constant 0.000000e+00 : f32
      %316 = vector.broadcast %cst_121 : f32 to vector<16x128xf32>
      %c0_122 = arith.constant 0 : index
      %c0_123 = arith.constant 0 : index
      %317 = vector.load %arg10[%c0_122, %c0_123] : memref<16x128xf32, #tpu.memory_space<vmem>>, vector<16x128xf32>
      tpu.vector_store %arg10[%c0_122, %c0_123], %316 {strides = array<i32>} : memref<16x128xf32, #tpu.memory_space<vmem>>, vector<16x128xf32>,
    } else {
    }
    %c0 = arith.constant 0 : index
    %c0_1 = arith.constant 0 : index
    %3 = vector.load %arg3[%c0, %c0_1] : memref<4x896xbf16, #tpu.memory_space<vmem>>, vector<4x896xbf16>
    %c0_2 = arith.constant 0 : index
    %c0_3 = arith.constant 0 : index
    %4 = vector.load %arg4[%c0_2, %c0_3] : memref<128x896xbf16, #tpu.memory_space<vmem>>, vector<128x896xbf16>
    %c0_4 = arith.constant 0 : index
    %c0_5 = arith.constant 0 : index
    %5 = vector.load %arg6[%c0_4, %c0_5] : memref<128x512xbf16, #tpu.memory_space<vmem>>, vector<128x512xbf16>
    %c0_6 = arith.constant 0 : index
    %c0_7 = arith.constant 0 : index
    %6 = vector.load %arg5[%c0_6, %c0_7] : memref<1x896xf32, #tpu.memory_space<vmem>>, vector<1x896xf32>
    %c0_i32_8 = arith.constant 0 : i32
    %c0_9 = arith.constant 0 : index
    %7 = arith.index_cast %c0_i32_8 : i32 to index
    %c0_10 = arith.constant 0 : index
    %c0_11 = arith.constant 0 : index
    %8 = vector.load %arg2[%c0_9, %7, %c0_10, %c0_11] : memref<1x4x16x4xbf16, #tpu.memory_space<vmem>>, vector<1x1x16x4xbf16>
    %9 = vector.shape_cast %8 : vector<1x1x16x4xbf16> to vector<16x4xbf16>
    %c0_12 = arith.constant 0 : index
    %c0_13 = arith.constant 0 : index
    %10 = vector.load %arg9[%c0_12, %c0_13] : memref<16x128xf32, #tpu.memory_space<vmem>>, vector<16x128xf32>
    %cst = arith.constant dense<0.000000e+00> : vector<16x896xf32>
    %11 = tpu.matmul %9, %3, %cst {dimension_numbers = #tpu.dot_dimension_numbers<[1], [0], [0], [1], [0, 0, 1, 1], [], []>} : vector<16x4xbf16>, vector<4x896xbf16>, vector<16x896xf32> -> vector<16x896xf32>
    %12 = arith.truncf %10 : vector<16x128xf32> to vector<16x128xbf16>
    %cst_14 = arith.constant dense<0.000000e+00> : vector<16x896xf32>
    %13 = tpu.matmul %12, %4, %cst_14 {dimension_numbers = #tpu.dot_dimension_numbers<[1], [0], [0], [1], [0, 0, 1, 1], [], []>} : vector<16x128xbf16>, vector<128x896xbf16>, vector<16x896xf32> -> vector<16x896xf32>
    %14 = arith.addf %11, %13 : vector<16x896xf32>
    %15 = vector.broadcast %6 : vector<1x896xf32> to vector<16x896xf32>
    %16 = arith.addf %14, %15 : vector<16x896xf32>
    %17 = vector.extract_strided_slice %16 {offsets = [0, 0], sizes = [16, 128], strides = [1, 1]} : vector<16x896xf32> to vector<16x128xf32>
    %18 = vector.extract_strided_slice %16 {offsets = [0, 128], sizes = [16, 128], strides = [1, 1]} : vector<16x896xf32> to vector<16x128xf32>
    %19 = vector.extract_strided_slice %16 {offsets = [0, 256], sizes = [16, 128], strides = [1, 1]} : vector<16x896xf32> to vector<16x128xf32>
    %20 = vector.extract_strided_slice %16 {offsets = [0, 384], sizes = [16, 512], strides = [1, 1]} : vector<16x896xf32> to vector<16x512xf32>
    %21 = arith.truncf %17 : vector<16x128xf32> to vector<16x128xbf16>
    %cst_15 = arith.constant 0xFF800000 : f32
    %22 = vector.broadcast %cst_15 : f32 to vector<16x1xf32>
    %cst_16 = arith.constant 0.000000e+00 : f32
    %23 = vector.broadcast %cst_16 : f32 to vector<16x1xf32>
    %cst_17 = arith.constant 0.000000e+00 : f32
    %24 = vector.broadcast %cst_17 : f32 to vector<16x128xf32>
    %25 = arith.truncf %18 : vector<16x128xf32> to vector<16x128xbf16>
    %26 = arith.truncf %19 : vector<16x128xf32> to vector<16x128xbf16>
    %cst_18 = arith.constant dense<0.000000e+00> : vector<16x16xf32>
    %27 = tpu.matmul %21, %25, %cst_18 {dimension_numbers = #tpu.dot_dimension_numbers<[1], [1], [0], [0], [0, 0, 1, 0], [], []>} : vector<16x128xbf16>, vector<16x128xbf16>, vector<16x16xf32> -> vector<16x16xf32>
    %cst_19 = arith.constant dense<0xFF800000> : vector<16xf32>
    %28 = vector.multi_reduction <maximumf>, %27, %cst_19 [1] : vector<16x16xf32> to vector<16xf32>
    %29 = vector.shape_cast %28 : vector<16xf32> to vector<16x1xf32>
    %30 = arith.maximumf %22, %29 : vector<16x1xf32>
    %31 = arith.subf %22, %30 : vector<16x1xf32>
    %32 = math.exp %31 : vector<16x1xf32>
    %33 = vector.broadcast %30 : vector<16x1xf32> to vector<16x16xf32>
    %34 = arith.subf %27, %33 : vector<16x16xf32>
    %35 = math.exp %34 : vector<16x16xf32>
    %36 = arith.mulf %32, %23 : vector<16x1xf32>
    %cst_20 = arith.constant dense<0.000000e+00> : vector<16xf32>
    %37 = vector.multi_reduction <add>, %35, %cst_20 [1] : vector<16x16xf32> to vector<16xf32>
    %38 = vector.shape_cast %37 : vector<16xf32> to vector<16x1xf32>
    %39 = arith.addf %36, %38 : vector<16x1xf32>
    %40 = vector.broadcast %32 : vector<16x1xf32> to vector<16x128xf32>
    %41 = arith.mulf %40, %24 : vector<16x128xf32>
    %42 = arith.truncf %35 : vector<16x16xf32> to vector<16x16xbf16>
    %cst_21 = arith.constant dense<0.000000e+00> : vector<16x128xf32>
    %43 = tpu.matmul %42, %26, %cst_21 {dimension_numbers = #tpu.dot_dimension_numbers<[1], [0], [0], [1], [0, 0, 1, 1], [], []>} : vector<16x16xbf16>, vector<16x128xbf16>, vector<16x128xf32> -> vector<16x128xf32>
    %44 = arith.addf %41, %43 : vector<16x128xf32>
    %45 = tpu.reciprocal %39 : vector<16x1xf32> -> vector<16x1xf32>
    %46 = vector.broadcast %45 : vector<16x1xf32> to vector<16x128xf32>
    %47 = arith.mulf %44, %46 : vector<16x128xf32>
    %48 = arith.truncf %47 : vector<16x128xf32> to vector<16x128xbf16>
    %cst_22 = arith.constant dense<0.000000e+00> : vector<16x512xf32>
    %49 = tpu.matmul %48, %5, %cst_22 {dimension_numbers = #tpu.dot_dimension_numbers<[1], [0], [0], [1], [0, 0, 1, 1], [], []>} : vector<16x128xbf16>, vector<128x512xbf16>, vector<16x512xf32> -> vector<16x512xf32>
    %50 = arith.addf %49, %20 : vector<16x512xf32>
    %51 = vector.extract_strided_slice %50 {offsets = [0, 0], sizes = [16, 128], strides = [1, 1]} : vector<16x512xf32> to vector<16x128xf32>
    %52 = arith.negf %51 : vector<16x128xf32>
    %53 = math.exp %52 : vector<16x128xf32>
    %cst_23 = arith.constant 1.000000e+00 : f32
    %54 = vector.broadcast %cst_23 : f32 to vector<16x128xf32>
    %55 = arith.addf %54, %53 : vector<16x128xf32>
    %56 = arith.divf %54, %55 : vector<16x128xf32>
    %57 = vector.extract_strided_slice %50 {offsets = [0, 128], sizes = [16, 128], strides = [1, 1]} : vector<16x512xf32> to vector<16x128xf32>
    %58 = arith.negf %57 : vector<16x128xf32>
    %59 = math.exp %58 : vector<16x128xf32>
    %cst_24 = arith.constant 1.000000e+00 : f32
    %60 = vector.broadcast %cst_24 : f32 to vector<16x128xf32>
    %61 = arith.addf %60, %59 : vector<16x128xf32>
    %62 = arith.divf %60, %61 : vector<16x128xf32>
    %63 = vector.extract_strided_slice %50 {offsets = [0, 256], sizes = [16, 128], strides = [1, 1]} : vector<16x512xf32> to vector<16x128xf32>
    %64 = arith.negf %63 : vector<16x128xf32>
    %65 = math.exp %64 : vector<16x128xf32>
    %cst_25 = arith.constant 1.000000e+00 : f32
    %66 = vector.broadcast %cst_25 : f32 to vector<16x128xf32>
    %67 = arith.addf %66, %65 : vector<16x128xf32>
    %68 = arith.divf %66, %67 : vector<16x128xf32>
    %69 = vector.extract_strided_slice %50 {offsets = [0, 384], sizes = [16, 128], strides = [1, 1]} : vector<16x512xf32> to vector<16x128xf32>
    %70 = math.tanh %69 : vector<16x128xf32>
    %c0_26 = arith.constant 0 : index
    %c0_27 = arith.constant 0 : index
    %71 = vector.load %arg10[%c0_26, %c0_27] : memref<16x128xf32, #tpu.memory_space<vmem>>, vector<16x128xf32>
    %72 = arith.mulf %62, %71 : vector<16x128xf32>
    %73 = arith.mulf %56, %70 : vector<16x128xf32>
    %74 = arith.addf %72, %73 : vector<16x128xf32>
    %75 = math.tanh %74 : vector<16x128xf32>
    %76 = arith.mulf %68, %75 : vector<16x128xf32>
    %c0_28 = arith.constant 0 : index
    %c0_29 = arith.constant 0 : index
    %77 = vector.load %arg9[%c0_28, %c0_29] : memref<16x128xf32, #tpu.memory_space<vmem>>, vector<16x128xf32>
    tpu.vector_store %arg9[%c0_28, %c0_29], %76 {strides = array<i32>} : memref<16x128xf32, #tpu.memory_space<vmem>>, vector<16x128xf32>,
    %c0_30 = arith.constant 0 : index
    %c0_31 = arith.constant 0 : index
    %78 = vector.load %arg10[%c0_30, %c0_31] : memref<16x128xf32, #tpu.memory_space<vmem>>, vector<16x128xf32>
    tpu.vector_store %arg10[%c0_30, %c0_31], %74 {strides = array<i32>} : memref<16x128xf32, #tpu.memory_space<vmem>>, vector<16x128xf32>,
    %c0_32 = arith.constant 0 : index
    %79 = arith.index_cast %c0_i32_8 : i32 to index
    %c0_33 = arith.constant 0 : index
    %c0_34 = arith.constant 0 : index
    %80 = vector.load %arg7[%c0_32, %79, %c0_33, %c0_34] : memref<1x4x16x128xf32, #tpu.memory_space<vmem>>, vector<1x1x16x128xf32>
    %81 = vector.shape_cast %80 : vector<1x1x16x128xf32> to vector<16x128xf32>
    %82 = vector.shape_cast %76 : vector<16x128xf32> to vector<1x1x16x128xf32>
    tpu.vector_store %arg7[%c0_32, %79, %c0_33, %c0_34], %82 {strides = array<i32>} : memref<1x4x16x128xf32, #tpu.memory_space<vmem>>, vector<1x1x16x128xf32>,
    %c1_i32 = arith.constant 1 : i32
    %c0_35 = arith.constant 0 : index
    %83 = arith.index_cast %c1_i32 : i32 to index
    %c0_36 = arith.constant 0 : index
    %c0_37 = arith.constant 0 : index
    %84 = vector.load %arg2[%c0_35, %83, %c0_36, %c0_37] : memref<1x4x16x4xbf16, #tpu.memory_space<vmem>>, vector<1x1x16x4xbf16>
    %85 = vector.shape_cast %84 : vector<1x1x16x4xbf16> to vector<16x4xbf16>
    %c0_38 = arith.constant 0 : index
    %c0_39 = arith.constant 0 : index
    %86 = vector.load %arg9[%c0_38, %c0_39] : memref<16x128xf32, #tpu.memory_space<vmem>>, vector<16x128xf32>
    %cst_40 = arith.constant dense<0.000000e+00> : vector<16x896xf32>
    %87 = tpu.matmul %85, %3, %cst_40 {dimension_numbers = #tpu.dot_dimension_numbers<[1], [0], [0], [1], [0, 0, 1, 1], [], []>} : vector<16x4xbf16>, vector<4x896xbf16>, vector<16x896xf32> -> vector<16x896xf32>
    %88 = arith.truncf %86 : vector<16x128xf32> to vector<16x128xbf16>
    %cst_41 = arith.constant dense<0.000000e+00> : vector<16x896xf32>
    %89 = tpu.matmul %88, %4, %cst_41 {dimension_numbers = #tpu.dot_dimension_numbers<[1], [0], [0], [1], [0, 0, 1, 1], [], []>} : vector<16x128xbf16>, vector<128x896xbf16>, vector<16x896xf32> -> vector<16x896xf32>
    %90 = arith.addf %87, %89 : vector<16x896xf32>
    %91 = vector.broadcast %6 : vector<1x896xf32> to vector<16x896xf32>
    %92 = arith.addf %90, %91 : vector<16x896xf32>
    %93 = vector.extract_strided_slice %92 {offsets = [0, 0], sizes = [16, 128], strides = [1, 1]} : vector<16x896xf32> to vector<16x128xf32>
    %94 = vector.extract_strided_slice %92 {offsets = [0, 128], sizes = [16, 128], strides = [1, 1]} : vector<16x896xf32> to vector<16x128xf32>
    %95 = vector.extract_strided_slice %92 {offsets = [0, 256], sizes = [16, 128], strides = [1, 1]} : vector<16x896xf32> to vector<16x128xf32>
    %96 = vector.extract_strided_slice %92 {offsets = [0, 384], sizes = [16, 512], strides = [1, 1]} : vector<16x896xf32> to vector<16x512xf32>
    %97 = arith.truncf %93 : vector<16x128xf32> to vector<16x128xbf16>
    %cst_42 = arith.constant 0xFF800000 : f32
    %98 = vector.broadcast %cst_42 : f32 to vector<16x1xf32>
    %cst_43 = arith.constant 0.000000e+00 : f32
    %99 = vector.broadcast %cst_43 : f32 to vector<16x1xf32>
    %cst_44 = arith.constant 0.000000e+00 : f32
    %100 = vector.broadcast %cst_44 : f32 to vector<16x128xf32>
    %101 = arith.truncf %94 : vector<16x128xf32> to vector<16x128xbf16>
    %102 = arith.truncf %95 : vector<16x128xf32> to vector<16x128xbf16>
    %cst_45 = arith.constant dense<0.000000e+00> : vector<16x16xf32>
    %103 = tpu.matmul %97, %101, %cst_45 {dimension_numbers = #tpu.dot_dimension_numbers<[1], [1], [0], [0], [0, 0, 1, 0], [], []>} : vector<16x128xbf16>, vector<16x128xbf16>, vector<16x16xf32> -> vector<16x16xf32>
    %cst_46 = arith.constant dense<0xFF800000> : vector<16xf32>
    %104 = vector.multi_reduction <maximumf>, %103, %cst_46 [1] : vector<16x16xf32> to vector<16xf32>
    %105 = vector.shape_cast %104 : vector<16xf32> to vector<16x1xf32>
    %106 = arith.maximumf %98, %105 : vector<16x1xf32>
    %107 = arith.subf %98, %106 : vector<16x1xf32>
    %108 = math.exp %107 : vector<16x1xf32>
    %109 = vector.broadcast %106 : vector<16x1xf32> to vector<16x16xf32>
    %110 = arith.subf %103, %109 : vector<16x16xf32>
    %111 = math.exp %110 : vector<16x16xf32>
    %112 = arith.mulf %108, %99 : vector<16x1xf32>
    %cst_47 = arith.constant dense<0.000000e+00> : vector<16xf32>
    %113 = vector.multi_reduction <add>, %111, %cst_47 [1] : vector<16x16xf32> to vector<16xf32>
    %114 = vector.shape_cast %113 : vector<16xf32> to vector<16x1xf32>
    %115 = arith.addf %112, %114 : vector<16x1xf32>
    %116 = vector.broadcast %108 : vector<16x1xf32> to vector<16x128xf32>
    %117 = arith.mulf %116, %100 : vector<16x128xf32>
    %118 = arith.truncf %111 : vector<16x16xf32> to vector<16x16xbf16>
    %cst_48 = arith.constant dense<0.000000e+00> : vector<16x128xf32>
    %119 = tpu.matmul %118, %102, %cst_48 {dimension_numbers = #tpu.dot_dimension_numbers<[1], [0], [0], [1], [0, 0, 1, 1], [], []>} : vector<16x16xbf16>, vector<16x128xbf16>, vector<16x128xf32> -> vector<16x128xf32>
    %120 = arith.addf %117, %119 : vector<16x128xf32>
    %121 = tpu.reciprocal %115 : vector<16x1xf32> -> vector<16x1xf32>
    %122 = vector.broadcast %121 : vector<16x1xf32> to vector<16x128xf32>
    %123 = arith.mulf %120, %122 : vector<16x128xf32>
    %124 = arith.truncf %123 : vector<16x128xf32> to vector<16x128xbf16>
    %cst_49 = arith.constant dense<0.000000e+00> : vector<16x512xf32>
    %125 = tpu.matmul %124, %5, %cst_49 {dimension_numbers = #tpu.dot_dimension_numbers<[1], [0], [0], [1], [0, 0, 1, 1], [], []>} : vector<16x128xbf16>, vector<128x512xbf16>, vector<16x512xf32> -> vector<16x512xf32>
    %126 = arith.addf %125, %96 : vector<16x512xf32>
    %127 = vector.extract_strided_slice %126 {offsets = [0, 0], sizes = [16, 128], strides = [1, 1]} : vector<16x512xf32> to vector<16x128xf32>
    %128 = arith.negf %127 : vector<16x128xf32>
    %129 = math.exp %128 : vector<16x128xf32>
    %cst_50 = arith.constant 1.000000e+00 : f32
    %130 = vector.broadcast %cst_50 : f32 to vector<16x128xf32>
    %131 = arith.addf %130, %129 : vector<16x128xf32>
    %132 = arith.divf %130, %131 : vector<16x128xf32>
    %133 = vector.extract_strided_slice %126 {offsets = [0, 128], sizes = [16, 128], strides = [1, 1]} : vector<16x512xf32> to vector<16x128xf32>
    %134 = arith.negf %133 : vector<16x128xf32>
    %135 = math.exp %134 : vector<16x128xf32>
    %cst_51 = arith.constant 1.000000e+00 : f32
    %136 = vector.broadcast %cst_51 : f32 to vector<16x128xf32>
    %137 = arith.addf %136, %135 : vector<16x128xf32>
    %138 = arith.divf %136, %137 : vector<16x128xf32>
    %139 = vector.extract_strided_slice %126 {offsets = [0, 256], sizes = [16, 128], strides = [1, 1]} : vector<16x512xf32> to vector<16x128xf32>
    %140 = arith.negf %139 : vector<16x128xf32>
    %141 = math.exp %140 : vector<16x128xf32>
    %cst_52 = arith.constant 1.000000e+00 : f32
    %142 = vector.broadcast %cst_52 : f32 to vector<16x128xf32>
    %143 = arith.addf %142, %141 : vector<16x128xf32>
    %144 = arith.divf %142, %143 : vector<16x128xf32>
    %145 = vector.extract_strided_slice %126 {offsets = [0, 384], sizes = [16, 128], strides = [1, 1]} : vector<16x512xf32> to vector<16x128xf32>
    %146 = math.tanh %145 : vector<16x128xf32>
    %c0_53 = arith.constant 0 : index
    %c0_54 = arith.constant 0 : index
    %147 = vector.load %arg10[%c0_53, %c0_54] : memref<16x128xf32, #tpu.memory_space<vmem>>, vector<16x128xf32>
    %148 = arith.mulf %138, %147 : vector<16x128xf32>
    %149 = arith.mulf %132, %146 : vector<16x128xf32>
    %150 = arith.addf %148, %149 : vector<16x128xf32>
    %151 = math.tanh %150 : vector<16x128xf32>
    %152 = arith.mulf %144, %151 : vector<16x128xf32>
    %c0_55 = arith.constant 0 : index
    %c0_56 = arith.constant 0 : index
    %153 = vector.load %arg9[%c0_55, %c0_56] : memref<16x128xf32, #tpu.memory_space<vmem>>, vector<16x128xf32>
    tpu.vector_store %arg9[%c0_55, %c0_56], %152 {strides = array<i32>} : memref<16x128xf32, #tpu.memory_space<vmem>>, vector<16x128xf32>,
    %c0_57 = arith.constant 0 : index
    %c0_58 = arith.constant 0 : index
    %154 = vector.load %arg10[%c0_57, %c0_58] : memref<16x128xf32, #tpu.memory_space<vmem>>, vector<16x128xf32>
    tpu.vector_store %arg10[%c0_57, %c0_58], %150 {strides = array<i32>} : memref<16x128xf32, #tpu.memory_space<vmem>>, vector<16x128xf32>,
    %c0_59 = arith.constant 0 : index
    %155 = arith.index_cast %c1_i32 : i32 to index
    %c0_60 = arith.constant 0 : index
    %c0_61 = arith.constant 0 : index
    %156 = vector.load %arg7[%c0_59, %155, %c0_60, %c0_61] : memref<1x4x16x128xf32, #tpu.memory_space<vmem>>, vector<1x1x16x128xf32>
    %157 = vector.shape_cast %156 : vector<1x1x16x128xf32> to vector<16x128xf32>
    %158 = vector.shape_cast %152 : vector<16x128xf32> to vector<1x1x16x128xf32>
    tpu.vector_store %arg7[%c0_59, %155, %c0_60, %c0_61], %158 {strides = array<i32>} : memref<1x4x16x128xf32, #tpu.memory_space<vmem>>, vector<1x1x16x128xf32>,
    %c2_i32 = arith.constant 2 : i32
    %c0_62 = arith.constant 0 : index
    %159 = arith.index_cast %c2_i32 : i32 to index
    %c0_63 = arith.constant 0 : index
    %c0_64 = arith.constant 0 : index
    %160 = vector.load %arg2[%c0_62, %159, %c0_63, %c0_64] : memref<1x4x16x4xbf16, #tpu.memory_space<vmem>>, vector<1x1x16x4xbf16>
    %161 = vector.shape_cast %160 : vector<1x1x16x4xbf16> to vector<16x4xbf16>
    %c0_65 = arith.constant 0 : index
    %c0_66 = arith.constant 0 : index
    %162 = vector.load %arg9[%c0_65, %c0_66] : memref<16x128xf32, #tpu.memory_space<vmem>>, vector<16x128xf32>
    %cst_67 = arith.constant dense<0.000000e+00> : vector<16x896xf32>
    %163 = tpu.matmul %161, %3, %cst_67 {dimension_numbers = #tpu.dot_dimension_numbers<[1], [0], [0], [1], [0, 0, 1, 1], [], []>} : vector<16x4xbf16>, vector<4x896xbf16>, vector<16x896xf32> -> vector<16x896xf32>
    %164 = arith.truncf %162 : vector<16x128xf32> to vector<16x128xbf16>
    %cst_68 = arith.constant dense<0.000000e+00> : vector<16x896xf32>
    %165 = tpu.matmul %164, %4, %cst_68 {dimension_numbers = #tpu.dot_dimension_numbers<[1], [0], [0], [1], [0, 0, 1, 1], [], []>} : vector<16x128xbf16>, vector<128x896xbf16>, vector<16x896xf32> -> vector<16x896xf32>
    %166 = arith.addf %163, %165 : vector<16x896xf32>
    %167 = vector.broadcast %6 : vector<1x896xf32> to vector<16x896xf32>
    %168 = arith.addf %166, %167 : vector<16x896xf32>
    %169 = vector.extract_strided_slice %168 {offsets = [0, 0], sizes = [16, 128], strides = [1, 1]} : vector<16x896xf32> to vector<16x128xf32>
    %170 = vector.extract_strided_slice %168 {offsets = [0, 128], sizes = [16, 128], strides = [1, 1]} : vector<16x896xf32> to vector<16x128xf32>
    %171 = vector.extract_strided_slice %168 {offsets = [0, 256], sizes = [16, 128], strides = [1, 1]} : vector<16x896xf32> to vector<16x128xf32>
    %172 = vector.extract_strided_slice %168 {offsets = [0, 384], sizes = [16, 512], strides = [1, 1]} : vector<16x896xf32> to vector<16x512xf32>
    %173 = arith.truncf %169 : vector<16x128xf32> to vector<16x128xbf16>
    %cst_69 = arith.constant 0xFF800000 : f32
    %174 = vector.broadcast %cst_69 : f32 to vector<16x1xf32>
    %cst_70 = arith.constant 0.000000e+00 : f32
    %175 = vector.broadcast %cst_70 : f32 to vector<16x1xf32>
    %cst_71 = arith.constant 0.000000e+00 : f32
    %176 = vector.broadcast %cst_71 : f32 to vector<16x128xf32>
    %177 = arith.truncf %170 : vector<16x128xf32> to vector<16x128xbf16>
    %178 = arith.truncf %171 : vector<16x128xf32> to vector<16x128xbf16>
    %cst_72 = arith.constant dense<0.000000e+00> : vector<16x16xf32>
    %179 = tpu.matmul %173, %177, %cst_72 {dimension_numbers = #tpu.dot_dimension_numbers<[1], [1], [0], [0], [0, 0, 1, 0], [], []>} : vector<16x128xbf16>, vector<16x128xbf16>, vector<16x16xf32> -> vector<16x16xf32>
    %cst_73 = arith.constant dense<0xFF800000> : vector<16xf32>
    %180 = vector.multi_reduction <maximumf>, %179, %cst_73 [1] : vector<16x16xf32> to vector<16xf32>
    %181 = vector.shape_cast %180 : vector<16xf32> to vector<16x1xf32>
    %182 = arith.maximumf %174, %181 : vector<16x1xf32>
    %183 = arith.subf %174, %182 : vector<16x1xf32>
    %184 = math.exp %183 : vector<16x1xf32>
    %185 = vector.broadcast %182 : vector<16x1xf32> to vector<16x16xf32>
    %186 = arith.subf %179, %185 : vector<16x16xf32>
    %187 = math.exp %186 : vector<16x16xf32>
    %188 = arith.mulf %184, %175 : vector<16x1xf32>
    %cst_74 = arith.constant dense<0.000000e+00> : vector<16xf32>
    %189 = vector.multi_reduction <add>, %187, %cst_74 [1] : vector<16x16xf32> to vector<16xf32>
    %190 = vector.shape_cast %189 : vector<16xf32> to vector<16x1xf32>
    %191 = arith.addf %188, %190 : vector<16x1xf32>
    %192 = vector.broadcast %184 : vector<16x1xf32> to vector<16x128xf32>
    %193 = arith.mulf %192, %176 : vector<16x128xf32>
    %194 = arith.truncf %187 : vector<16x16xf32> to vector<16x16xbf16>
    %cst_75 = arith.constant dense<0.000000e+00> : vector<16x128xf32>
    %195 = tpu.matmul %194, %178, %cst_75 {dimension_numbers = #tpu.dot_dimension_numbers<[1], [0], [0], [1], [0, 0, 1, 1], [], []>} : vector<16x16xbf16>, vector<16x128xbf16>, vector<16x128xf32> -> vector<16x128xf32>
    %196 = arith.addf %193, %195 : vector<16x128xf32>
    %197 = tpu.reciprocal %191 : vector<16x1xf32> -> vector<16x1xf32>
    %198 = vector.broadcast %197 : vector<16x1xf32> to vector<16x128xf32>
    %199 = arith.mulf %196, %198 : vector<16x128xf32>
    %200 = arith.truncf %199 : vector<16x128xf32> to vector<16x128xbf16>
    %cst_76 = arith.constant dense<0.000000e+00> : vector<16x512xf32>
    %201 = tpu.matmul %200, %5, %cst_76 {dimension_numbers = #tpu.dot_dimension_numbers<[1], [0], [0], [1], [0, 0, 1, 1], [], []>} : vector<16x128xbf16>, vector<128x512xbf16>, vector<16x512xf32> -> vector<16x512xf32>
    %202 = arith.addf %201, %172 : vector<16x512xf32>
    %203 = vector.extract_strided_slice %202 {offsets = [0, 0], sizes = [16, 128], strides = [1, 1]} : vector<16x512xf32> to vector<16x128xf32>
    %204 = arith.negf %203 : vector<16x128xf32>
    %205 = math.exp %204 : vector<16x128xf32>
    %cst_77 = arith.constant 1.000000e+00 : f32
    %206 = vector.broadcast %cst_77 : f32 to vector<16x128xf32>
    %207 = arith.addf %206, %205 : vector<16x128xf32>
    %208 = arith.divf %206, %207 : vector<16x128xf32>
    %209 = vector.extract_strided_slice %202 {offsets = [0, 128], sizes = [16, 128], strides = [1, 1]} : vector<16x512xf32> to vector<16x128xf32>
    %210 = arith.negf %209 : vector<16x128xf32>
    %211 = math.exp %210 : vector<16x128xf32>
    %cst_78 = arith.constant 1.000000e+00 : f32
    %212 = vector.broadcast %cst_78 : f32 to vector<16x128xf32>
    %213 = arith.addf %212, %211 : vector<16x128xf32>
    %214 = arith.divf %212, %213 : vector<16x128xf32>
    %215 = vector.extract_strided_slice %202 {offsets = [0, 256], sizes = [16, 128], strides = [1, 1]} : vector<16x512xf32> to vector<16x128xf32>
    %216 = arith.negf %215 : vector<16x128xf32>
    %217 = math.exp %216 : vector<16x128xf32>
    %cst_79 = arith.constant 1.000000e+00 : f32
    %218 = vector.broadcast %cst_79 : f32 to vector<16x128xf32>
    %219 = arith.addf %218, %217 : vector<16x128xf32>
    %220 = arith.divf %218, %219 : vector<16x128xf32>
    %221 = vector.extract_strided_slice %202 {offsets = [0, 384], sizes = [16, 128], strides = [1, 1]} : vector<16x512xf32> to vector<16x128xf32>
    %222 = math.tanh %221 : vector<16x128xf32>
    %c0_80 = arith.constant 0 : index
    %c0_81 = arith.constant 0 : index
    %223 = vector.load %arg10[%c0_80, %c0_81] : memref<16x128xf32, #tpu.memory_space<vmem>>, vector<16x128xf32>
    %224 = arith.mulf %214, %223 : vector<16x128xf32>
    %225 = arith.mulf %208, %222 : vector<16x128xf32>
    %226 = arith.addf %224, %225 : vector<16x128xf32>
    %227 = math.tanh %226 : vector<16x128xf32>
    %228 = arith.mulf %220, %227 : vector<16x128xf32>
    %c0_82 = arith.constant 0 : index
    %c0_83 = arith.constant 0 : index
    %229 = vector.load %arg9[%c0_82, %c0_83] : memref<16x128xf32, #tpu.memory_space<vmem>>, vector<16x128xf32>
    tpu.vector_store %arg9[%c0_82, %c0_83], %228 {strides = array<i32>} : memref<16x128xf32, #tpu.memory_space<vmem>>, vector<16x128xf32>,
    %c0_84 = arith.constant 0 : index
    %c0_85 = arith.constant 0 : index
    %230 = vector.load %arg10[%c0_84, %c0_85] : memref<16x128xf32, #tpu.memory_space<vmem>>, vector<16x128xf32>
    tpu.vector_store %arg10[%c0_84, %c0_85], %226 {strides = array<i32>} : memref<16x128xf32, #tpu.memory_space<vmem>>, vector<16x128xf32>,
    %c0_86 = arith.constant 0 : index
    %231 = arith.index_cast %c2_i32 : i32 to index
    %c0_87 = arith.constant 0 : index
    %c0_88 = arith.constant 0 : index
    %232 = vector.load %arg7[%c0_86, %231, %c0_87, %c0_88] : memref<1x4x16x128xf32, #tpu.memory_space<vmem>>, vector<1x1x16x128xf32>
    %233 = vector.shape_cast %232 : vector<1x1x16x128xf32> to vector<16x128xf32>
    %234 = vector.shape_cast %228 : vector<16x128xf32> to vector<1x1x16x128xf32>
    tpu.vector_store %arg7[%c0_86, %231, %c0_87, %c0_88], %234 {strides = array<i32>} : memref<1x4x16x128xf32, #tpu.memory_space<vmem>>, vector<1x1x16x128xf32>,
    %c3_i32 = arith.constant 3 : i32
    %c0_89 = arith.constant 0 : index
    %235 = arith.index_cast %c3_i32 : i32 to index
    %c0_90 = arith.constant 0 : index
    %c0_91 = arith.constant 0 : index
    %236 = vector.load %arg2[%c0_89, %235, %c0_90, %c0_91] : memref<1x4x16x4xbf16, #tpu.memory_space<vmem>>, vector<1x1x16x4xbf16>
    %237 = vector.shape_cast %236 : vector<1x1x16x4xbf16> to vector<16x4xbf16>
    %c0_92 = arith.constant 0 : index
    %c0_93 = arith.constant 0 : index
    %238 = vector.load %arg9[%c0_92, %c0_93] : memref<16x128xf32, #tpu.memory_space<vmem>>, vector<16x128xf32>
    %cst_94 = arith.constant dense<0.000000e+00> : vector<16x896xf32>
    %239 = tpu.matmul %237, %3, %cst_94 {dimension_numbers = #tpu.dot_dimension_numbers<[1], [0], [0], [1], [0, 0, 1, 1], [], []>} : vector<16x4xbf16>, vector<4x896xbf16>, vector<16x896xf32> -> vector<16x896xf32>
    %240 = arith.truncf %238 : vector<16x128xf32> to vector<16x128xbf16>
    %cst_95 = arith.constant dense<0.000000e+00> : vector<16x896xf32>
    %241 = tpu.matmul %240, %4, %cst_95 {dimension_numbers = #tpu.dot_dimension_numbers<[1], [0], [0], [1], [0, 0, 1, 1], [], []>} : vector<16x128xbf16>, vector<128x896xbf16>, vector<16x896xf32> -> vector<16x896xf32>
    %242 = arith.addf %239, %241 : vector<16x896xf32>
    %243 = vector.broadcast %6 : vector<1x896xf32> to vector<16x896xf32>
    %244 = arith.addf %242, %243 : vector<16x896xf32>
    %245 = vector.extract_strided_slice %244 {offsets = [0, 0], sizes = [16, 128], strides = [1, 1]} : vector<16x896xf32> to vector<16x128xf32>
    %246 = vector.extract_strided_slice %244 {offsets = [0, 128], sizes = [16, 128], strides = [1, 1]} : vector<16x896xf32> to vector<16x128xf32>
    %247 = vector.extract_strided_slice %244 {offsets = [0, 256], sizes = [16, 128], strides = [1, 1]} : vector<16x896xf32> to vector<16x128xf32>
    %248 = vector.extract_strided_slice %244 {offsets = [0, 384], sizes = [16, 512], strides = [1, 1]} : vector<16x896xf32> to vector<16x512xf32>
    %249 = arith.truncf %245 : vector<16x128xf32> to vector<16x128xbf16>
    %cst_96 = arith.constant 0xFF800000 : f32
    %250 = vector.broadcast %cst_96 : f32 to vector<16x1xf32>
    %cst_97 = arith.constant 0.000000e+00 : f32
    %251 = vector.broadcast %cst_97 : f32 to vector<16x1xf32>
    %cst_98 = arith.constant 0.000000e+00 : f32
    %252 = vector.broadcast %cst_98 : f32 to vector<16x128xf32>
    %253 = arith.truncf %246 : vector<16x128xf32> to vector<16x128xbf16>
    %254 = arith.truncf %247 : vector<16x128xf32> to vector<16x128xbf16>
    %cst_99 = arith.constant dense<0.000000e+00> : vector<16x16xf32>
    %255 = tpu.matmul %249, %253, %cst_99 {dimension_numbers = #tpu.dot_dimension_numbers<[1], [1], [0], [0], [0, 0, 1, 0], [], []>} : vector<16x128xbf16>, vector<16x128xbf16>, vector<16x16xf32> -> vector<16x16xf32>
    %cst_100 = arith.constant dense<0xFF800000> : vector<16xf32>
    %256 = vector.multi_reduction <maximumf>, %255, %cst_100 [1] : vector<16x16xf32> to vector<16xf32>
    %257 = vector.shape_cast %256 : vector<16xf32> to vector<16x1xf32>
    %258 = arith.maximumf %250, %257 : vector<16x1xf32>
    %259 = arith.subf %250, %258 : vector<16x1xf32>
    %260 = math.exp %259 : vector<16x1xf32>
    %261 = vector.broadcast %258 : vector<16x1xf32> to vector<16x16xf32>
    %262 = arith.subf %255, %261 : vector<16x16xf32>
    %263 = math.exp %262 : vector<16x16xf32>
    %264 = arith.mulf %260, %251 : vector<16x1xf32>
    %cst_101 = arith.constant dense<0.000000e+00> : vector<16xf32>
    %265 = vector.multi_reduction <add>, %263, %cst_101 [1] : vector<16x16xf32> to vector<16xf32>
    %266 = vector.shape_cast %265 : vector<16xf32> to vector<16x1xf32>
    %267 = arith.addf %264, %266 : vector<16x1xf32>
    %268 = vector.broadcast %260 : vector<16x1xf32> to vector<16x128xf32>
    %269 = arith.mulf %268, %252 : vector<16x128xf32>
    %270 = arith.truncf %263 : vector<16x16xf32> to vector<16x16xbf16>
    %cst_102 = arith.constant dense<0.000000e+00> : vector<16x128xf32>
    %271 = tpu.matmul %270, %254, %cst_102 {dimension_numbers = #tpu.dot_dimension_numbers<[1], [0], [0], [1], [0, 0, 1, 1], [], []>} : vector<16x16xbf16>, vector<16x128xbf16>, vector<16x128xf32> -> vector<16x128xf32>
    %272 = arith.addf %269, %271 : vector<16x128xf32>
    %273 = tpu.reciprocal %267 : vector<16x1xf32> -> vector<16x1xf32>
    %274 = vector.broadcast %273 : vector<16x1xf32> to vector<16x128xf32>
    %275 = arith.mulf %272, %274 : vector<16x128xf32>
    %276 = arith.truncf %275 : vector<16x128xf32> to vector<16x128xbf16>
    %cst_103 = arith.constant dense<0.000000e+00> : vector<16x512xf32>
    %277 = tpu.matmul %276, %5, %cst_103 {dimension_numbers = #tpu.dot_dimension_numbers<[1], [0], [0], [1], [0, 0, 1, 1], [], []>} : vector<16x128xbf16>, vector<128x512xbf16>, vector<16x512xf32> -> vector<16x512xf32>
    %278 = arith.addf %277, %248 : vector<16x512xf32>
    %279 = vector.extract_strided_slice %278 {offsets = [0, 0], sizes = [16, 128], strides = [1, 1]} : vector<16x512xf32> to vector<16x128xf32>
    %280 = arith.negf %279 : vector<16x128xf32>
    %281 = math.exp %280 : vector<16x128xf32>
    %cst_104 = arith.constant 1.000000e+00 : f32
    %282 = vector.broadcast %cst_104 : f32 to vector<16x128xf32>
    %283 = arith.addf %282, %281 : vector<16x128xf32>
    %284 = arith.divf %282, %283 : vector<16x128xf32>
    %285 = vector.extract_strided_slice %278 {offsets = [0, 128], sizes = [16, 128], strides = [1, 1]} : vector<16x512xf32> to vector<16x128xf32>
    %286 = arith.negf %285 : vector<16x128xf32>
    %287 = math.exp %286 : vector<16x128xf32>
    %cst_105 = arith.constant 1.000000e+00 : f32
    %288 = vector.broadcast %cst_105 : f32 to vector<16x128xf32>
    %289 = arith.addf %288, %287 : vector<16x128xf32>
    %290 = arith.divf %288, %289 : vector<16x128xf32>
    %291 = vector.extract_strided_slice %278 {offsets = [0, 256], sizes = [16, 128], strides = [1, 1]} : vector<16x512xf32> to vector<16x128xf32>
    %292 = arith.negf %291 : vector<16x128xf32>
    %293 = math.exp %292 : vector<16x128xf32>
    %cst_106 = arith.constant 1.000000e+00 : f32
    %294 = vector.broadcast %cst_106 : f32 to vector<16x128xf32>
    %295 = arith.addf %294, %293 : vector<16x128xf32>
    %296 = arith.divf %294, %295 : vector<16x128xf32>
    %297 = vector.extract_strided_slice %278 {offsets = [0, 384], sizes = [16, 128], strides = [1, 1]} : vector<16x512xf32> to vector<16x128xf32>
    %298 = math.tanh %297 : vector<16x128xf32>
    %c0_107 = arith.constant 0 : index
    %c0_108 = arith.constant 0 : index
    %299 = vector.load %arg10[%c0_107, %c0_108] : memref<16x128xf32, #tpu.memory_space<vmem>>, vector<16x128xf32>
    %300 = arith.mulf %290, %299 : vector<16x128xf32>
    %301 = arith.mulf %284, %298 : vector<16x128xf32>
    %302 = arith.addf %300, %301 : vector<16x128xf32>
    %303 = math.tanh %302 : vector<16x128xf32>
    %304 = arith.mulf %296, %303 : vector<16x128xf32>
    %c0_109 = arith.constant 0 : index
    %c0_110 = arith.constant 0 : index
    %305 = vector.load %arg9[%c0_109, %c0_110] : memref<16x128xf32, #tpu.memory_space<vmem>>, vector<16x128xf32>
    tpu.vector_store %arg9[%c0_109, %c0_110], %304 {strides = array<i32>} : memref<16x128xf32, #tpu.memory_space<vmem>>, vector<16x128xf32>,
    %c0_111 = arith.constant 0 : index
    %c0_112 = arith.constant 0 : index
    %306 = vector.load %arg10[%c0_111, %c0_112] : memref<16x128xf32, #tpu.memory_space<vmem>>, vector<16x128xf32>
    tpu.vector_store %arg10[%c0_111, %c0_112], %302 {strides = array<i32>} : memref<16x128xf32, #tpu.memory_space<vmem>>, vector<16x128xf32>,
    %c0_113 = arith.constant 0 : index
    %307 = arith.index_cast %c3_i32 : i32 to index
    %c0_114 = arith.constant 0 : index
    %c0_115 = arith.constant 0 : index
    %308 = vector.load %arg7[%c0_113, %307, %c0_114, %c0_115] : memref<1x4x16x128xf32, #tpu.memory_space<vmem>>, vector<1x1x16x128xf32>
    %309 = vector.shape_cast %308 : vector<1x1x16x128xf32> to vector<16x128xf32>
    %310 = vector.shape_cast %304 : vector<16x128xf32> to vector<1x1x16x128xf32>
    tpu.vector_store %arg7[%c0_113, %307, %c0_114, %c0_115], %310 {strides = array<i32>} : memref<1x4x16x128xf32, #tpu.memory_space<vmem>>, vector<1x1x16x128xf32>,
    %c4_i32 = arith.constant 4 : i32
    %c1_i32_116 = arith.constant 1 : i32
    %311 = arith.cmpi eq, %arg1, %c1_i32_116 : i32
    %312 = arith.extui %311 : i1 to i32
    %c0_i32_117 = arith.constant 0 : i32
    %313 = arith.cmpi ne, %312, %c0_i32_117 : i32
    scf.if %313 {
      %c0_118 = arith.constant 0 : index
      %c0_119 = arith.constant 0 : index
      %314 = vector.load %arg10[%c0_118, %c0_119] : memref<16x128xf32, #tpu.memory_space<vmem>>, vector<16x128xf32>
      %c0_120 = arith.constant 0 : index
      %c0_121 = arith.constant 0 : index
      %c0_122 = arith.constant 0 : index
      %315 = vector.load %arg8[%c0_120, %c0_121, %c0_122] : memref<1x16x128xf32, #tpu.memory_space<vmem>>, vector<1x16x128xf32>
      %316 = vector.shape_cast %315 : vector<1x16x128xf32> to vector<16x128xf32>
      %317 = vector.shape_cast %314 : vector<16x128xf32> to vector<1x16x128xf32>
      tpu.vector_store %arg8[%c0_120, %c0_121, %c0_122], %317 {strides = array<i32>} : memref<1x16x128xf32, #tpu.memory_space<vmem>>, vector<1x16x128xf32>,
    } else {
    }
    return
  }
  func.func @transform_0(%arg0: i32, %arg1: i32) -> (i32, i32, i32, i32) {
    %c0_i32 = arith.constant 0 : i32
    %c0_i32_0 = arith.constant 0 : i32
    %c0_i32_1 = arith.constant 0 : i32
    return %arg0, %arg1, %c0_i32, %c0_i32_0 : i32, i32, i32, i32
  }
  func.func @transform_1(%arg0: i32, %arg1: i32) -> (i32, i32) {
    %c0_i32 = arith.constant 0 : i32
    %c0_i32_0 = arith.constant 0 : i32
    %c0_i32_1 = arith.constant 0 : i32
    return %c0_i32, %c0_i32_0 : i32, i32
  }
  func.func @transform_2(%arg0: i32, %arg1: i32) -> (i32, i32) {
    %c0_i32 = arith.constant 0 : i32
    %c0_i32_0 = arith.constant 0 : i32
    %c0_i32_1 = arith.constant 0 : i32
    return %c0_i32, %c0_i32_0 : i32, i32
  }
  func.func @transform_3(%arg0: i32, %arg1: i32) -> (i32, i32) {
    %c0_i32 = arith.constant 0 : i32
    %c0_i32_0 = arith.constant 0 : i32
    %c0_i32_1 = arith.constant 0 : i32
    return %c0_i32, %c0_i32_0 : i32, i32
  }
  func.func @transform_4(%arg0: i32, %arg1: i32) -> (i32, i32) {
    %c0_i32 = arith.constant 0 : i32
    %c0_i32_0 = arith.constant 0 : i32
    %c0_i32_1 = arith.constant 0 : i32
    return %c0_i32, %c0_i32_0 : i32, i32
  }
  func.func @transform_5(%arg0: i32, %arg1: i32) -> (i32, i32, i32, i32) {
    %c0_i32 = arith.constant 0 : i32
    %c0_i32_0 = arith.constant 0 : i32
    %c0_i32_1 = arith.constant 0 : i32
    return %arg0, %arg1, %c0_i32, %c0_i32_0 : i32, i32, i32, i32
  }
  func.func @transform_6(%arg0: i32, %arg1: i32) -> (i32, i32, i32) {
    %c0_i32 = arith.constant 0 : i32
    %c0_i32_0 = arith.constant 0 : i32
    %c0_i32_1 = arith.constant 0 : i32
    return %arg0, %c0_i32, %c0_i32_0 : i32, i32, i32
  }
}

</mosaic_0001>

<llo_original>
// kernel: tpu_custom_call.1
$region0: #{tpu_custom_call.1}
  #allocation0 [shape = 'u32[]', space=smem, size = 0x4, offset = 0x4, fixed_abs, tag = 'smem constant byte address 0x4 - core index']
  #allocation1 [shape = 'u32[72,128]{1,0:T(1,128)}', space=vmem, size = 0x9000, scoped, tag = 'internal scratch']
  #allocation2 [shape = 'f32[16,128]{1,0:T(8,128)}', space=vmem, size = 0x2000, scoped, tag = 'scratch operand']
  #allocation3 [shape = 'f32[16,128]{1,0:T(8,128)}', space=vmem, size = 0x2000, scoped, tag = 'scratch operand']
  %s0 = inlined_call_operand.vmem [shape: bf16[2,8,16,4], index: 0, kind: input, shape index: {}]
  %s1 = inlined_call_operand.vmem [shape: bf16[4,896], index: 1, kind: input, shape index: {}]
  %s2 = inlined_call_operand.hbm [shape: bf16[128,896], index: 2, kind: input, shape index: {}]
  %s3 = inlined_call_operand.vmem [shape: f32[1,896], index: 3, kind: input, shape index: {}]
  %s4 = inlined_call_operand.hbm [shape: bf16[128,512], index: 4, kind: input, shape index: {}]
  %s5 = inlined_call_operand.hbm [shape: f32[2,8,16,128], index: 5, kind: output, shape index: {0}]
  %s6 = inlined_call_operand.hbm [shape: f32[2,16,128], index: 6, kind: output, shape index: {1}]
  %7 = xla_tuple %s5, %s6
  %s8 = sld [smem:[#allocation0]]
  $region77: #{tpu_custom_call.1} parent=0
    _
  %s10 = ssub.s32 1, %s8
  %s11 = scalar_select 0, %s10, %s8
  $region1: #{tpu_custom_call.1} parent=0
    #allocation4 [shape = 'u8[229376]{0}', space=vmem, size = 0x38000, scoped, tag = 'input window, operand 2, single buffered']
    #allocation5 [shape = 's32[2]{0}', space=sflag, size = 0x8, scoped, tag = 'scoped memory for tpu_custom_call.1']
    #allocation6 [shape = 's32[2]{0}', space=sflag, size = 0x8, scoped, tag = 'scoped memory for tpu_custom_call.1']
    #allocation7 [shape = 'u8[131072]{0}', space=vmem, size = 0x20000, scoped, tag = 'input window, operand 4, single buffered']
    #allocation8 [shape = 's32[1]{0}', space=sflag, size = 0x4, scoped, tag = 'scoped memory for tpu_custom_call.1']
    #allocation9 [shape = 'u8[65536]{0}', space=vmem, size = 0x10000, scoped, tag = 'output window, operand 0']
    #allocation10 [shape = 'u8[16384]{0}', space=vmem, size = 0x4000, scoped, tag = 'output window, operand 1']
    #allocation11 [shape = 's32[2]{0}', space=sflag, size = 0x8, scoped, tag = 'scoped memory for tpu_custom_call.1']
    %12 = vsyncpa [#allocation5], 0
    %13 = vsyncpa [#allocation8], 0
    %14 = vsyncpa [#allocation6], 0
    %s15 = scalar_lea.sflag [#allocation6], 1
    %16 = vsyncpa %s15, 0
    %17 = vsyncpa [#allocation11], 0
    %s18 = scalar_lea.sflag [#allocation11], 1
    %19 = vsyncpa %s18, 0
    loop: start=0, step=1, limit=6
    $region2: #{tpu_custom_call.1} parent=1 // loop_pre_header
      _
    $region3: #{tpu_custom_call.1} parent=1 // loop_header
      %s21 = sphi 0, %s25
      %p22 = scmp.ge.s32.totalorder %s21, 6
      %s28 = sphi 0, %s40
      %s29 = sphi 0, %s36
      %s30 = sphi 0, %s28
      %s31 = sphi 0, %s29
      %s32 = sphi 0, %s30
      %s33 = sphi 0, %s31
      %s45 = sphi 0, %s47
      %s48 = sphi 0, %s45
      %s49 = sphi 0, %s48
      %s65 = sphi 0, %s49
      %s69 = sphi 0, %s69
      %s71 = sphi 0, %s69
      %s72 = sphi 0, %s71
      %s86 = sphi 0, %s72
      %s90 = sphi 0, %s90
      %s92 = sphi 0, %s90
      %s93 = sphi 0, %s92
      %s107 = sphi 0, %s93
      %s111 = sphi 0, %s111
      %s113 = sphi 0, %s111
      %s114 = sphi 0, %s113
      %s128 = sphi 0, %s114
      %s132 = sphi 0, %s132
      %s134 = sphi 0, %s132
      %s135 = sphi 0, %s134
      %s149 = sphi 0, %s135
      %s157 = sphi 0, %s159
      %s160 = sphi 0, %s157
      %s161 = sphi 0, %s160
      %s177 = sphi 0, %s161
      %s183 = sphi 0, %s185
      %s186 = sphi 0, %s183
      %s187 = sphi 0, %s186
      %s203 = sphi 0, %s187
    $region4: #{tpu_custom_call.1} parent=1 // loop_header_branch
      %24 = sbr.rel (%p22) target = $region8
    $region5: #{tpu_custom_call.1} parent=1 // loop_body
      %s26 = ssub.s32 %s21, 1
      %s27 = ssub.s32 %s21, 2
      %s34 = sadd.s32 1, %s29
      %p35 = scmp.ge.s32.totalorder %s34, 2
      %s36 = scalar_select %p35, 0, %s34
      %s37 = sadd.s32 1, %s28
      %s38 = scalar_select %p35, %s37, %s28
      %p39 = scmp.ge.s32.totalorder %s38, 2
      %s40 = scalar_select %p39, 0, %s38
      %s41 = ssub.s32 %s28, %s40
      %s42 = ssub.s32 %s29, %s36
      %s43 = sor.u32 %s41, %s42
      %p44 = scmp.eq.s32.totalorder %s43, 0
      %s46 = sadd.s32 %s45, 1
      %s47 = scalar_select %p44, %s45, %s46
      %p50 = pneg %p44
      %p51 = scmp.eq.s32.totalorder %s21, 3
      %p52 = por %p50, %p51
      %p53 = scmp.ne.s32.totalorder %s45, %s48
      %p54 = scmp.eq.s32.totalorder %s21, 0
      %p55 = por %p53, %p54
      %p56 = scmp.ne.s32.totalorder %s45, %s48
      %p57 = scmp.eq.s32.totalorder %s26, 3
      %p58 = por %p56, %p57
      %p59 = scmp.ne.s32.totalorder %s48, %s49
      %p60 = scmp.eq.s32.totalorder %s26, 0
      %p61 = por %p59, %p60
      %p62 = scmp.ne.s32.totalorder %s48, %s49
      %p63 = scmp.eq.s32.totalorder %s27, 3
      %p64 = por %p62, %p63
      %p66 = scmp.ne.s32.totalorder %s49, %s65
      %p67 = scmp.eq.s32.totalorder %s27, 0
      %p68 = por %p66, %p67
      %s70 = sadd.s32 %s69, 1
      %p73 = scmp.eq.s32.totalorder %s21, 3
      %p74 = scmp.ne.s32.totalorder %s69, %s71
      %p75 = scmp.eq.s32.totalorder %s21, 0
      %p76 = por %p74, %p75
      %p77 = scmp.ne.s32.totalorder %s69, %s71
      %p78 = scmp.eq.s32.totalorder %s26, 3
      %p79 = por %p77, %p78
      %p80 = scmp.ne.s32.totalorder %s71, %s72
      %p81 = scmp.eq.s32.totalorder %s26, 0
      %p82 = por %p80, %p81
      %p83 = scmp.ne.s32.totalorder %s71, %s72
      %p84 = scmp.eq.s32.totalorder %s27, 3
      %p85 = por %p83, %p84
      %p87 = scmp.ne.s32.totalorder %s72, %s86
      %p88 = scmp.eq.s32.totalorder %s27, 0
      %p89 = por %p87, %p88
      %s91 = sadd.s32 %s90, 1
      %p94 = scmp.eq.s32.totalorder %s21, 3
      %p95 = scmp.ne.s32.totalorder %s90, %s92
      %p96 = scmp.eq.s32.totalorder %s21, 0
      %p97 = por %p95, %p96
      %p98 = scmp.ne.s32.totalorder %s90, %s92
      %p99 = scmp.eq.s32.totalorder %s26, 3
      %p100 = por %p98, %p99
      %p101 = scmp.ne.s32.totalorder %s92, %s93
      %p102 = scmp.eq.s32.totalorder %s26, 0
      %p103 = por %p101, %p102
      %p104 = scmp.ne.s32.totalorder %s92, %s93
      %p105 = scmp.eq.s32.totalorder %s27, 3
      %p106 = por %p104, %p105
      %p108 = scmp.ne.s32.totalorder %s93, %s107
      %p109 = scmp.eq.s32.totalorder %s27, 0
      %p110 = por %p108, %p109
      %s112 = sadd.s32 %s111, 1
      %p115 = scmp.eq.s32.totalorder %s21, 3
      %p116 = scmp.ne.s32.totalorder %s111, %s113
      %p117 = scmp.eq.s32.totalorder %s21, 0
      %p118 = por %p116, %p117
      %p119 = scmp.ne.s32.totalorder %s111, %s113
      %p120 = scmp.eq.s32.totalorder %s26, 3
      %p121 = por %p119, %p120
      %p122 = scmp.ne.s32.totalorder %s113, %s114
      %p123 = scmp.eq.s32.totalorder %s26, 0
      %p124 = por %p122, %p123
      %p125 = scmp.ne.s32.totalorder %s113, %s114
      %p126 = scmp.eq.s32.totalorder %s27, 3
      %p127 = por %p125, %p126
      %p129 = scmp.ne.s32.totalorder %s114, %s128
      %p130 = scmp.eq.s32.totalorder %s27, 0
      %p131 = por %p129, %p130
      %s133 = sadd.s32 %s132, 1
      %p136 = scmp.eq.s32.totalorder %s21, 3
      %p137 = scmp.ne.s32.totalorder %s132, %s134
      %p138 = scmp.eq.s32.totalorder %s21, 0
      %p139 = por %p137, %p138
      %p140 = scmp.ne.s32.totalorder %s132, %s134
      %p141 = scmp.eq.s32.totalorder %s26, 3
      %p142 = por %p140, %p141
      %p143 = scmp.ne.s32.totalorder %s134, %s135
      %p144 = scmp.eq.s32.totalorder %s26, 0
      %p145 = por %p143, %p144
      %p146 = scmp.ne.s32.totalorder %s134, %s135
      %p147 = scmp.eq.s32.totalorder %s27, 3
      %p148 = por %p146, %p147
      %p150 = scmp.ne.s32.totalorder %s135, %s149
      %p151 = scmp.eq.s32.totalorder %s27, 0
      %p152 = por %p150, %p151
      %s153 = ssub.s32 %s28, %s40
      %s154 = ssub.s32 %s29, %s36
      %s155 = sor.u32 %s153, %s154
      %p156 = scmp.eq.s32.totalorder %s155, 0
      %s158 = sadd.s32 %s157, 1
      %s159 = scalar_select %p156, %s157, %s158
      %p162 = pneg %p156
      %p163 = scmp.eq.s32.totalorder %s21, 3
      %p164 = por %p162, %p163
      %p165 = scmp.ne.s32.totalorder %s157, %s160
      %p166 = scmp.eq.s32.totalorder %s21, 0
      %p167 = por %p165, %p166
      %p168 = scmp.ne.s32.totalorder %s157, %s160
      %p169 = scmp.eq.s32.totalorder %s26, 3
      %p170 = por %p168, %p169
      %p171 = scmp.ne.s32.totalorder %s160, %s161
      %p172 = scmp.eq.s32.totalorder %s26, 0
      %p173 = por %p171, %p172
      %p174 = scmp.ne.s32.totalorder %s160, %s161
      %p175 = scmp.eq.s32.totalorder %s27, 3
      %p176 = por %p174, %p175
      %p178 = scmp.ne.s32.totalorder %s161, %s177
      %p179 = scmp.eq.s32.totalorder %s27, 0
      %p180 = por %p178, %p179
      %s181 = ssub.s32 %s28, %s40
      %p182 = scmp.eq.s32.totalorder %s181, 0
      %s184 = sadd.s32 %s183, 1
      %s185 = scalar_select %p182, %s183, %s184
      %p188 = pneg %p182
      %p189 = scmp.eq.s32.totalorder %s21, 3
      %p190 = por %p188, %p189
      %p191 = scmp.ne.s32.totalorder %s183, %s186
      %p192 = scmp.eq.s32.totalorder %s21, 0
      %p193 = por %p191, %p192
      %p194 = scmp.ne.s32.totalorder %s183, %s186
      %p195 = scmp.eq.s32.totalorder %s26, 3
      %p196 = por %p194, %p195
      %p197 = scmp.ne.s32.totalorder %s186, %s187
      %p198 = scmp.eq.s32.totalorder %s26, 0
      %p199 = por %p197, %p198
      %p200 = scmp.ne.s32.totalorder %s186, %s187
      %p201 = scmp.eq.s32.totalorder %s27, 3
      %p202 = por %p200, %p201
      %p204 = scmp.ne.s32.totalorder %s187, %s203
      %p205 = scmp.eq.s32.totalorder %s27, 0
      %p206 = por %p204, %p205
      %p207 = scmp.le.s32.totalorder 1, %s21
      %p208 = scmp.lt.s32.totalorder %s21, 5
      %p209 = pnand %p207, %p208
      %p210 = pneg %p209
      // Predicated region
      $region9: #{tpu_custom_call.1} parent=5 // pred_check
        _
      $region10: #{tpu_custom_call.1} parent=5 // pred_check_branch
        %212 = sbr.rel (%p209) target = $region12
      $region11: #{tpu_custom_call.1} parent=5 // pred_region
        %s213 = ssub.s32 %s21, 1
        // Predicated region
        $region13: #{tpu_custom_call.1} parent=11 // pred_check
          %p214 = pneg %p82
        $region14: #{tpu_custom_call.1} parent=11 // pred_check_branch
          %216 = sbr.rel (%p214) target = $region16
        $region15: #{tpu_custom_call.1} parent=11 // pred_region
          _
        $region16: #{tpu_custom_call.1} parent=11 // pred_fallthru
          _
        // Predicated region
        $region17: #{tpu_custom_call.1} parent=11 // pred_check
          %p217 = pneg %p103
        $region18: #{tpu_custom_call.1} parent=11 // pred_check_branch
          %219 = sbr.rel (%p217) target = $region20
        $region19: #{tpu_custom_call.1} parent=11 // pred_region
          %221 = vsyncadd [#allocation5], 0
          %s222 = sshll.u32 %s2, 4
          %s223 = int_to_ptr.hbm [resolvable:$true] %s222
          %s224 = sshll.u32 [#allocation4], 4
          %s225 = int_to_ptr.vmem [resolvable:$true] %s224
          %230 = dma.hbm_to_vmem [thread:$0]  %s223, 7168, %s225, [#allocation5], 448, 448, 28
        $region20: #{tpu_custom_call.1} parent=11 // pred_fallthru
          _
        // Predicated region
        $region21: #{tpu_custom_call.1} parent=11 // pred_check
          %p231 = pneg %p124
        $region22: #{tpu_custom_call.1} parent=11 // pred_check_branch
          %233 = sbr.rel (%p231) target = $region24
        $region23: #{tpu_custom_call.1} parent=11 // pred_region
          _
        $region24: #{tpu_custom_call.1} parent=11 // pred_fallthru
          _
        // Predicated region
        $region25: #{tpu_custom_call.1} parent=11 // pred_check
          %p234 = pneg %p145
        $region26: #{tpu_custom_call.1} parent=11 // pred_check_branch
          %236 = sbr.rel (%p234) target = $region28
        $region27: #{tpu_custom_call.1} parent=11 // pred_region
          %238 = vsyncadd [#allocation8], 0
          %s239 = sshll.u32 %s4, 4
          %s240 = int_to_ptr.hbm [resolvable:$true] %s239
          %s241 = sshll.u32 [#allocation7], 4
          %s242 = int_to_ptr.vmem [resolvable:$true] %s241
          %247 = dma.hbm_to_vmem [thread:$0]  %s240, 4096, %s242, [#allocation8], 256, 256, 16
        $region28: #{tpu_custom_call.1} parent=11 // pred_fallthru
          _
      $region12: #{tpu_custom_call.1} parent=5 // pred_fallthru
        _
      %p248 = scmp.lt.s32.totalorder %s21, 4
      // Predicated region
      $region29: #{tpu_custom_call.1} parent=5 // pred_check
        %p249 = pneg %p248
      $region30: #{tpu_custom_call.1} parent=5 // pred_check_branch
        %251 = sbr.rel (%p249) target = $region32
      $region31: #{tpu_custom_call.1} parent=5 // pred_region
        // Predicated region
        $region33: #{tpu_custom_call.1} parent=31 // pred_check
          %p252 = pneg %p55
        $region34: #{tpu_custom_call.1} parent=31 // pred_check_branch
          %254 = sbr.rel (%p252) target = $region36
        $region35: #{tpu_custom_call.1} parent=31 // pred_region
          %s255 = smul.u32 4, %s29
          %p256 = scmp.lt.s32.totalorder %s28, 1
          %s257 = scalar_select %p256, %s28, 1
          %p258 = scmp.lt.s32.totalorder %s255, 7
          %s259 = scalar_select %p258, %s255, 7
          %s260 = smul.addr %s259, 2
          %s261 = smul.addr %s257, 16
          %s262 = sadd.s32 %s260, %s261
          %s263 = smul.addr %s262, 4
          %s264 = scalar_lea.vmem %s0, %s263
          %s265 = smul.u32 4, %s29
        $region36: #{tpu_custom_call.1} parent=31 // pred_fallthru
          _
      $region32: #{tpu_custom_call.1} parent=5 // pred_fallthru
        _
      %p266 = scmp.le.s32.totalorder 1, %s21
      %p267 = scmp.lt.s32.totalorder %s21, 5
      %p268 = pnand %p266, %p267
      %p269 = pneg %p268
      // Predicated region
      $region37: #{tpu_custom_call.1} parent=5 // pred_check
        _
      $region38: #{tpu_custom_call.1} parent=5 // pred_check_branch
        %271 = sbr.rel (%p268) target = $region40
      $region39: #{tpu_custom_call.1} parent=5 // pred_region
        %s272 = ssub.s32 %s21, 1
        // Predicated region
        $region41: #{tpu_custom_call.1} parent=39 // pred_check
          %p273 = pneg %p103
        $region42: #{tpu_custom_call.1} parent=39 // pred_check_branch
          %275 = sbr.rel (%p273) target = $region44
        $region43: #{tpu_custom_call.1} parent=39 // pred_region
          %277 = dma.done [#allocation5], 7168
        $region44: #{tpu_custom_call.1} parent=39 // pred_fallthru
          _
        // Predicated region
        $region45: #{tpu_custom_call.1} parent=39 // pred_check
          %p278 = pneg %p145
        $region46: #{tpu_custom_call.1} parent=39 // pred_check_branch
          %280 = sbr.rel (%p278) target = $region48
        $region47: #{tpu_custom_call.1} parent=39 // pred_region
          %282 = dma.done [#allocation8], 4096
        $region48: #{tpu_custom_call.1} parent=39 // pred_fallthru
          _
        %s283 = smul.u32 4, %s31
        %p284 = scmp.lt.s32.totalorder %s30, 1
        %s285 = scalar_select %p284, %s30, 1
        %p286 = scmp.lt.s32.totalorder %s283, 7
        %s287 = scalar_select %p286, %s283, 7
        %s288 = smul.addr %s287, 2
        %s289 = smul.addr %s285, 16
        %s290 = sadd.s32 %s288, %s289
        %s291 = smul.addr %s290, 4
        %s292 = scalar_lea.vmem %s0, %s291
        %p293 = pneg %p61
        %p294 = pneg %p58
        %p295 = pneg %p82
        %p296 = pneg %p79
        %p297 = pneg %p103
        %p298 = pneg %p100
        %p299 = pneg %p124
        %p300 = pneg %p121
        %p301 = pneg %p145
        %p302 = pneg %p142
        %p303 = pneg %p173
        %p304 = pneg %p170
        %s305 = sand.u32 %s160, 1
        %s306 = scalar_lea.sflag [#allocation6], %s305
        %s307 = sand.u32 %s160, 1
        %s308 = smul.addr %s307, 64
        %s309 = scalar_lea.vmem [#allocation9], %s308
        %p310 = pneg %p199
        %p311 = pneg %p196
        %s312 = sand.u32 %s186, 1
        %s313 = scalar_lea.sflag [#allocation11], %s312
        %s314 = sand.u32 %s186, 1
        %s315 = smul.addr %s314, 16
        %s316 = scalar_lea.vmem [#allocation10], %s315
        %s317 = smul.u32 4, %s31
        %p318 = scmp.lt.s32.totalorder %s30, 1
        %s319 = scalar_select %p318, %s30, 1
        %p320 = scmp.lt.s32.totalorder %s317, 7
        %s321 = scalar_select %p320, %s317, 7
        %s322 = smul.addr %s321, 2
        %s323 = smul.addr %s319, 16
        %s324 = sadd.s32 %s322, %s323
        %s325 = smul.addr %s324, 4
        %s326 = scalar_lea.vmem %s0, %s325
        %s327 = smul.u32 4, %s31
        %s328 = smul.u32 4, %s31
        %p330 = scmp.eq.s32.totalorder %s31, 0
        // Predicated region
        $region49: #{tpu_custom_call.1} parent=39 // pred_check
          %p331 = pneg %p330
        $region50: #{tpu_custom_call.1} parent=39 // pred_check_branch
          %333 = sbr.rel (%p331) target = $region52
        $region51: #{tpu_custom_call.1} parent=39 // pred_region
          %334 = vst [vmem:[#allocation2] sm:$0xff] 0.0
          %335 = vst [vmem:[#allocation2 + $0x8] sm:$0xff] 0.0
          %336 = vst [vmem:[#allocation3] sm:$0xff] 0.0
          %337 = vst [vmem:[#allocation3 + $0x8] sm:$0xff] 0.0
        $region52: #{tpu_custom_call.1} parent=39 // pred_fallthru
          _
        %v338 = vld [vmem:[%s1] sm:$0xff]
        %v339 = vld [vmem:[%s1 + $0x8] sm:$0x3f]
        %v340 = vld [vmem:[#allocation4] sm:$0xff]
        %v341 = vld [vmem:[#allocation4 + $0x8] sm:$0xff]
        %v342 = vld [vmem:[#allocation4 + $0x10] sm:$0xff]
        %v343 = vld [vmem:[#allocation4 + $0x18] sm:$0xf]
        %v344 = vld [vmem:[#allocation4 + $0x1c] sm:$0xff]
        %v345 = vld [vmem:[#allocation4 + $0x24] sm:$0xff]
        %v346 = vld [vmem:[#allocation4 + $0x2c] sm:$0xff]
        %v347 = vld [vmem:[#allocation4 + $0x34] sm:$0xf]
        %v348 = vld [vmem:[#allocation4 + $0x38] sm:$0xff]
        %v349 = vld [vmem:[#allocation4 + $0x40] sm:$0xff]
        %v350 = vld [vmem:[#allocation4 + $0x48] sm:$0xff]
        %v351 = vld [vmem:[#allocation4 + $0x50] sm:$0xf]
        %v352 = vld [vmem:[#allocation4 + $0x54] sm:$0xff]
        %v353 = vld [vmem:[#allocation4 + $0x5c] sm:$0xff]
        %v354 = vld [vmem:[#allocation4 + $0x64] sm:$0xff]
        %v355 = vld [vmem:[#allocation4 + $0x6c] sm:$0xf]
        %v356 = vld [vmem:[#allocation4 + $0x70] sm:$0xff]
        %v357 = vld [vmem:[#allocation4 + $0x78] sm:$0xff]
        %v358 = vld [vmem:[#allocation4 + $0x80] sm:$0xff]
        %v359 = vld [vmem:[#allocation4 + $0x88] sm:$0xf]
        %v360 = vld [vmem:[#allocation4 + $0x8c] sm:$0xff]
        %v361 = vld [vmem:[#allocation4 + $0x94] sm:$0xff]
        %v362 = vld [vmem:[#allocation4 + $0x9c] sm:$0xff]
        %v363 = vld [vmem:[#allocation4 + $0xa4] sm:$0xf]
        %v364 = vld [vmem:[#allocation4 + $0xa8] sm:$0xff]
        %v365 = vld [vmem:[#allocation4 + $0xb0] sm:$0xff]
        %v366 = vld [vmem:[#allocation4 + $0xb8] sm:$0xff]
        %v367 = vld [vmem:[#allocation4 + $0xc0] sm:$0xf]
        %v368 = vld [vmem:[#allocation4 + $0xc4] sm:$0xff]
        %v369 = vld [vmem:[#allocation4 + $0xcc] sm:$0xff]
        %v370 = vld [vmem:[#allocation4 + $0xd4] sm:$0xff]
        %v371 = vld [vmem:[#allocation4 + $0xdc] sm:$0xf]
        %v372 = vld [vmem:[#allocation4 + $0xe0] sm:$0xff]
        %v373 = vld [vmem:[#allocation4 + $0xe8] sm:$0xff]
        %v374 = vld [vmem:[#allocation4 + $0xf0] sm:$0xff]
        %v375 = vld [vmem:[#allocation4 + $0xf8] sm:$0xf]
        %v376 = vld [vmem:[#allocation4 + $0xfc] sm:$0xff]
        %v377 = vld [vmem:[#allocation4 + $0x104] sm:$0xff]
        %v378 = vld [vmem:[#allocation4 + $0x10c] sm:$0xff]
        %v379 = vld [vmem:[#allocation4 + $0x114] sm:$0xf]
        %v380 = vld [vmem:[#allocation4 + $0x118] sm:$0xff]
        %v381 = vld [vmem:[#allocation4 + $0x120] sm:$0xff]
        %v382 = vld [vmem:[#allocation4 + $0x128] sm:$0xff]
        %v383 = vld [vmem:[#allocation4 + $0x130] sm:$0xf]
        %v384 = vld [vmem:[#allocation4 + $0x134] sm:$0xff]
        %v385 = vld [vmem:[#allocation4 + $0x13c] sm:$0xff]
        %v386 = vld [vmem:[#allocation4 + $0x144] sm:$0xff]
        %v387 = vld [vmem:[#allocation4 + $0x14c] sm:$0xf]
        %v388 = vld [vmem:[#allocation4 + $0x150] sm:$0xff]
        %v389 = vld [vmem:[#allocation4 + $0x158] sm:$0xff]
        %v390 = vld [vmem:[#allocation4 + $0x160] sm:$0xff]
        %v391 = vld [vmem:[#allocation4 + $0x168] sm:$0xf]
        %v392 = vld [vmem:[#allocation4 + $0x16c] sm:$0xff]
        %v393 = vld [vmem:[#allocation4 + $0x174] sm:$0xff]
        %v394 = vld [vmem:[#allocation4 + $0x17c] sm:$0xff]
        %v395 = vld [vmem:[#allocation4 + $0x184] sm:$0xf]
        %v396 = vld [vmem:[#allocation4 + $0x188] sm:$0xff]
        %v397 = vld [vmem:[#allocation4 + $0x190] sm:$0xff]
        %v398 = vld [vmem:[#allocation4 + $0x198] sm:$0xff]
        %v399 = vld [vmem:[#allocation4 + $0x1a0] sm:$0xf]
        %v400 = vld [vmem:[#allocation4 + $0x1a4] sm:$0xff]
        %v401 = vld [vmem:[#allocation4 + $0x1ac] sm:$0xff]
        %v402 = vld [vmem:[#allocation4 + $0x1b4] sm:$0xff]
        %v403 = vld [vmem:[#allocation4 + $0x1bc] sm:$0xf]
        %v404 = vld [vmem:[#allocation7] sm:$0xff]
        %v405 = vld [vmem:[#allocation7 + $0x8] sm:$0xff]
        %v406 = vld [vmem:[#allocation7 + $0x10] sm:$0xff]
        %v407 = vld [vmem:[#allocation7 + $0x18] sm:$0xff]
        %v408 = vld [vmem:[#allocation7 + $0x20] sm:$0xff]
        %v409 = vld [vmem:[#allocation7 + $0x28] sm:$0xff]
        %v410 = vld [vmem:[#allocation7 + $0x30] sm:$0xff]
        %v411 = vld [vmem:[#allocation7 + $0x38] sm:$0xff]
        %v412 = vld [vmem:[#allocation7 + $0x40] sm:$0xff]
        %v413 = vld [vmem:[#allocation7 + $0x48] sm:$0xff]
        %v414 = vld [vmem:[#allocation7 + $0x50] sm:$0xff]
        %v415 = vld [vmem:[#allocation7 + $0x58] sm:$0xff]
        %v416 = vld [vmem:[#allocation7 + $0x60] sm:$0xff]
        %v417 = vld [vmem:[#allocation7 + $0x68] sm:$0xff]
        %v418 = vld [vmem:[#allocation7 + $0x70] sm:$0xff]
        %v419 = vld [vmem:[#allocation7 + $0x78] sm:$0xff]
        %v420 = vld [vmem:[#allocation7 + $0x80] sm:$0xff]
        %v421 = vld [vmem:[#allocation7 + $0x88] sm:$0xff]
        %v422 = vld [vmem:[#allocation7 + $0x90] sm:$0xff]
        %v423 = vld [vmem:[#allocation7 + $0x98] sm:$0xff]
        %v424 = vld [vmem:[#allocation7 + $0xa0] sm:$0xff]
        %v425 = vld [vmem:[#allocation7 + $0xa8] sm:$0xff]
        %v426 = vld [vmem:[#allocation7 + $0xb0] sm:$0xff]
        %v427 = vld [vmem:[#allocation7 + $0xb8] sm:$0xff]
        %v428 = vld [vmem:[#allocation7 + $0xc0] sm:$0xff]
        %v429 = vld [vmem:[#allocation7 + $0xc8] sm:$0xff]
        %v430 = vld [vmem:[#allocation7 + $0xd0] sm:$0xff]
        %v431 = vld [vmem:[#allocation7 + $0xd8] sm:$0xff]
        %v432 = vld [vmem:[#allocation7 + $0xe0] sm:$0xff]
        %v433 = vld [vmem:[#allocation7 + $0xe8] sm:$0xff]
        %v434 = vld [vmem:[#allocation7 + $0xf0] sm:$0xff]
        %v435 = vld [vmem:[#allocation7 + $0xf8] sm:$0xff]
        %v436 = vld [vmem:[%s3] sm:$0xff]
        %v437 = vld [vmem:[%s326] sm:$0xf]
        %v438 = vld [vmem:[%s326 + $0x4] sm:$0xf]
        %v439 = vld [vmem:[#allocation2] sm:$0xff]
        %v440 = vld [vmem:[#allocation2 + $0x8] sm:$0xff]
        %v441 = vpack.c.bf16 %v440, %v439
        %v506 = vunpack.c.l.b16 %v340
        %v507 = vunpack.c.h.b16 %v340
        %v508 = vunpack.c.l.b16 %v341
        %v509 = vunpack.c.h.b16 %v341
        %v510 = vunpack.c.l.b16 %v342
        %v511 = vunpack.c.h.b16 %v342
        %v512 = vunpack.c.l.b16 %v343
        %v513 = vunpack.c.l.b16 %v344
        %v514 = vunpack.c.h.b16 %v344
        %v515 = vunpack.c.l.b16 %v345
        %v516 = vunpack.c.h.b16 %v345
        %v517 = vunpack.c.l.b16 %v346
        %v518 = vunpack.c.h.b16 %v346
        %v519 = vunpack.c.l.b16 %v347
        %v520 = vunpack.c.l.b16 %v348
        %v521 = vunpack.c.h.b16 %v348
        %v522 = vunpack.c.l.b16 %v349
        %v523 = vunpack.c.h.b16 %v349
        %v524 = vunpack.c.l.b16 %v350
        %v525 = vunpack.c.h.b16 %v350
        %v526 = vunpack.c.l.b16 %v351
        %v527 = vunpack.c.l.b16 %v352
        %v528 = vunpack.c.h.b16 %v352
        %v529 = vunpack.c.l.b16 %v353
        %v530 = vunpack.c.h.b16 %v353
        %v531 = vunpack.c.l.b16 %v354
        %v532 = vunpack.c.h.b16 %v354
        %v533 = vunpack.c.l.b16 %v355
        %v534 = vunpack.c.l.b16 %v356
        %v535 = vunpack.c.h.b16 %v356
        %v536 = vunpack.c.l.b16 %v357
        %v537 = vunpack.c.h.b16 %v357
        %v538 = vunpack.c.l.b16 %v358
        %v539 = vunpack.c.h.b16 %v358
        %v540 = vunpack.c.l.b16 %v359
        %v541 = vunpack.c.l.b16 %v360
        %v542 = vunpack.c.h.b16 %v360
        %v543 = vunpack.c.l.b16 %v361
        %v544 = vunpack.c.h.b16 %v361
        %v545 = vunpack.c.l.b16 %v362
        %v546 = vunpack.c.h.b16 %v362
        %v547 = vunpack.c.l.b16 %v363
        %v548 = vunpack.c.l.b16 %v364
        %v549 = vunpack.c.h.b16 %v364
        %v550 = vunpack.c.l.b16 %v365
        %v551 = vunpack.c.h.b16 %v365
        %v552 = vunpack.c.l.b16 %v366
        %v553 = vunpack.c.h.b16 %v366
        %v554 = vunpack.c.l.b16 %v367
        %v555 = vunpack.c.l.b16 %v368
        %v556 = vunpack.c.h.b16 %v368
        %v557 = vunpack.c.l.b16 %v369
        %v558 = vunpack.c.h.b16 %v369
        %v559 = vunpack.c.l.b16 %v370
        %v560 = vunpack.c.h.b16 %v370
        %v561 = vunpack.c.l.b16 %v371
        %v562 = vunpack.c.l.b16 %v372
        %v563 = vunpack.c.h.b16 %v372
        %v564 = vunpack.c.l.b16 %v373
        %v565 = vunpack.c.h.b16 %v373
        %v566 = vunpack.c.l.b16 %v374
        %v567 = vunpack.c.h.b16 %v374
        %v568 = vunpack.c.l.b16 %v375
        %v569 = vunpack.c.l.b16 %v376
        %v570 = vunpack.c.h.b16 %v376
        %v571 = vunpack.c.l.b16 %v377
        %v572 = vunpack.c.h.b16 %v377
        %v573 = vunpack.c.l.b16 %v378
        %v574 = vunpack.c.h.b16 %v378
        %v575 = vunpack.c.l.b16 %v379
        %v576 = vunpack.c.l.b16 %v380
        %v577 = vunpack.c.h.b16 %v380
        %v578 = vunpack.c.l.b16 %v381
        %v579 = vunpack.c.h.b16 %v381
        %v580 = vunpack.c.l.b16 %v382
        %v581 = vunpack.c.h.b16 %v382
        %v582 = vunpack.c.l.b16 %v383
        %v583 = vunpack.c.l.b16 %v384
        %v584 = vunpack.c.h.b16 %v384
        %v585 = vunpack.c.l.b16 %v385
        %v586 = vunpack.c.h.b16 %v385
        %v587 = vunpack.c.l.b16 %v386
        %v588 = vunpack.c.h.b16 %v386
        %v589 = vunpack.c.l.b16 %v387
        %v590 = vunpack.c.l.b16 %v388
        %v591 = vunpack.c.h.b16 %v388
        %v592 = vunpack.c.l.b16 %v389
        %v593 = vunpack.c.h.b16 %v389
        %v594 = vunpack.c.l.b16 %v390
        %v595 = vunpack.c.h.b16 %v390
        %v596 = vunpack.c.l.b16 %v391
        %v597 = vunpack.c.l.b16 %v392
        %v598 = vunpack.c.h.b16 %v392
        %v599 = vunpack.c.l.b16 %v393
        %v600 = vunpack.c.h.b16 %v393
        %v601 = vunpack.c.l.b16 %v394
        %v602 = vunpack.c.h.b16 %v394
        %v603 = vunpack.c.l.b16 %v395
        %v604 = vunpack.c.l.b16 %v396
        %v605 = vunpack.c.h.b16 %v396
        %v606 = vunpack.c.l.b16 %v397
        %v607 = vunpack.c.h.b16 %v397
        %v608 = vunpack.c.l.b16 %v398
        %v609 = vunpack.c.h.b16 %v398
        %v610 = vunpack.c.l.b16 %v399
        %v611 = vunpack.c.l.b16 %v400
        %v612 = vunpack.c.h.b16 %v400
        %v613 = vunpack.c.l.b16 %v401
        %v614 = vunpack.c.h.b16 %v401
        %v615 = vunpack.c.l.b16 %v402
        %v616 = vunpack.c.h.b16 %v402
        %v617 = vunpack.c.l.b16 %v403
        %v618 = vpack.c.b16 %v513, %v506
        %v619 = vpack.c.b16 %v514, %v507
        %v620 = vpack.c.b16 %v515, %v508
        %v621 = vpack.c.b16 %v516, %v509
        %v622 = vpack.c.b16 %v517, %v510
        %v623 = vpack.c.b16 %v518, %v511
        %v624 = vpack.c.b16 %v519, %v512
        %v625 = vpack.c.b16 %v527, %v520
        %v626 = vpack.c.b16 %v528, %v521
        %v627 = vpack.c.b16 %v529, %v522
        %v628 = vpack.c.b16 %v530, %v523
        %v629 = vpack.c.b16 %v531, %v524
        %v630 = vpack.c.b16 %v532, %v525
        %v631 = vpack.c.b16 %v533, %v526
        %v632 = vpack.c.b16 %v541, %v534
        %v633 = vpack.c.b16 %v542, %v535
        %v634 = vpack.c.b16 %v543, %v536
        %v635 = vpack.c.b16 %v544, %v537
        %v636 = vpack.c.b16 %v545, %v538
        %v637 = vpack.c.b16 %v546, %v539
        %v638 = vpack.c.b16 %v547, %v540
        %v639 = vpack.c.b16 %v555, %v548
        %v640 = vpack.c.b16 %v556, %v549
        %v641 = vpack.c.b16 %v557, %v550
        %v642 = vpack.c.b16 %v558, %v551
        %v643 = vpack.c.b16 %v559, %v552
        %v644 = vpack.c.b16 %v560, %v553
        %v645 = vpack.c.b16 %v561, %v554
        %v646 = vpack.c.b16 %v569, %v562
        %v647 = vpack.c.b16 %v570, %v563
        %v648 = vpack.c.b16 %v571, %v564
        %v649 = vpack.c.b16 %v572, %v565
        %v650 = vpack.c.b16 %v573, %v566
        %v651 = vpack.c.b16 %v574, %v567
        %v652 = vpack.c.b16 %v575, %v568
        %v653 = vpack.c.b16 %v583, %v576
        %v654 = vpack.c.b16 %v584, %v577
        %v655 = vpack.c.b16 %v585, %v578
        %v656 = vpack.c.b16 %v586, %v579
        %v657 = vpack.c.b16 %v587, %v580
        %v658 = vpack.c.b16 %v588, %v581
        %v659 = vpack.c.b16 %v589, %v582
        %v660 = vpack.c.b16 %v597, %v590
        %v661 = vpack.c.b16 %v598, %v591
        %v662 = vpack.c.b16 %v599, %v592
        %v663 = vpack.c.b16 %v600, %v593
        %v664 = vpack.c.b16 %v601, %v594
        %v665 = vpack.c.b16 %v602, %v595
        %v666 = vpack.c.b16 %v603, %v596
        %v667 = vpack.c.b16 %v611, %v604
        %v668 = vpack.c.b16 %v612, %v605
        %v669 = vpack.c.b16 %v613, %v606
        %v670 = vpack.c.b16 %v614, %v607
        %v671 = vpack.c.b16 %v615, %v608
        %v672 = vpack.c.b16 %v616, %v609
        %v673 = vpack.c.b16 %v617, %v610
        %730 = vmatpush.bf16.msra.mxu0 %v667
        %731 = vmatpush.bf16.msra.mxu0 %v660
        %732 = vmatpush.bf16.msra.mxu0 %v653
        %733 = vmatpush.bf16.msra.mxu0 %v646
        %734 = vmatpush.bf16.msra.mxu0 %v639
        %735 = vmatpush.bf16.msra.mxu0 %v632
        %736 = vmatpush.bf16.msra.mxu0 %v625
        %737 = vmatpush.bf16.msra.mxu0 %v618
        %738 = vmatmul.bf16.gmra.mxu0 %v441
        %v739 = vpop.f32.mrf.mxu0
        %v740 = vadd.f32 0.0, %v739
        %v741 = vpop.f32.mrf.mxu0
        %v742 = vadd.f32 0.0, %v741
        %743 = vdwg.mxu0
        %744 = vmatpush.bf16.msra.mxu0 %v668
        %745 = vmatpush.bf16.msra.mxu0 %v661
        %746 = vmatpush.bf16.msra.mxu0 %v654
        %747 = vmatpush.bf16.msra.mxu0 %v647
        %748 = vmatpush.bf16.msra.mxu0 %v640
        %749 = vmatpush.bf16.msra.mxu0 %v633
        %750 = vmatpush.bf16.msra.mxu0 %v626
        %751 = vmatpush.bf16.msra.mxu0 %v619
        %752 = vmatmul.bf16.gmra.mxu0 %v441
        %v753 = vpop.f32.mrf.mxu0
        %v754 = vadd.f32 0.0, %v753
        %v755 = vpop.f32.mrf.mxu0
        %v756 = vadd.f32 0.0, %v755
        %757 = vdwg.mxu0
        %758 = vmatpush.bf16.msra.mxu0 %v669
        %759 = vmatpush.bf16.msra.mxu0 %v662
        %760 = vmatpush.bf16.msra.mxu0 %v655
        %761 = vmatpush.bf16.msra.mxu0 %v648
        %762 = vmatpush.bf16.msra.mxu0 %v641
        %763 = vmatpush.bf16.msra.mxu0 %v634
        %764 = vmatpush.bf16.msra.mxu0 %v627
        %765 = vmatpush.bf16.msra.mxu0 %v620
        %766 = vmatmul.bf16.gmra.mxu0 %v441
        %v767 = vpop.f32.mrf.mxu0
        %v768 = vadd.f32 0.0, %v767
        %v769 = vpop.f32.mrf.mxu0
        %v770 = vadd.f32 0.0, %v769
        %771 = vdwg.mxu0
        %772 = vmatpush.bf16.msra.mxu0 %v670
        %773 = vmatpush.bf16.msra.mxu0 %v663
        %774 = vmatpush.bf16.msra.mxu0 %v656
        %775 = vmatpush.bf16.msra.mxu0 %v649
        %776 = vmatpush.bf16.msra.mxu0 %v642
        %777 = vmatpush.bf16.msra.mxu0 %v635
        %778 = vmatpush.bf16.msra.mxu0 %v628
        %779 = vmatpush.bf16.msra.mxu0 %v621
        %780 = vmatmul.bf16.gmra.mxu0 %v441
        %v781 = vpop.f32.mrf.mxu0
        %v782 = vadd.f32 0.0, %v781
        %v783 = vpop.f32.mrf.mxu0
        %v784 = vadd.f32 0.0, %v783
        %785 = vdwg.mxu0
        %786 = vmatpush.bf16.msra.mxu0 %v671
        %787 = vmatpush.bf16.msra.mxu0 %v664
        %788 = vmatpush.bf16.msra.mxu0 %v657
        %789 = vmatpush.bf16.msra.mxu0 %v650
        %790 = vmatpush.bf16.msra.mxu0 %v643
        %791 = vmatpush.bf16.msra.mxu0 %v636
        %792 = vmatpush.bf16.msra.mxu0 %v629
        %793 = vmatpush.bf16.msra.mxu0 %v622
        %794 = vmatmul.bf16.gmra.mxu0 %v441
        %v795 = vpop.f32.mrf.mxu0
        %v796 = vadd.f32 0.0, %v795
        %v797 = vpop.f32.mrf.mxu0
        %v798 = vadd.f32 0.0, %v797
        %799 = vdwg.mxu0
        %800 = vmatpush.bf16.msra.mxu0 %v672
        %801 = vmatpush.bf16.msra.mxu0 %v665
        %802 = vmatpush.bf16.msra.mxu0 %v658
        %803 = vmatpush.bf16.msra.mxu0 %v651
        %804 = vmatpush.bf16.msra.mxu0 %v644
        %805 = vmatpush.bf16.msra.mxu0 %v637
        %806 = vmatpush.bf16.msra.mxu0 %v630
        %807 = vmatpush.bf16.msra.mxu0 %v623
        %808 = vmatmul.bf16.gmra.mxu0 %v441
        %v809 = vpop.f32.mrf.mxu0
        %v810 = vadd.f32 0.0, %v809
        %v811 = vpop.f32.mrf.mxu0
        %v812 = vadd.f32 0.0, %v811
        %813 = vdwg.mxu0
        %814 = vmatpush.bf16.msra.mxu0 %v673
        %815 = vmatpush.bf16.msra.mxu0 %v666
        %816 = vmatpush.bf16.msra.mxu0 %v659
        %817 = vmatpush.bf16.msra.mxu0 %v652
        %818 = vmatpush.bf16.msra.mxu0 %v645
        %819 = vmatpush.bf16.msra.mxu0 %v638
        %820 = vmatpush.bf16.msra.mxu0 %v631
        %821 = vmatpush.bf16.msra.mxu0 %v624
        %822 = vmatmul.bf16.gmra.mxu0 %v441
        %v823 = vpop.f32.mrf.mxu0
        %v824 = vadd.f32 0.0, %v823
        %v825 = vpop.f32.mrf.mxu0
        %v826 = vadd.f32 0.0, %v825
        %827 = vdwg.mxu0
        %v830 = vunpack.c.l.b16 %v437
        %v831 = vunpack.c.l.b16 %v438
        %v832 = vpack.c.b16 %v831, %v830
        %834 = vst [vmem:[#allocation1] ss:$4 sm:$0xff] %v338
        %s836 = scalar_lea.vmem [#allocation1], 32
        %837 = vst [vmem:[%s836] ss:$4 sm:$0xff] %v339
        %v838 = vld.sshfl [vmem:[#allocation1] sm:$0xff pattern:$0x73625140]
        %v839 = vld.sshfl [vmem:[#allocation1 + $0x8] sm:$0xff pattern:$0x73625140]
        %v840 = vld.sshfl [vmem:[#allocation1 + $0x10] sm:$0xff pattern:$0x73625140]
        %v841 = vld.sshfl [vmem:[#allocation1 + $0x18] sm:$0xff pattern:$0x73625140]
        %v842 = vld.sshfl [vmem:[#allocation1 + $0x20] sm:$0xff pattern:$0x73625140]
        %v843 = vld.sshfl [vmem:[#allocation1 + $0x28] sm:$0xff pattern:$0x73625140]
        %v844 = vld.sshfl [vmem:[#allocation1 + $0x30] sm:$0xff pattern:$0x73625140]
        %vm845 = vcmask 31744
        %v847 = vsel %vm845, %v832, 0
        %vm849 = vcmask 1041408
        %v850 = vsel %vm849, %v838, 0
        %v852 = vsel %vm849, %v839, 0
        %v854 = vsel %vm849, %v840, 0
        %v856 = vsel %vm849, %v841, 0
        %v858 = vsel %vm849, %v842, 0
        %v860 = vsel %vm849, %v843, 0
        %v862 = vsel %vm849, %v844, 0
        %864 = vmatpush.bf16.msra.mxu0 0
        %865 = vmatpush.bf16.msra.mxu0 0
        %866 = vmatpush.bf16.msra.mxu0 0
        %867 = vmatpush.bf16.msra.mxu0 0
        %868 = vmatpush.bf16.msra.mxu0 0
        %869 = vmatpush.bf16.msra.mxu0 0
        %870 = vmatpush.bf16.msra.mxu0 0
        %871 = vmatpush.bf16.msra.mxu0 %v850
        %872 = vmatmul.bf16.gmra.mxu0 %v847
        %v873 = vpop.f32.mrf.mxu0
        %v874 = vadd.f32 %v740, %v873
        %v875 = vpop.f32.mrf.mxu0
        %v876 = vadd.f32 %v742, %v875
        %877 = vdwg.mxu0
        %878 = vmatpush.bf16.msra.mxu0 0
        %879 = vmatpush.bf16.msra.mxu0 0
        %880 = vmatpush.bf16.msra.mxu0 0
        %881 = vmatpush.bf16.msra.mxu0 0
        %882 = vmatpush.bf16.msra.mxu0 0
        %883 = vmatpush.bf16.msra.mxu0 0
        %884 = vmatpush.bf16.msra.mxu0 0
        %885 = vmatpush.bf16.msra.mxu0 %v852
        %886 = vmatmul.bf16.gmra.mxu0 %v847
        %v887 = vpop.f32.mrf.mxu0
        %v888 = vadd.f32 %v754, %v887
        %v889 = vpop.f32.mrf.mxu0
        %v890 = vadd.f32 %v756, %v889
        %891 = vdwg.mxu0
        %892 = vmatpush.bf16.msra.mxu0 0
        %893 = vmatpush.bf16.msra.mxu0 0
        %894 = vmatpush.bf16.msra.mxu0 0
        %895 = vmatpush.bf16.msra.mxu0 0
        %896 = vmatpush.bf16.msra.mxu0 0
        %897 = vmatpush.bf16.msra.mxu0 0
        %898 = vmatpush.bf16.msra.mxu0 0
        %899 = vmatpush.bf16.msra.mxu0 %v854
        %900 = vmatmul.bf16.gmra.mxu0 %v847
        %v901 = vpop.f32.mrf.mxu0
        %v902 = vadd.f32 %v768, %v901
        %v903 = vpop.f32.mrf.mxu0
        %v904 = vadd.f32 %v770, %v903
        %905 = vdwg.mxu0
        %906 = vmatpush.bf16.msra.mxu0 0
        %907 = vmatpush.bf16.msra.mxu0 0
        %908 = vmatpush.bf16.msra.mxu0 0
        %909 = vmatpush.bf16.msra.mxu0 0
        %910 = vmatpush.bf16.msra.mxu0 0
        %911 = vmatpush.bf16.msra.mxu0 0
        %912 = vmatpush.bf16.msra.mxu0 0
        %913 = vmatpush.bf16.msra.mxu0 %v856
        %914 = vmatmul.bf16.gmra.mxu0 %v847
        %v915 = vpop.f32.mrf.mxu0
        %v916 = vadd.f32 %v782, %v915
        %v917 = vpop.f32.mrf.mxu0
        %v918 = vadd.f32 %v784, %v917
        %919 = vdwg.mxu0
        %920 = vmatpush.bf16.msra.mxu0 0
        %921 = vmatpush.bf16.msra.mxu0 0
        %922 = vmatpush.bf16.msra.mxu0 0
        %923 = vmatpush.bf16.msra.mxu0 0
        %924 = vmatpush.bf16.msra.mxu0 0
        %925 = vmatpush.bf16.msra.mxu0 0
        %926 = vmatpush.bf16.msra.mxu0 0
        %927 = vmatpush.bf16.msra.mxu0 %v858
        %928 = vmatmul.bf16.gmra.mxu0 %v847
        %v929 = vpop.f32.mrf.mxu0
        %v930 = vadd.f32 %v796, %v929
        %v931 = vpop.f32.mrf.mxu0
        %v932 = vadd.f32 %v798, %v931
        %933 = vdwg.mxu0
        %934 = vmatpush.bf16.msra.mxu0 0
        %935 = vmatpush.bf16.msra.mxu0 0
        %936 = vmatpush.bf16.msra.mxu0 0
        %937 = vmatpush.bf16.msra.mxu0 0
        %938 = vmatpush.bf16.msra.mxu0 0
        %939 = vmatpush.bf16.msra.mxu0 0
        %940 = vmatpush.bf16.msra.mxu0 0
        %941 = vmatpush.bf16.msra.mxu0 %v860
        %942 = vmatmul.bf16.gmra.mxu0 %v847
        %v943 = vpop.f32.mrf.mxu0
        %v944 = vadd.f32 %v810, %v943
        %v945 = vpop.f32.mrf.mxu0
        %v946 = vadd.f32 %v812, %v945
        %947 = vdwg.mxu0
        %948 = vmatpush.bf16.msra.mxu0 0
        %949 = vmatpush.bf16.msra.mxu0 0
        %950 = vmatpush.bf16.msra.mxu0 0
        %951 = vmatpush.bf16.msra.mxu0 0
        %952 = vmatpush.bf16.msra.mxu0 0
        %953 = vmatpush.bf16.msra.mxu0 0
        %954 = vmatpush.bf16.msra.mxu0 0
        %955 = vmatpush.bf16.msra.mxu0 %v862
        %956 = vmatmul.bf16.gmra.mxu0 %v847
        %v957 = vpop.f32.mrf.mxu0
        %v958 = vadd.f32 %v824, %v957
        %v959 = vpop.f32.mrf.mxu0
        %v960 = vadd.f32 %v826, %v959
        %961 = vdwg.mxu0
        %v963 = vperm.slane %v436, 0
        %v964 = vperm.slane %v436, 1
        %v965 = vperm.slane %v436, 2
        %v966 = vperm.slane %v436, 3
        %v967 = vperm.slane %v436, 4
        %v968 = vperm.slane %v436, 5
        %v969 = vperm.slane %v436, 6
        %v977 = vadd.f32 %v874, %v963
        %v978 = vadd.f32 %v888, %v964
        %v979 = vadd.f32 %v902, %v965
        %v980 = vadd.f32 %v916, %v966
        %v981 = vadd.f32 %v930, %v967
        %v982 = vadd.f32 %v944, %v968
        %v983 = vadd.f32 %v958, %v969
        %v984 = vadd.f32 %v876, %v963
        %v985 = vadd.f32 %v890, %v964
        %v986 = vadd.f32 %v904, %v965
        %v987 = vadd.f32 %v918, %v966
        %v988 = vadd.f32 %v932, %v967
        %v989 = vadd.f32 %v946, %v968
        %v990 = vadd.f32 %v960, %v969
        %v991 = vpack.c.bf16 %v984, %v977
        %v992 = vpack.c.bf16 %v985, %v978
        %v993 = vpack.c.bf16 %v986, %v979
        %994 = vmatpush.bf16.xpose.msra.mxu0 0
        %995 = vmatpush.bf16.xpose.msra.mxu0 0
        %996 = vmatpush.bf16.xpose.msra.mxu0 0
        %997 = vmatpush.bf16.xpose.msra.mxu0 0
        %998 = vmatpush.bf16.xpose.msra.mxu0 0
        %999 = vmatpush.bf16.xpose.msra.mxu0 0
        %1000 = vmatpush.bf16.xpose.msra.mxu0 0
        %1001 = vmatpush.bf16.xpose.msra.mxu0 %v992
        %1002 = vmatmul.bf16.gmra.mxu0 %v991
        %v1003 = vpop.f32.mrf.mxu0
        %v1004 = vadd.f32 0.0, %v1003
        %v1005 = vpop.f32.mrf.mxu0
        %v1006 = vadd.f32 0.0, %v1005
        %1007 = vdwg.mxu0
        %vm1008 = vcmask 130048
        %v1009 = vsel %vm1008, %v1004, -inf
        %1010 = vmax.xlane.f32.xlu0 %v1009
        %v1011 = vpop.xlane.xlu0 %1010
        %v1012 = vsel %vm1008, %v1006, -inf
        %1013 = vmax.xlane.f32.xlu0 %v1012
        %v1014 = vpop.xlane.xlu0 %1013
        %v1015 = vsub.f32 -inf, %v1011
        %v1016 = vsub.f32 -inf, %v1014
        %v1017 = vmul.f32 %v1015, 1.442695
        %v1018 = vpow.pop %v1017
        %v1019 = vmul.f32 %v1016, 1.442695
        %v1020 = vpow.pop %v1019
        %v1021 = vsub.f32 %v1004, %v1011
        %v1022 = vsub.f32 %v1006, %v1014
        %v1023 = vmul.f32 %v1021, 1.442695
        %v1024 = vpow.pop %v1023
        %v1025 = vmul.f32 %v1022, 1.442695
        %v1026 = vpow.pop %v1025
        %v1027 = vmul.f32 %v1018, 0.0
        %v1028 = vmul.f32 %v1020, 0.0
        %v1029 = vsel %vm1008, %v1024, 0.0
        %1030 = vadd.xlane.f32.xlu0 %v1029
        %v1031 = vpop.xlane.xlu0 %1030
        %v1032 = vsel %vm1008, %v1026, 0.0
        %1033 = vadd.xlane.f32.xlu0 %v1032
        %v1034 = vpop.xlane.xlu0 %1033
        %v1035 = vadd.f32 %v1027, %v1031
        %v1036 = vadd.f32 %v1028, %v1034
        %v1037 = vpack.c.bf16 %v1026, %v1024
        %v1039 = vsel %vm1008, %v1037, 0
        %1041 = vmatpush.bf16.msra.mxu0 0
        %1042 = vmatpush.bf16.msra.mxu0 0
        %1043 = vmatpush.bf16.msra.mxu0 0
        %1044 = vmatpush.bf16.msra.mxu0 0
        %1045 = vmatpush.bf16.msra.mxu0 0
        %1046 = vmatpush.bf16.msra.mxu0 0
        %1047 = vmatpush.bf16.msra.mxu0 0
        %1048 = vmatpush.bf16.msra.mxu0 %v993
        %1049 = vmatmul.bf16.gmra.mxu0 %v1039
        %v1050 = vpop.f32.mrf.mxu0
        %v1051 = vadd.f32 0.0, %v1050
        %v1052 = vpop.f32.mrf.mxu0
        %v1053 = vadd.f32 0.0, %v1052
        %1054 = vdwg.mxu0
        %v1055 = vadd.f32 %v1027, %v1051
        %v1056 = vadd.f32 %v1028, %v1053
        %v1057 = vrcp.pop %v1035
        %v1058 = vmul.f32 %v1035, %v1057
        %v1059 = vsub.f32 1.0, %v1058
        %v1060 = vmul.f32 %v1057, %v1059
        %v1061 = vadd.f32 %v1057, %v1060
        %vm1062 = vweird.f32 %v1035
        %vm1063 = vweird.f32 %v1057
        %vm1064 = vmor %vm1062, %vm1063
        %v1065 = vsel %vm1064, %v1057, %v1061
        %v1066 = vand.u32 2147483647, %v1035
        %vm1067 = vcmp.eq.f32.partialorder %v1066, 8.507059e+37
        %v1068 = vand.u32 %v1035, 2147483648
        %v1069 = vor.u32 1.1754944e-38, %v1068
        %v1070 = vsel %vm1067, %v1069, %v1065
        %v1071 = vrcp.pop %v1036
        %v1072 = vmul.f32 %v1036, %v1071
        %v1073 = vsub.f32 1.0, %v1072
        %v1074 = vmul.f32 %v1071, %v1073
        %v1075 = vadd.f32 %v1071, %v1074
        %vm1076 = vweird.f32 %v1036
        %vm1077 = vweird.f32 %v1071
        %vm1078 = vmor %vm1076, %vm1077
        %v1079 = vsel %vm1078, %v1071, %v1075
        %v1080 = vand.u32 2147483647, %v1036
        %vm1081 = vcmp.eq.f32.partialorder %v1080, 8.507059e+37
        %v1082 = vand.u32 %v1036, 2147483648
        %v1083 = vor.u32 1.1754944e-38, %v1082
        %v1084 = vsel %vm1081, %v1083, %v1079
        %v1085 = vmul.f32 %v1055, %v1070
        %v1086 = vmul.f32 %v1056, %v1084
        %v1087 = vpack.c.bf16 %v1086, %v1085
        %v1120 = vunpack.c.l.b16 %v404
        %v1121 = vunpack.c.h.b16 %v404
        %v1122 = vunpack.c.l.b16 %v405
        %v1123 = vunpack.c.h.b16 %v405
        %v1124 = vunpack.c.l.b16 %v406
        %v1125 = vunpack.c.h.b16 %v406
        %v1126 = vunpack.c.l.b16 %v407
        %v1127 = vunpack.c.h.b16 %v407
        %v1128 = vunpack.c.l.b16 %v408
        %v1129 = vunpack.c.h.b16 %v408
        %v1130 = vunpack.c.l.b16 %v409
        %v1131 = vunpack.c.h.b16 %v409
        %v1132 = vunpack.c.l.b16 %v410
        %v1133 = vunpack.c.h.b16 %v410
        %v1134 = vunpack.c.l.b16 %v411
        %v1135 = vunpack.c.h.b16 %v411
        %v1136 = vunpack.c.l.b16 %v412
        %v1137 = vunpack.c.h.b16 %v412
        %v1138 = vunpack.c.l.b16 %v413
        %v1139 = vunpack.c.h.b16 %v413
        %v1140 = vunpack.c.l.b16 %v414
        %v1141 = vunpack.c.h.b16 %v414
        %v1142 = vunpack.c.l.b16 %v415
        %v1143 = vunpack.c.h.b16 %v415
        %v1144 = vunpack.c.l.b16 %v416
        %v1145 = vunpack.c.h.b16 %v416
        %v1146 = vunpack.c.l.b16 %v417
        %v1147 = vunpack.c.h.b16 %v417
        %v1148 = vunpack.c.l.b16 %v418
        %v1149 = vunpack.c.h.b16 %v418
        %v1150 = vunpack.c.l.b16 %v419
        %v1151 = vunpack.c.h.b16 %v419
        %v1152 = vunpack.c.l.b16 %v420
        %v1153 = vunpack.c.h.b16 %v420
        %v1154 = vunpack.c.l.b16 %v421
        %v1155 = vunpack.c.h.b16 %v421
        %v1156 = vunpack.c.l.b16 %v422
        %v1157 = vunpack.c.h.b16 %v422
        %v1158 = vunpack.c.l.b16 %v423
        %v1159 = vunpack.c.h.b16 %v423
        %v1160 = vunpack.c.l.b16 %v424
        %v1161 = vunpack.c.h.b16 %v424
        %v1162 = vunpack.c.l.b16 %v425
        %v1163 = vunpack.c.h.b16 %v425
        %v1164 = vunpack.c.l.b16 %v426
        %v1165 = vunpack.c.h.b16 %v426
        %v1166 = vunpack.c.l.b16 %v427
        %v1167 = vunpack.c.h.b16 %v427
        %v1168 = vunpack.c.l.b16 %v428
        %v1169 = vunpack.c.h.b16 %v428
        %v1170 = vunpack.c.l.b16 %v429
        %v1171 = vunpack.c.h.b16 %v429
        %v1172 = vunpack.c.l.b16 %v430
        %v1173 = vunpack.c.h.b16 %v430
        %v1174 = vunpack.c.l.b16 %v431
        %v1175 = vunpack.c.h.b16 %v431
        %v1176 = vunpack.c.l.b16 %v432
        %v1177 = vunpack.c.h.b16 %v432
        %v1178 = vunpack.c.l.b16 %v433
        %v1179 = vunpack.c.h.b16 %v433
        %v1180 = vunpack.c.l.b16 %v434
        %v1181 = vunpack.c.h.b16 %v434
        %v1182 = vunpack.c.l.b16 %v435
        %v1183 = vunpack.c.h.b16 %v435
        %v1184 = vpack.c.b16 %v1124, %v1120
        %v1185 = vpack.c.b16 %v1125, %v1121
        %v1186 = vpack.c.b16 %v1126, %v1122
        %v1187 = vpack.c.b16 %v1127, %v1123
        %v1188 = vpack.c.b16 %v1132, %v1128
        %v1189 = vpack.c.b16 %v1133, %v1129
        %v1190 = vpack.c.b16 %v1134, %v1130
        %v1191 = vpack.c.b16 %v1135, %v1131
        %v1192 = vpack.c.b16 %v1140, %v1136
        %v1193 = vpack.c.b16 %v1141, %v1137
        %v1194 = vpack.c.b16 %v1142, %v1138
        %v1195 = vpack.c.b16 %v1143, %v1139
        %v1196 = vpack.c.b16 %v1148, %v1144
        %v1197 = vpack.c.b16 %v1149, %v1145
        %v1198 = vpack.c.b16 %v1150, %v1146
        %v1199 = vpack.c.b16 %v1151, %v1147
        %v1200 = vpack.c.b16 %v1156, %v1152
        %v1201 = vpack.c.b16 %v1157, %v1153
        %v1202 = vpack.c.b16 %v1158, %v1154
        %v1203 = vpack.c.b16 %v1159, %v1155
        %v1204 = vpack.c.b16 %v1164, %v1160
        %v1205 = vpack.c.b16 %v1165, %v1161
        %v1206 = vpack.c.b16 %v1166, %v1162
        %v1207 = vpack.c.b16 %v1167, %v1163
        %v1208 = vpack.c.b16 %v1172, %v1168
        %v1209 = vpack.c.b16 %v1173, %v1169
        %v1210 = vpack.c.b16 %v1174, %v1170
        %v1211 = vpack.c.b16 %v1175, %v1171
        %v1212 = vpack.c.b16 %v1180, %v1176
        %v1213 = vpack.c.b16 %v1181, %v1177
        %v1214 = vpack.c.b16 %v1182, %v1178
        %v1215 = vpack.c.b16 %v1183, %v1179
        %1248 = vmatpush.bf16.msra.mxu0 %v1212
        %1249 = vmatpush.bf16.msra.mxu0 %v1208
        %1250 = vmatpush.bf16.msra.mxu0 %v1204
        %1251 = vmatpush.bf16.msra.mxu0 %v1200
        %1252 = vmatpush.bf16.msra.mxu0 %v1196
        %1253 = vmatpush.bf16.msra.mxu0 %v1192
        %1254 = vmatpush.bf16.msra.mxu0 %v1188
        %1255 = vmatpush.bf16.msra.mxu0 %v1184
        %1256 = vmatmul.bf16.gmra.mxu0 %v1087
        %v1257 = vpop.f32.mrf.mxu0
        %v1258 = vadd.f32 %v980, %v1257
        %v1259 = vpop.f32.mrf.mxu0
        %v1260 = vadd.f32 %v987, %v1259
        %1261 = vdwg.mxu0
        %1262 = vmatpush.bf16.msra.mxu0 %v1213
        %1263 = vmatpush.bf16.msra.mxu0 %v1209
        %1264 = vmatpush.bf16.msra.mxu0 %v1205
        %1265 = vmatpush.bf16.msra.mxu0 %v1201
        %1266 = vmatpush.bf16.msra.mxu0 %v1197
        %1267 = vmatpush.bf16.msra.mxu0 %v1193
        %1268 = vmatpush.bf16.msra.mxu0 %v1189
        %1269 = vmatpush.bf16.msra.mxu0 %v1185
        %1270 = vmatmul.bf16.gmra.mxu0 %v1087
        %v1271 = vpop.f32.mrf.mxu0
        %v1272 = vadd.f32 %v981, %v1271
        %v1273 = vpop.f32.mrf.mxu0
        %v1274 = vadd.f32 %v988, %v1273
        %1275 = vdwg.mxu0
        %1276 = vmatpush.bf16.msra.mxu0 %v1214
        %1277 = vmatpush.bf16.msra.mxu0 %v1210
        %1278 = vmatpush.bf16.msra.mxu0 %v1206
        %1279 = vmatpush.bf16.msra.mxu0 %v1202
        %1280 = vmatpush.bf16.msra.mxu0 %v1198
        %1281 = vmatpush.bf16.msra.mxu0 %v1194
        %1282 = vmatpush.bf16.msra.mxu0 %v1190
        %1283 = vmatpush.bf16.msra.mxu0 %v1186
        %1284 = vmatmul.bf16.gmra.mxu0 %v1087
        %v1285 = vpop.f32.mrf.mxu0
        %v1286 = vadd.f32 %v982, %v1285
        %v1287 = vpop.f32.mrf.mxu0
        %v1288 = vadd.f32 %v989, %v1287
        %1289 = vdwg.mxu0
        %1290 = vmatpush.bf16.msra.mxu0 %v1215
        %1291 = vmatpush.bf16.msra.mxu0 %v1211
        %1292 = vmatpush.bf16.msra.mxu0 %v1207
        %1293 = vmatpush.bf16.msra.mxu0 %v1203
        %1294 = vmatpush.bf16.msra.mxu0 %v1199
        %1295 = vmatpush.bf16.msra.mxu0 %v1195
        %1296 = vmatpush.bf16.msra.mxu0 %v1191
        %1297 = vmatpush.bf16.msra.mxu0 %v1187
        %1298 = vmatmul.bf16.gmra.mxu0 %v1087
        %v1299 = vpop.f32.mrf.mxu0
        %v1300 = vadd.f32 %v983, %v1299
        %v1301 = vpop.f32.mrf.mxu0
        %v1302 = vadd.f32 %v990, %v1301
        %1303 = vdwg.mxu0
        %v1304 = vxor.u32 %v1258, 2147483648
        %v1305 = vxor.u32 %v1260, 2147483648
        %v1306 = vmul.f32 %v1304, 1.442695
        %v1307 = vpow.pop %v1306
        %v1308 = vmul.f32 %v1305, 1.442695
        %v1309 = vpow.pop %v1308
        %v1310 = vadd.f32 %v1307, 1.0
        %v1311 = vadd.f32 %v1309, 1.0
        %v1312 = vrcp.pop %v1310
        %v1313 = vmul.f32 %v1310, %v1312
        %v1314 = vsub.f32 1.0, %v1313
        %v1315 = vmul.f32 %v1312, %v1314
        %v1316 = vadd.f32 %v1312, %v1315
        %vm1317 = vweird.f32 %v1310
        %vm1318 = vweird.f32 %v1312
        %vm1319 = vmor %vm1317, %vm1318
        %v1320 = vsel %vm1319, %v1312, %v1316
        %v1321 = vand.u32 2147483647, %v1310
        %vm1322 = vcmp.eq.f32.partialorder %v1321, 8.507059e+37
        %v1323 = vand.u32 %v1310, 2147483648
        %v1324 = vor.u32 1.1754944e-38, %v1323
        %v1325 = vsel %vm1322, %v1324, %v1320
        %v1326 = vmul.f32 1.0, %v1325
        %v1327 = vrcp.pop %v1311
        %v1328 = vmul.f32 %v1311, %v1327
        %v1329 = vsub.f32 1.0, %v1328
        %v1330 = vmul.f32 %v1327, %v1329
        %v1331 = vadd.f32 %v1327, %v1330
        %vm1332 = vweird.f32 %v1311
        %vm1333 = vweird.f32 %v1327
        %vm1334 = vmor %vm1332, %vm1333
        %v1335 = vsel %vm1334, %v1327, %v1331
        %v1336 = vand.u32 2147483647, %v1311
        %vm1337 = vcmp.eq.f32.partialorder %v1336, 8.507059e+37
        %v1338 = vand.u32 %v1311, 2147483648
        %v1339 = vor.u32 1.1754944e-38, %v1338
        %v1340 = vsel %vm1337, %v1339, %v1335
        %v1341 = vmul.f32 1.0, %v1340
        %v1342 = vxor.u32 %v1272, 2147483648
        %v1343 = vxor.u32 %v1274, 2147483648
        %v1344 = vmul.f32 %v1342, 1.442695
        %v1345 = vpow.pop %v1344
        %v1346 = vmul.f32 %v1343, 1.442695
        %v1347 = vpow.pop %v1346
        %v1348 = vadd.f32 %v1345, 1.0
        %v1349 = vadd.f32 %v1347, 1.0
        %v1350 = vrcp.pop %v1348
        %v1351 = vmul.f32 %v1348, %v1350
        %v1352 = vsub.f32 1.0, %v1351
        %v1353 = vmul.f32 %v1350, %v1352
        %v1354 = vadd.f32 %v1350, %v1353
        %vm1355 = vweird.f32 %v1348
        %vm1356 = vweird.f32 %v1350
        %vm1357 = vmor %vm1355, %vm1356
        %v1358 = vsel %vm1357, %v1350, %v1354
        %v1359 = vand.u32 2147483647, %v1348
        %vm1360 = vcmp.eq.f32.partialorder %v1359, 8.507059e+37
        %v1361 = vand.u32 %v1348, 2147483648
        %v1362 = vor.u32 1.1754944e-38, %v1361
        %v1363 = vsel %vm1360, %v1362, %v1358
        %v1364 = vmul.f32 1.0, %v1363
        %v1365 = vrcp.pop %v1349
        %v1366 = vmul.f32 %v1349, %v1365
        %v1367 = vsub.f32 1.0, %v1366
        %v1368 = vmul.f32 %v1365, %v1367
        %v1369 = vadd.f32 %v1365, %v1368
        %vm1370 = vweird.f32 %v1349
        %vm1371 = vweird.f32 %v1365
        %vm1372 = vmor %vm1370, %vm1371
        %v1373 = vsel %vm1372, %v1365, %v1369
        %v1374 = vand.u32 2147483647, %v1349
        %vm1375 = vcmp.eq.f32.partialorder %v1374, 8.507059e+37
        %v1376 = vand.u32 %v1349, 2147483648
        %v1377 = vor.u32 1.1754944e-38, %v1376
        %v1378 = vsel %vm1375, %v1377, %v1373
        %v1379 = vmul.f32 1.0, %v1378
        %v1380 = vxor.u32 %v1286, 2147483648
        %v1381 = vxor.u32 %v1288, 2147483648
        %v1382 = vmul.f32 %v1380, 1.442695
        %v1383 = vpow.pop %v1382
        %v1384 = vmul.f32 %v1381, 1.442695
        %v1385 = vpow.pop %v1384
        %v1386 = vadd.f32 %v1383, 1.0
        %v1387 = vadd.f32 %v1385, 1.0
        %v1388 = vrcp.pop %v1386
        %v1389 = vmul.f32 %v1386, %v1388
        %v1390 = vsub.f32 1.0, %v1389
        %v1391 = vmul.f32 %v1388, %v1390
        %v1392 = vadd.f32 %v1388, %v1391
        %vm1393 = vweird.f32 %v1386
        %vm1394 = vweird.f32 %v1388
        %vm1395 = vmor %vm1393, %vm1394
        %v1396 = vsel %vm1395, %v1388, %v1392
        %v1397 = vand.u32 2147483647, %v1386
        %vm1398 = vcmp.eq.f32.partialorder %v1397, 8.507059e+37
        %v1399 = vand.u32 %v1386, 2147483648
        %v1400 = vor.u32 1.1754944e-38, %v1399
        %v1401 = vsel %vm1398, %v1400, %v1396
        %v1402 = vmul.f32 1.0, %v1401
        %v1403 = vrcp.pop %v1387
        %v1404 = vmul.f32 %v1387, %v1403
        %v1405 = vsub.f32 1.0, %v1404
        %v1406 = vmul.f32 %v1403, %v1405
        %v1407 = vadd.f32 %v1403, %v1406
        %vm1408 = vweird.f32 %v1387
        %vm1409 = vweird.f32 %v1403
        %vm1410 = vmor %vm1408, %vm1409
        %v1411 = vsel %vm1410, %v1403, %v1407
        %v1412 = vand.u32 2147483647, %v1387
        %vm1413 = vcmp.eq.f32.partialorder %v1412, 8.507059e+37
        %v1414 = vand.u32 %v1387, 2147483648
        %v1415 = vor.u32 1.1754944e-38, %v1414
        %v1416 = vsel %vm1413, %v1415, %v1411
        %v1417 = vmul.f32 1.0, %v1416
        %v1418 = vtanh.pop %v1300
        %v1419 = vtanh.pop %v1302
        %v1420 = vld [vmem:[#allocation3] sm:$0xff]
        %v1421 = vld [vmem:[#allocation3 + $0x8] sm:$0xff]
        %v1422 = vmul.f32 %v1364, %v1420
        %v1423 = vmul.f32 %v1379, %v1421
        %v1424 = vmul.f32 %v1326, %v1418
        %v1425 = vmul.f32 %v1341, %v1419
        %v1426 = vadd.f32 %v1422, %v1424
        %v1427 = vadd.f32 %v1423, %v1425
        %v1428 = vtanh.pop %v1426
        %v1429 = vtanh.pop %v1427
        %v1430 = vmul.f32 %v1402, %v1428
        %v1431 = vmul.f32 %v1417, %v1429
        %1432 = vst [vmem:[#allocation2] sm:$0xff] %v1430
        %1433 = vst [vmem:[#allocation2 + $0x8] sm:$0xff] %v1431
        %1434 = vst [vmem:[#allocation3] sm:$0xff] %v1426
        %1435 = vst [vmem:[#allocation3 + $0x8] sm:$0xff] %v1427
        %1436 = vst [vmem:[%s309] sm:$0xff] %v1430
        %1437 = vst [vmem:[%s309 + $0x8] sm:$0xff] %v1431
        %s1438 = scalar_lea.vmem %s326, 8
        %v1439 = vld [vmem:[%s1438] sm:$0xf]
        %v1440 = vld [vmem:[%s1438 + $0x4] sm:$0xf]
        %v1441 = vld [vmem:[#allocation2] sm:$0xff]
        %v1442 = vld [vmem:[#allocation2 + $0x8] sm:$0xff]
        %v1443 = vpack.c.bf16 %v1442, %v1441
        %1444 = vmatpush.bf16.msra.mxu0 %v667
        %1445 = vmatpush.bf16.msra.mxu0 %v660
        %1446 = vmatpush.bf16.msra.mxu0 %v653
        %1447 = vmatpush.bf16.msra.mxu0 %v646
        %1448 = vmatpush.bf16.msra.mxu0 %v639
        %1449 = vmatpush.bf16.msra.mxu0 %v632
        %1450 = vmatpush.bf16.msra.mxu0 %v625
        %1451 = vmatpush.bf16.msra.mxu0 %v618
        %1452 = vmatmul.bf16.gmra.mxu0 %v1443
        %v1453 = vpop.f32.mrf.mxu0
        %v1454 = vadd.f32 0.0, %v1453
        %v1455 = vpop.f32.mrf.mxu0
        %v1456 = vadd.f32 0.0, %v1455
        %1457 = vdwg.mxu0
        %1458 = vmatpush.bf16.msra.mxu0 %v668
        %1459 = vmatpush.bf16.msra.mxu0 %v661
        %1460 = vmatpush.bf16.msra.mxu0 %v654
        %1461 = vmatpush.bf16.msra.mxu0 %v647
        %1462 = vmatpush.bf16.msra.mxu0 %v640
        %1463 = vmatpush.bf16.msra.mxu0 %v633
        %1464 = vmatpush.bf16.msra.mxu0 %v626
        %1465 = vmatpush.bf16.msra.mxu0 %v619
        %1466 = vmatmul.bf16.gmra.mxu0 %v1443
        %v1467 = vpop.f32.mrf.mxu0
        %v1468 = vadd.f32 0.0, %v1467
        %v1469 = vpop.f32.mrf.mxu0
        %v1470 = vadd.f32 0.0, %v1469
        %1471 = vdwg.mxu0
        %1472 = vmatpush.bf16.msra.mxu0 %v669
        %1473 = vmatpush.bf16.msra.mxu0 %v662
        %1474 = vmatpush.bf16.msra.mxu0 %v655
        %1475 = vmatpush.bf16.msra.mxu0 %v648
        %1476 = vmatpush.bf16.msra.mxu0 %v641
        %1477 = vmatpush.bf16.msra.mxu0 %v634
        %1478 = vmatpush.bf16.msra.mxu0 %v627
        %1479 = vmatpush.bf16.msra.mxu0 %v620
        %1480 = vmatmul.bf16.gmra.mxu0 %v1443
        %v1481 = vpop.f32.mrf.mxu0
        %v1482 = vadd.f32 0.0, %v1481
        %v1483 = vpop.f32.mrf.mxu0
        %v1484 = vadd.f32 0.0, %v1483
        %1485 = vdwg.mxu0
        %1486 = vmatpush.bf16.msra.mxu0 %v670
        %1487 = vmatpush.bf16.msra.mxu0 %v663
        %1488 = vmatpush.bf16.msra.mxu0 %v656
        %1489 = vmatpush.bf16.msra.mxu0 %v649
        %1490 = vmatpush.bf16.msra.mxu0 %v642
        %1491 = vmatpush.bf16.msra.mxu0 %v635
        %1492 = vmatpush.bf16.msra.mxu0 %v628
        %1493 = vmatpush.bf16.msra.mxu0 %v621
        %1494 = vmatmul.bf16.gmra.mxu0 %v1443
        %v1495 = vpop.f32.mrf.mxu0
        %v1496 = vadd.f32 0.0, %v1495
        %v1497 = vpop.f32.mrf.mxu0
        %v1498 = vadd.f32 0.0, %v1497
        %1499 = vdwg.mxu0
        %1500 = vmatpush.bf16.msra.mxu0 %v671
        %1501 = vmatpush.bf16.msra.mxu0 %v664
        %1502 = vmatpush.bf16.msra.mxu0 %v657
        %1503 = vmatpush.bf16.msra.mxu0 %v650
        %1504 = vmatpush.bf16.msra.mxu0 %v643
        %1505 = vmatpush.bf16.msra.mxu0 %v636
        %1506 = vmatpush.bf16.msra.mxu0 %v629
        %1507 = vmatpush.bf16.msra.mxu0 %v622
        %1508 = vmatmul.bf16.gmra.mxu0 %v1443
        %v1509 = vpop.f32.mrf.mxu0
        %v1510 = vadd.f32 0.0, %v1509
        %v1511 = vpop.f32.mrf.mxu0
        %v1512 = vadd.f32 0.0, %v1511
        %1513 = vdwg.mxu0
        %1514 = vmatpush.bf16.msra.mxu0 %v672
        %1515 = vmatpush.bf16.msra.mxu0 %v665
        %1516 = vmatpush.bf16.msra.mxu0 %v658
        %1517 = vmatpush.bf16.msra.mxu0 %v651
        %1518 = vmatpush.bf16.msra.mxu0 %v644
        %1519 = vmatpush.bf16.msra.mxu0 %v637
        %1520 = vmatpush.bf16.msra.mxu0 %v630
        %1521 = vmatpush.bf16.msra.mxu0 %v623
        %1522 = vmatmul.bf16.gmra.mxu0 %v1443
        %v1523 = vpop.f32.mrf.mxu0
        %v1524 = vadd.f32 0.0, %v1523
        %v1525 = vpop.f32.mrf.mxu0
        %v1526 = vadd.f32 0.0, %v1525
        %1527 = vdwg.mxu0
        %1528 = vmatpush.bf16.msra.mxu0 %v673
        %1529 = vmatpush.bf16.msra.mxu0 %v666
        %1530 = vmatpush.bf16.msra.mxu0 %v659
        %1531 = vmatpush.bf16.msra.mxu0 %v652
        %1532 = vmatpush.bf16.msra.mxu0 %v645
        %1533 = vmatpush.bf16.msra.mxu0 %v638
        %1534 = vmatpush.bf16.msra.mxu0 %v631
        %1535 = vmatpush.bf16.msra.mxu0 %v624
        %1536 = vmatmul.bf16.gmra.mxu0 %v1443
        %v1537 = vpop.f32.mrf.mxu0
        %v1538 = vadd.f32 0.0, %v1537
        %v1539 = vpop.f32.mrf.mxu0
        %v1540 = vadd.f32 0.0, %v1539
        %1541 = vdwg.mxu0
        %v1544 = vunpack.c.l.b16 %v1439
        %v1545 = vunpack.c.l.b16 %v1440
        %v1546 = vpack.c.b16 %v1545, %v1544
        %1547 = vst [vmem:[#allocation1] ss:$4 sm:$0xff] %v338
        %s1548 = scalar_lea.vmem [#allocation1], 32
        %1549 = vst [vmem:[%s1548] ss:$4 sm:$0xff] %v339
        %v1550 = vld.sshfl [vmem:[#allocation1] sm:$0xff pattern:$0x73625140]
        %v1551 = vld.sshfl [vmem:[#allocation1 + $0x8] sm:$0xff pattern:$0x73625140]
        %v1552 = vld.sshfl [vmem:[#allocation1 + $0x10] sm:$0xff pattern:$0x73625140]
        %v1553 = vld.sshfl [vmem:[#allocation1 + $0x18] sm:$0xff pattern:$0x73625140]
        %v1554 = vld.sshfl [vmem:[#allocation1 + $0x20] sm:$0xff pattern:$0x73625140]
        %v1555 = vld.sshfl [vmem:[#allocation1 + $0x28] sm:$0xff pattern:$0x73625140]
        %v1556 = vld.sshfl [vmem:[#allocation1 + $0x30] sm:$0xff pattern:$0x73625140]
        %v1558 = vsel %vm845, %v1546, 0
        %v1560 = vsel %vm849, %v1550, 0
        %v1562 = vsel %vm849, %v1551, 0
        %v1564 = vsel %vm849, %v1552, 0
        %v1566 = vsel %vm849, %v1553, 0
        %v1568 = vsel %vm849, %v1554, 0
        %v1570 = vsel %vm849, %v1555, 0
        %v1572 = vsel %vm849, %v1556, 0
        %1574 = vmatpush.bf16.msra.mxu0 0
        %1575 = vmatpush.bf16.msra.mxu0 0
        %1576 = vmatpush.bf16.msra.mxu0 0
        %1577 = vmatpush.bf16.msra.mxu0 0
        %1578 = vmatpush.bf16.msra.mxu0 0
        %1579 = vmatpush.bf16.msra.mxu0 0
        %1580 = vmatpush.bf16.msra.mxu0 0
        %1581 = vmatpush.bf16.msra.mxu0 %v1560
        %1582 = vmatmul.bf16.gmra.mxu0 %v1558
        %v1583 = vpop.f32.mrf.mxu0
        %v1584 = vadd.f32 %v1454, %v1583
        %v1585 = vpop.f32.mrf.mxu0
        %v1586 = vadd.f32 %v1456, %v1585
        %1587 = vdwg.mxu0
        %1588 = vmatpush.bf16.msra.mxu0 0
        %1589 = vmatpush.bf16.msra.mxu0 0
        %1590 = vmatpush.bf16.msra.mxu0 0
        %1591 = vmatpush.bf16.msra.mxu0 0
        %1592 = vmatpush.bf16.msra.mxu0 0
        %1593 = vmatpush.bf16.msra.mxu0 0
        %1594 = vmatpush.bf16.msra.mxu0 0
        %1595 = vmatpush.bf16.msra.mxu0 %v1562
        %1596 = vmatmul.bf16.gmra.mxu0 %v1558
        %v1597 = vpop.f32.mrf.mxu0
        %v1598 = vadd.f32 %v1468, %v1597
        %v1599 = vpop.f32.mrf.mxu0
        %v1600 = vadd.f32 %v1470, %v1599
        %1601 = vdwg.mxu0
        %1602 = vmatpush.bf16.msra.mxu0 0
        %1603 = vmatpush.bf16.msra.mxu0 0
        %1604 = vmatpush.bf16.msra.mxu0 0
        %1605 = vmatpush.bf16.msra.mxu0 0
        %1606 = vmatpush.bf16.msra.mxu0 0
        %1607 = vmatpush.bf16.msra.mxu0 0
        %1608 = vmatpush.bf16.msra.mxu0 0
        %1609 = vmatpush.bf16.msra.mxu0 %v1564
        %1610 = vmatmul.bf16.gmra.mxu0 %v1558
        %v1611 = vpop.f32.mrf.mxu0
        %v1612 = vadd.f32 %v1482, %v1611
        %v1613 = vpop.f32.mrf.mxu0
        %v1614 = vadd.f32 %v1484, %v1613
        %1615 = vdwg.mxu0
        %1616 = vmatpush.bf16.msra.mxu0 0
        %1617 = vmatpush.bf16.msra.mxu0 0
        %1618 = vmatpush.bf16.msra.mxu0 0
        %1619 = vmatpush.bf16.msra.mxu0 0
        %1620 = vmatpush.bf16.msra.mxu0 0
        %1621 = vmatpush.bf16.msra.mxu0 0
        %1622 = vmatpush.bf16.msra.mxu0 0
        %1623 = vmatpush.bf16.msra.mxu0 %v1566
        %1624 = vmatmul.bf16.gmra.mxu0 %v1558
        %v1625 = vpop.f32.mrf.mxu0
        %v1626 = vadd.f32 %v1496, %v1625
        %v1627 = vpop.f32.mrf.mxu0
        %v1628 = vadd.f32 %v1498, %v1627
        %1629 = vdwg.mxu0
        %1630 = vmatpush.bf16.msra.mxu0 0
        %1631 = vmatpush.bf16.msra.mxu0 0
        %1632 = vmatpush.bf16.msra.mxu0 0
        %1633 = vmatpush.bf16.msra.mxu0 0
        %1634 = vmatpush.bf16.msra.mxu0 0
        %1635 = vmatpush.bf16.msra.mxu0 0
        %1636 = vmatpush.bf16.msra.mxu0 0
        %1637 = vmatpush.bf16.msra.mxu0 %v1568
        %1638 = vmatmul.bf16.gmra.mxu0 %v1558
        %v1639 = vpop.f32.mrf.mxu0
        %v1640 = vadd.f32 %v1510, %v1639
        %v1641 = vpop.f32.mrf.mxu0
        %v1642 = vadd.f32 %v1512, %v1641
        %1643 = vdwg.mxu0
        %1644 = vmatpush.bf16.msra.mxu0 0
        %1645 = vmatpush.bf16.msra.mxu0 0
        %1646 = vmatpush.bf16.msra.mxu0 0
        %1647 = vmatpush.bf16.msra.mxu0 0
        %1648 = vmatpush.bf16.msra.mxu0 0
        %1649 = vmatpush.bf16.msra.mxu0 0
        %1650 = vmatpush.bf16.msra.mxu0 0
        %1651 = vmatpush.bf16.msra.mxu0 %v1570
        %1652 = vmatmul.bf16.gmra.mxu0 %v1558
        %v1653 = vpop.f32.mrf.mxu0
        %v1654 = vadd.f32 %v1524, %v1653
        %v1655 = vpop.f32.mrf.mxu0
        %v1656 = vadd.f32 %v1526, %v1655
        %1657 = vdwg.mxu0
        %1658 = vmatpush.bf16.msra.mxu0 0
        %1659 = vmatpush.bf16.msra.mxu0 0
        %1660 = vmatpush.bf16.msra.mxu0 0
        %1661 = vmatpush.bf16.msra.mxu0 0
        %1662 = vmatpush.bf16.msra.mxu0 0
        %1663 = vmatpush.bf16.msra.mxu0 0
        %1664 = vmatpush.bf16.msra.mxu0 0
        %1665 = vmatpush.bf16.msra.mxu0 %v1572
        %1666 = vmatmul.bf16.gmra.mxu0 %v1558
        %v1667 = vpop.f32.mrf.mxu0
        %v1668 = vadd.f32 %v1538, %v1667
        %v1669 = vpop.f32.mrf.mxu0
        %v1670 = vadd.f32 %v1540, %v1669
        %1671 = vdwg.mxu0
        %v1672 = vadd.f32 %v1584, %v963
        %v1673 = vadd.f32 %v1598, %v964
        %v1674 = vadd.f32 %v1612, %v965
        %v1675 = vadd.f32 %v1626, %v966
        %v1676 = vadd.f32 %v1640, %v967
        %v1677 = vadd.f32 %v1654, %v968
        %v1678 = vadd.f32 %v1668, %v969
        %v1679 = vadd.f32 %v1586, %v963
        %v1680 = vadd.f32 %v1600, %v964
        %v1681 = vadd.f32 %v1614, %v965
        %v1682 = vadd.f32 %v1628, %v966
        %v1683 = vadd.f32 %v1642, %v967
        %v1684 = vadd.f32 %v1656, %v968
        %v1685 = vadd.f32 %v1670, %v969
        %v1686 = vpack.c.bf16 %v1679, %v1672
        %v1687 = vpack.c.bf16 %v1680, %v1673
        %v1688 = vpack.c.bf16 %v1681, %v1674
        %1689 = vmatpush.bf16.xpose.msra.mxu0 0
        %1690 = vmatpush.bf16.xpose.msra.mxu0 0
        %1691 = vmatpush.bf16.xpose.msra.mxu0 0
        %1692 = vmatpush.bf16.xpose.msra.mxu0 0
        %1693 = vmatpush.bf16.xpose.msra.mxu0 0
        %1694 = vmatpush.bf16.xpose.msra.mxu0 0
        %1695 = vmatpush.bf16.xpose.msra.mxu0 0
        %1696 = vmatpush.bf16.xpose.msra.mxu0 %v1687
        %1697 = vmatmul.bf16.gmra.mxu0 %v1686
        %v1698 = vpop.f32.mrf.mxu0
        %v1699 = vadd.f32 0.0, %v1698
        %v1700 = vpop.f32.mrf.mxu0
        %v1701 = vadd.f32 0.0, %v1700
        %1702 = vdwg.mxu0
        %v1703 = vsel %vm1008, %v1699, -inf
        %1704 = vmax.xlane.f32.xlu0 %v1703
        %v1705 = vpop.xlane.xlu0 %1704
        %v1706 = vsel %vm1008, %v1701, -inf
        %1707 = vmax.xlane.f32.xlu0 %v1706
        %v1708 = vpop.xlane.xlu0 %1707
        %v1709 = vsub.f32 -inf, %v1705
        %v1710 = vsub.f32 -inf, %v1708
        %v1711 = vmul.f32 %v1709, 1.442695
        %v1712 = vpow.pop %v1711
        %v1713 = vmul.f32 %v1710, 1.442695
        %v1714 = vpow.pop %v1713
        %v1715 = vsub.f32 %v1699, %v1705
        %v1716 = vsub.f32 %v1701, %v1708
        %v1717 = vmul.f32 %v1715, 1.442695
        %v1718 = vpow.pop %v1717
        %v1719 = vmul.f32 %v1716, 1.442695
        %v1720 = vpow.pop %v1719
        %v1721 = vmul.f32 %v1712, 0.0
        %v1722 = vmul.f32 %v1714, 0.0
        %v1723 = vsel %vm1008, %v1718, 0.0
        %1724 = vadd.xlane.f32.xlu0 %v1723
        %v1725 = vpop.xlane.xlu0 %1724
        %v1726 = vsel %vm1008, %v1720, 0.0
        %1727 = vadd.xlane.f32.xlu0 %v1726
        %v1728 = vpop.xlane.xlu0 %1727
        %v1729 = vadd.f32 %v1721, %v1725
        %v1730 = vadd.f32 %v1722, %v1728
        %v1731 = vpack.c.bf16 %v1720, %v1718
        %v1733 = vsel %vm1008, %v1731, 0
        %1735 = vmatpush.bf16.msra.mxu0 0
        %1736 = vmatpush.bf16.msra.mxu0 0
        %1737 = vmatpush.bf16.msra.mxu0 0
        %1738 = vmatpush.bf16.msra.mxu0 0
        %1739 = vmatpush.bf16.msra.mxu0 0
        %1740 = vmatpush.bf16.msra.mxu0 0
        %1741 = vmatpush.bf16.msra.mxu0 0
        %1742 = vmatpush.bf16.msra.mxu0 %v1688
        %1743 = vmatmul.bf16.gmra.mxu0 %v1733
        %v1744 = vpop.f32.mrf.mxu0
        %v1745 = vadd.f32 0.0, %v1744
        %v1746 = vpop.f32.mrf.mxu0
        %v1747 = vadd.f32 0.0, %v1746
        %1748 = vdwg.mxu0
        %v1749 = vadd.f32 %v1721, %v1745
        %v1750 = vadd.f32 %v1722, %v1747
        %v1751 = vrcp.pop %v1729
        %v1752 = vmul.f32 %v1729, %v1751
        %v1753 = vsub.f32 1.0, %v1752
        %v1754 = vmul.f32 %v1751, %v1753
        %v1755 = vadd.f32 %v1751, %v1754
        %vm1756 = vweird.f32 %v1729
        %vm1757 = vweird.f32 %v1751
        %vm1758 = vmor %vm1756, %vm1757
        %v1759 = vsel %vm1758, %v1751, %v1755
        %v1760 = vand.u32 2147483647, %v1729
        %vm1761 = vcmp.eq.f32.partialorder %v1760, 8.507059e+37
        %v1762 = vand.u32 %v1729, 2147483648
        %v1763 = vor.u32 1.1754944e-38, %v1762
        %v1764 = vsel %vm1761, %v1763, %v1759
        %v1765 = vrcp.pop %v1730
        %v1766 = vmul.f32 %v1730, %v1765
        %v1767 = vsub.f32 1.0, %v1766
        %v1768 = vmul.f32 %v1765, %v1767
        %v1769 = vadd.f32 %v1765, %v1768
        %vm1770 = vweird.f32 %v1730
        %vm1771 = vweird.f32 %v1765
        %vm1772 = vmor %vm1770, %vm1771
        %v1773 = vsel %vm1772, %v1765, %v1769
        %v1774 = vand.u32 2147483647, %v1730
        %vm1775 = vcmp.eq.f32.partialorder %v1774, 8.507059e+37
        %v1776 = vand.u32 %v1730, 2147483648
        %v1777 = vor.u32 1.1754944e-38, %v1776
        %v1778 = vsel %vm1775, %v1777, %v1773
        %v1779 = vmul.f32 %v1749, %v1764
        %v1780 = vmul.f32 %v1750, %v1778
        %v1781 = vpack.c.bf16 %v1780, %v1779
        %1782 = vmatpush.bf16.msra.mxu0 %v1212
        %1783 = vmatpush.bf16.msra.mxu0 %v1208
        %1784 = vmatpush.bf16.msra.mxu0 %v1204
        %1785 = vmatpush.bf16.msra.mxu0 %v1200
        %1786 = vmatpush.bf16.msra.mxu0 %v1196
        %1787 = vmatpush.bf16.msra.mxu0 %v1192
        %1788 = vmatpush.bf16.msra.mxu0 %v1188
        %1789 = vmatpush.bf16.msra.mxu0 %v1184
        %1790 = vmatmul.bf16.gmra.mxu0 %v1781
        %v1791 = vpop.f32.mrf.mxu0
        %v1792 = vadd.f32 %v1675, %v1791
        %v1793 = vpop.f32.mrf.mxu0
        %v1794 = vadd.f32 %v1682, %v1793
        %1795 = vdwg.mxu0
        %1796 = vmatpush.bf16.msra.mxu0 %v1213
        %1797 = vmatpush.bf16.msra.mxu0 %v1209
        %1798 = vmatpush.bf16.msra.mxu0 %v1205
        %1799 = vmatpush.bf16.msra.mxu0 %v1201
        %1800 = vmatpush.bf16.msra.mxu0 %v1197
        %1801 = vmatpush.bf16.msra.mxu0 %v1193
        %1802 = vmatpush.bf16.msra.mxu0 %v1189
        %1803 = vmatpush.bf16.msra.mxu0 %v1185
        %1804 = vmatmul.bf16.gmra.mxu0 %v1781
        %v1805 = vpop.f32.mrf.mxu0
        %v1806 = vadd.f32 %v1676, %v1805
        %v1807 = vpop.f32.mrf.mxu0
        %v1808 = vadd.f32 %v1683, %v1807
        %1809 = vdwg.mxu0
        %1810 = vmatpush.bf16.msra.mxu0 %v1214
        %1811 = vmatpush.bf16.msra.mxu0 %v1210
        %1812 = vmatpush.bf16.msra.mxu0 %v1206
        %1813 = vmatpush.bf16.msra.mxu0 %v1202
        %1814 = vmatpush.bf16.msra.mxu0 %v1198
        %1815 = vmatpush.bf16.msra.mxu0 %v1194
        %1816 = vmatpush.bf16.msra.mxu0 %v1190
        %1817 = vmatpush.bf16.msra.mxu0 %v1186
        %1818 = vmatmul.bf16.gmra.mxu0 %v1781
        %v1819 = vpop.f32.mrf.mxu0
        %v1820 = vadd.f32 %v1677, %v1819
        %v1821 = vpop.f32.mrf.mxu0
        %v1822 = vadd.f32 %v1684, %v1821
        %1823 = vdwg.mxu0
        %1824 = vmatpush.bf16.msra.mxu0 %v1215
        %1825 = vmatpush.bf16.msra.mxu0 %v1211
        %1826 = vmatpush.bf16.msra.mxu0 %v1207
        %1827 = vmatpush.bf16.msra.mxu0 %v1203
        %1828 = vmatpush.bf16.msra.mxu0 %v1199
        %1829 = vmatpush.bf16.msra.mxu0 %v1195
        %1830 = vmatpush.bf16.msra.mxu0 %v1191
        %1831 = vmatpush.bf16.msra.mxu0 %v1187
        %1832 = vmatmul.bf16.gmra.mxu0 %v1781
        %v1833 = vpop.f32.mrf.mxu0
        %v1834 = vadd.f32 %v1678, %v1833
        %v1835 = vpop.f32.mrf.mxu0
        %v1836 = vadd.f32 %v1685, %v1835
        %1837 = vdwg.mxu0
        %v1838 = vxor.u32 %v1792, 2147483648
        %v1839 = vxor.u32 %v1794, 2147483648
        %v1840 = vmul.f32 %v1838, 1.442695
        %v1841 = vpow.pop %v1840
        %v1842 = vmul.f32 %v1839, 1.442695
        %v1843 = vpow.pop %v1842
        %v1844 = vadd.f32 %v1841, 1.0
        %v1845 = vadd.f32 %v1843, 1.0
        %v1846 = vrcp.pop %v1844
        %v1847 = vmul.f32 %v1844, %v1846
        %v1848 = vsub.f32 1.0, %v1847
        %v1849 = vmul.f32 %v1846, %v1848
        %v1850 = vadd.f32 %v1846, %v1849
        %vm1851 = vweird.f32 %v1844
        %vm1852 = vweird.f32 %v1846
        %vm1853 = vmor %vm1851, %vm1852
        %v1854 = vsel %vm1853, %v1846, %v1850
        %v1855 = vand.u32 2147483647, %v1844
        %vm1856 = vcmp.eq.f32.partialorder %v1855, 8.507059e+37
        %v1857 = vand.u32 %v1844, 2147483648
        %v1858 = vor.u32 1.1754944e-38, %v1857
        %v1859 = vsel %vm1856, %v1858, %v1854
        %v1860 = vmul.f32 1.0, %v1859
        %v1861 = vrcp.pop %v1845
        %v1862 = vmul.f32 %v1845, %v1861
        %v1863 = vsub.f32 1.0, %v1862
        %v1864 = vmul.f32 %v1861, %v1863
        %v1865 = vadd.f32 %v1861, %v1864
        %vm1866 = vweird.f32 %v1845
        %vm1867 = vweird.f32 %v1861
        %vm1868 = vmor %vm1866, %vm1867
        %v1869 = vsel %vm1868, %v1861, %v1865
        %v1870 = vand.u32 2147483647, %v1845
        %vm1871 = vcmp.eq.f32.partialorder %v1870, 8.507059e+37
        %v1872 = vand.u32 %v1845, 2147483648
        %v1873 = vor.u32 1.1754944e-38, %v1872
        %v1874 = vsel %vm1871, %v1873, %v1869
        %v1875 = vmul.f32 1.0, %v1874
        %v1876 = vxor.u32 %v1806, 2147483648
        %v1877 = vxor.u32 %v1808, 2147483648
        %v1878 = vmul.f32 %v1876, 1.442695
        %v1879 = vpow.pop %v1878
        %v1880 = vmul.f32 %v1877, 1.442695
        %v1881 = vpow.pop %v1880
        %v1882 = vadd.f32 %v1879, 1.0
        %v1883 = vadd.f32 %v1881, 1.0
        %v1884 = vrcp.pop %v1882
        %v1885 = vmul.f32 %v1882, %v1884
        %v1886 = vsub.f32 1.0, %v1885
        %v1887 = vmul.f32 %v1884, %v1886
        %v1888 = vadd.f32 %v1884, %v1887
        %vm1889 = vweird.f32 %v1882
        %vm1890 = vweird.f32 %v1884
        %vm1891 = vmor %vm1889, %vm1890
        %v1892 = vsel %vm1891, %v1884, %v1888
        %v1893 = vand.u32 2147483647, %v1882
        %vm1894 = vcmp.eq.f32.partialorder %v1893, 8.507059e+37
        %v1895 = vand.u32 %v1882, 2147483648
        %v1896 = vor.u32 1.1754944e-38, %v1895
        %v1897 = vsel %vm1894, %v1896, %v1892
        %v1898 = vmul.f32 1.0, %v1897
        %v1899 = vrcp.pop %v1883
        %v1900 = vmul.f32 %v1883, %v1899
        %v1901 = vsub.f32 1.0, %v1900
        %v1902 = vmul.f32 %v1899, %v1901
        %v1903 = vadd.f32 %v1899, %v1902
        %vm1904 = vweird.f32 %v1883
        %vm1905 = vweird.f32 %v1899
        %vm1906 = vmor %vm1904, %vm1905
        %v1907 = vsel %vm1906, %v1899, %v1903
        %v1908 = vand.u32 2147483647, %v1883
        %vm1909 = vcmp.eq.f32.partialorder %v1908, 8.507059e+37
        %v1910 = vand.u32 %v1883, 2147483648
        %v1911 = vor.u32 1.1754944e-38, %v1910
        %v1912 = vsel %vm1909, %v1911, %v1907
        %v1913 = vmul.f32 1.0, %v1912
        %v1914 = vxor.u32 %v1820, 2147483648
        %v1915 = vxor.u32 %v1822, 2147483648
        %v1916 = vmul.f32 %v1914, 1.442695
        %v1917 = vpow.pop %v1916
        %v1918 = vmul.f32 %v1915, 1.442695
        %v1919 = vpow.pop %v1918
        %v1920 = vadd.f32 %v1917, 1.0
        %v1921 = vadd.f32 %v1919, 1.0
        %v1922 = vrcp.pop %v1920
        %v1923 = vmul.f32 %v1920, %v1922
        %v1924 = vsub.f32 1.0, %v1923
        %v1925 = vmul.f32 %v1922, %v1924
        %v1926 = vadd.f32 %v1922, %v1925
        %vm1927 = vweird.f32 %v1920
        %vm1928 = vweird.f32 %v1922
        %vm1929 = vmor %vm1927, %vm1928
        %v1930 = vsel %vm1929, %v1922, %v1926
        %v1931 = vand.u32 2147483647, %v1920
        %vm1932 = vcmp.eq.f32.partialorder %v1931, 8.507059e+37
        %v1933 = vand.u32 %v1920, 2147483648
        %v1934 = vor.u32 1.1754944e-38, %v1933
        %v1935 = vsel %vm1932, %v1934, %v1930
        %v1936 = vmul.f32 1.0, %v1935
        %v1937 = vrcp.pop %v1921
        %v1938 = vmul.f32 %v1921, %v1937
        %v1939 = vsub.f32 1.0, %v1938
        %v1940 = vmul.f32 %v1937, %v1939
        %v1941 = vadd.f32 %v1937, %v1940
        %vm1942 = vweird.f32 %v1921
        %vm1943 = vweird.f32 %v1937
        %vm1944 = vmor %vm1942, %vm1943
        %v1945 = vsel %vm1944, %v1937, %v1941
        %v1946 = vand.u32 2147483647, %v1921
        %vm1947 = vcmp.eq.f32.partialorder %v1946, 8.507059e+37
        %v1948 = vand.u32 %v1921, 2147483648
        %v1949 = vor.u32 1.1754944e-38, %v1948
        %v1950 = vsel %vm1947, %v1949, %v1945
        %v1951 = vmul.f32 1.0, %v1950
        %v1952 = vtanh.pop %v1834
        %v1953 = vtanh.pop %v1836
        %v1954 = vld [vmem:[#allocation3] sm:$0xff]
        %v1955 = vld [vmem:[#allocation3 + $0x8] sm:$0xff]
        %v1956 = vmul.f32 %v1898, %v1954
        %v1957 = vmul.f32 %v1913, %v1955
        %v1958 = vmul.f32 %v1860, %v1952
        %v1959 = vmul.f32 %v1875, %v1953
        %v1960 = vadd.f32 %v1956, %v1958
        %v1961 = vadd.f32 %v1957, %v1959
        %v1962 = vtanh.pop %v1960
        %v1963 = vtanh.pop %v1961
        %v1964 = vmul.f32 %v1936, %v1962
        %v1965 = vmul.f32 %v1951, %v1963
        %1966 = vst [vmem:[#allocation2] sm:$0xff] %v1964
        %1967 = vst [vmem:[#allocation2 + $0x8] sm:$0xff] %v1965
        %1968 = vst [vmem:[#allocation3] sm:$0xff] %v1960
        %1969 = vst [vmem:[#allocation3 + $0x8] sm:$0xff] %v1961
        %s1970 = scalar_lea.vmem %s309, 16 [#allocation9]
        %1971 = vst [vmem:[%s1970] sm:$0xff] %v1964
        %1972 = vst [vmem:[%s1970 + $0x8] sm:$0xff] %v1965
        %s1973 = scalar_lea.vmem %s326, 16
        %v1974 = vld [vmem:[%s1973] sm:$0xf]
        %v1975 = vld [vmem:[%s1973 + $0x4] sm:$0xf]
        %v1976 = vld [vmem:[#allocation2] sm:$0xff]
        %v1977 = vld [vmem:[#allocation2 + $0x8] sm:$0xff]
        %v1978 = vpack.c.bf16 %v1977, %v1976
        %1979 = vmatpush.bf16.msra.mxu0 %v667
        %1980 = vmatpush.bf16.msra.mxu0 %v660
        %1981 = vmatpush.bf16.msra.mxu0 %v653
        %1982 = vmatpush.bf16.msra.mxu0 %v646
        %1983 = vmatpush.bf16.msra.mxu0 %v639
        %1984 = vmatpush.bf16.msra.mxu0 %v632
        %1985 = vmatpush.bf16.msra.mxu0 %v625
        %1986 = vmatpush.bf16.msra.mxu0 %v618
        %1987 = vmatmul.bf16.gmra.mxu0 %v1978
        %v1988 = vpop.f32.mrf.mxu0
        %v1989 = vadd.f32 0.0, %v1988
        %v1990 = vpop.f32.mrf.mxu0
        %v1991 = vadd.f32 0.0, %v1990
        %1992 = vdwg.mxu0
        %1993 = vmatpush.bf16.msra.mxu0 %v668
        %1994 = vmatpush.bf16.msra.mxu0 %v661
        %1995 = vmatpush.bf16.msra.mxu0 %v654
        %1996 = vmatpush.bf16.msra.mxu0 %v647
        %1997 = vmatpush.bf16.msra.mxu0 %v640
        %1998 = vmatpush.bf16.msra.mxu0 %v633
        %1999 = vmatpush.bf16.msra.mxu0 %v626
        %2000 = vmatpush.bf16.msra.mxu0 %v619
        %2001 = vmatmul.bf16.gmra.mxu0 %v1978
        %v2002 = vpop.f32.mrf.mxu0
        %v2003 = vadd.f32 0.0, %v2002
        %v2004 = vpop.f32.mrf.mxu0
        %v2005 = vadd.f32 0.0, %v2004
        %2006 = vdwg.mxu0
        %2007 = vmatpush.bf16.msra.mxu0 %v669
        %2008 = vmatpush.bf16.msra.mxu0 %v662
        %2009 = vmatpush.bf16.msra.mxu0 %v655
        %2010 = vmatpush.bf16.msra.mxu0 %v648
        %2011 = vmatpush.bf16.msra.mxu0 %v641
        %2012 = vmatpush.bf16.msra.mxu0 %v634
        %2013 = vmatpush.bf16.msra.mxu0 %v627
        %2014 = vmatpush.bf16.msra.mxu0 %v620
        %2015 = vmatmul.bf16.gmra.mxu0 %v1978
        %v2016 = vpop.f32.mrf.mxu0
        %v2017 = vadd.f32 0.0, %v2016
        %v2018 = vpop.f32.mrf.mxu0
        %v2019 = vadd.f32 0.0, %v2018
        %2020 = vdwg.mxu0
        %2021 = vmatpush.bf16.msra.mxu0 %v670
        %2022 = vmatpush.bf16.msra.mxu0 %v663
        %2023 = vmatpush.bf16.msra.mxu0 %v656
        %2024 = vmatpush.bf16.msra.mxu0 %v649
        %2025 = vmatpush.bf16.msra.mxu0 %v642
        %2026 = vmatpush.bf16.msra.mxu0 %v635
        %2027 = vmatpush.bf16.msra.mxu0 %v628
        %2028 = vmatpush.bf16.msra.mxu0 %v621
        %2029 = vmatmul.bf16.gmra.mxu0 %v1978
        %v2030 = vpop.f32.mrf.mxu0
        %v2031 = vadd.f32 0.0, %v2030
        %v2032 = vpop.f32.mrf.mxu0
        %v2033 = vadd.f32 0.0, %v2032
        %2034 = vdwg.mxu0
        %2035 = vmatpush.bf16.msra.mxu0 %v671
        %2036 = vmatpush.bf16.msra.mxu0 %v664
        %2037 = vmatpush.bf16.msra.mxu0 %v657
        %2038 = vmatpush.bf16.msra.mxu0 %v650
        %2039 = vmatpush.bf16.msra.mxu0 %v643
        %2040 = vmatpush.bf16.msra.mxu0 %v636
        %2041 = vmatpush.bf16.msra.mxu0 %v629
        %2042 = vmatpush.bf16.msra.mxu0 %v622
        %2043 = vmatmul.bf16.gmra.mxu0 %v1978
        %v2044 = vpop.f32.mrf.mxu0
        %v2045 = vadd.f32 0.0, %v2044
        %v2046 = vpop.f32.mrf.mxu0
        %v2047 = vadd.f32 0.0, %v2046
        %2048 = vdwg.mxu0
        %2049 = vmatpush.bf16.msra.mxu0 %v672
        %2050 = vmatpush.bf16.msra.mxu0 %v665
        %2051 = vmatpush.bf16.msra.mxu0 %v658
        %2052 = vmatpush.bf16.msra.mxu0 %v651
        %2053 = vmatpush.bf16.msra.mxu0 %v644
        %2054 = vmatpush.bf16.msra.mxu0 %v637
        %2055 = vmatpush.bf16.msra.mxu0 %v630
        %2056 = vmatpush.bf16.msra.mxu0 %v623
        %2057 = vmatmul.bf16.gmra.mxu0 %v1978
        %v2058 = vpop.f32.mrf.mxu0
        %v2059 = vadd.f32 0.0, %v2058
        %v2060 = vpop.f32.mrf.mxu0
        %v2061 = vadd.f32 0.0, %v2060
        %2062 = vdwg.mxu0
        %2063 = vmatpush.bf16.msra.mxu0 %v673
        %2064 = vmatpush.bf16.msra.mxu0 %v666
        %2065 = vmatpush.bf16.msra.mxu0 %v659
        %2066 = vmatpush.bf16.msra.mxu0 %v652
        %2067 = vmatpush.bf16.msra.mxu0 %v645
        %2068 = vmatpush.bf16.msra.mxu0 %v638
        %2069 = vmatpush.bf16.msra.mxu0 %v631
        %2070 = vmatpush.bf16.msra.mxu0 %v624
        %2071 = vmatmul.bf16.gmra.mxu0 %v1978
        %v2072 = vpop.f32.mrf.mxu0
        %v2073 = vadd.f32 0.0, %v2072
        %v2074 = vpop.f32.mrf.mxu0
        %v2075 = vadd.f32 0.0, %v2074
        %2076 = vdwg.mxu0
        %v2079 = vunpack.c.l.b16 %v1974
        %v2080 = vunpack.c.l.b16 %v1975
        %v2081 = vpack.c.b16 %v2080, %v2079
        %2082 = vst [vmem:[#allocation1] ss:$4 sm:$0xff] %v338
        %s2083 = scalar_lea.vmem [#allocation1], 32
        %2084 = vst [vmem:[%s2083] ss:$4 sm:$0xff] %v339
        %v2085 = vld.sshfl [vmem:[#allocation1] sm:$0xff pattern:$0x73625140]
        %v2086 = vld.sshfl [vmem:[#allocation1 + $0x8] sm:$0xff pattern:$0x73625140]
        %v2087 = vld.sshfl [vmem:[#allocation1 + $0x10] sm:$0xff pattern:$0x73625140]
        %v2088 = vld.sshfl [vmem:[#allocation1 + $0x18] sm:$0xff pattern:$0x73625140]
        %v2089 = vld.sshfl [vmem:[#allocation1 + $0x20] sm:$0xff pattern:$0x73625140]
        %v2090 = vld.sshfl [vmem:[#allocation1 + $0x28] sm:$0xff pattern:$0x73625140]
        %v2091 = vld.sshfl [vmem:[#allocation1 + $0x30] sm:$0xff pattern:$0x73625140]
        %v2093 = vsel %vm845, %v2081, 0
        %v2095 = vsel %vm849, %v2085, 0
        %v2097 = vsel %vm849, %v2086, 0
        %v2099 = vsel %vm849, %v2087, 0
        %v2101 = vsel %vm849, %v2088, 0
        %v2103 = vsel %vm849, %v2089, 0
        %v2105 = vsel %vm849, %v2090, 0
        %v2107 = vsel %vm849, %v2091, 0
        %2109 = vmatpush.bf16.msra.mxu0 0
        %2110 = vmatpush.bf16.msra.mxu0 0
        %2111 = vmatpush.bf16.msra.mxu0 0
        %2112 = vmatpush.bf16.msra.mxu0 0
        %2113 = vmatpush.bf16.msra.mxu0 0
        %2114 = vmatpush.bf16.msra.mxu0 0
        %2115 = vmatpush.bf16.msra.mxu0 0
        %2116 = vmatpush.bf16.msra.mxu0 %v2095
        %2117 = vmatmul.bf16.gmra.mxu0 %v2093
        %v2118 = vpop.f32.mrf.mxu0
        %v2119 = vadd.f32 %v1989, %v2118
        %v2120 = vpop.f32.mrf.mxu0
        %v2121 = vadd.f32 %v1991, %v2120
        %2122 = vdwg.mxu0
        %2123 = vmatpush.bf16.msra.mxu0 0
        %2124 = vmatpush.bf16.msra.mxu0 0
        %2125 = vmatpush.bf16.msra.mxu0 0
        %2126 = vmatpush.bf16.msra.mxu0 0
        %2127 = vmatpush.bf16.msra.mxu0 0
        %2128 = vmatpush.bf16.msra.mxu0 0
        %2129 = vmatpush.bf16.msra.mxu0 0
        %2130 = vmatpush.bf16.msra.mxu0 %v2097
        %2131 = vmatmul.bf16.gmra.mxu0 %v2093
        %v2132 = vpop.f32.mrf.mxu0
        %v2133 = vadd.f32 %v2003, %v2132
        %v2134 = vpop.f32.mrf.mxu0
        %v2135 = vadd.f32 %v2005, %v2134
        %2136 = vdwg.mxu0
        %2137 = vmatpush.bf16.msra.mxu0 0
        %2138 = vmatpush.bf16.msra.mxu0 0
        %2139 = vmatpush.bf16.msra.mxu0 0
        %2140 = vmatpush.bf16.msra.mxu0 0
        %2141 = vmatpush.bf16.msra.mxu0 0
        %2142 = vmatpush.bf16.msra.mxu0 0
        %2143 = vmatpush.bf16.msra.mxu0 0
        %2144 = vmatpush.bf16.msra.mxu0 %v2099
        %2145 = vmatmul.bf16.gmra.mxu0 %v2093
        %v2146 = vpop.f32.mrf.mxu0
        %v2147 = vadd.f32 %v2017, %v2146
        %v2148 = vpop.f32.mrf.mxu0
        %v2149 = vadd.f32 %v2019, %v2148
        %2150 = vdwg.mxu0
        %2151 = vmatpush.bf16.msra.mxu0 0
        %2152 = vmatpush.bf16.msra.mxu0 0
        %2153 = vmatpush.bf16.msra.mxu0 0
        %2154 = vmatpush.bf16.msra.mxu0 0
        %2155 = vmatpush.bf16.msra.mxu0 0
        %2156 = vmatpush.bf16.msra.mxu0 0
        %2157 = vmatpush.bf16.msra.mxu0 0
        %2158 = vmatpush.bf16.msra.mxu0 %v2101
        %2159 = vmatmul.bf16.gmra.mxu0 %v2093
        %v2160 = vpop.f32.mrf.mxu0
        %v2161 = vadd.f32 %v2031, %v2160
        %v2162 = vpop.f32.mrf.mxu0
        %v2163 = vadd.f32 %v2033, %v2162
        %2164 = vdwg.mxu0
        %2165 = vmatpush.bf16.msra.mxu0 0
        %2166 = vmatpush.bf16.msra.mxu0 0
        %2167 = vmatpush.bf16.msra.mxu0 0
        %2168 = vmatpush.bf16.msra.mxu0 0
        %2169 = vmatpush.bf16.msra.mxu0 0
        %2170 = vmatpush.bf16.msra.mxu0 0
        %2171 = vmatpush.bf16.msra.mxu0 0
        %2172 = vmatpush.bf16.msra.mxu0 %v2103
        %2173 = vmatmul.bf16.gmra.mxu0 %v2093
        %v2174 = vpop.f32.mrf.mxu0
        %v2175 = vadd.f32 %v2045, %v2174
        %v2176 = vpop.f32.mrf.mxu0
        %v2177 = vadd.f32 %v2047, %v2176
        %2178 = vdwg.mxu0
        %2179 = vmatpush.bf16.msra.mxu0 0
        %2180 = vmatpush.bf16.msra.mxu0 0
        %2181 = vmatpush.bf16.msra.mxu0 0
        %2182 = vmatpush.bf16.msra.mxu0 0
        %2183 = vmatpush.bf16.msra.mxu0 0
        %2184 = vmatpush.bf16.msra.mxu0 0
        %2185 = vmatpush.bf16.msra.mxu0 0
        %2186 = vmatpush.bf16.msra.mxu0 %v2105
        %2187 = vmatmul.bf16.gmra.mxu0 %v2093
        %v2188 = vpop.f32.mrf.mxu0
        %v2189 = vadd.f32 %v2059, %v2188
        %v2190 = vpop.f32.mrf.mxu0
        %v2191 = vadd.f32 %v2061, %v2190
        %2192 = vdwg.mxu0
        %2193 = vmatpush.bf16.msra.mxu0 0
        %2194 = vmatpush.bf16.msra.mxu0 0
        %2195 = vmatpush.bf16.msra.mxu0 0
        %2196 = vmatpush.bf16.msra.mxu0 0
        %2197 = vmatpush.bf16.msra.mxu0 0
        %2198 = vmatpush.bf16.msra.mxu0 0
        %2199 = vmatpush.bf16.msra.mxu0 0
        %2200 = vmatpush.bf16.msra.mxu0 %v2107
        %2201 = vmatmul.bf16.gmra.mxu0 %v2093
        %v2202 = vpop.f32.mrf.mxu0
        %v2203 = vadd.f32 %v2073, %v2202
        %v2204 = vpop.f32.mrf.mxu0
        %v2205 = vadd.f32 %v2075, %v2204
        %2206 = vdwg.mxu0
        %v2207 = vadd.f32 %v2119, %v963
        %v2208 = vadd.f32 %v2133, %v964
        %v2209 = vadd.f32 %v2147, %v965
        %v2210 = vadd.f32 %v2161, %v966
        %v2211 = vadd.f32 %v2175, %v967
        %v2212 = vadd.f32 %v2189, %v968
        %v2213 = vadd.f32 %v2203, %v969
        %v2214 = vadd.f32 %v2121, %v963
        %v2215 = vadd.f32 %v2135, %v964
        %v2216 = vadd.f32 %v2149, %v965
        %v2217 = vadd.f32 %v2163, %v966
        %v2218 = vadd.f32 %v2177, %v967
        %v2219 = vadd.f32 %v2191, %v968
        %v2220 = vadd.f32 %v2205, %v969
        %v2221 = vpack.c.bf16 %v2214, %v2207
        %v2222 = vpack.c.bf16 %v2215, %v2208
        %v2223 = vpack.c.bf16 %v2216, %v2209
        %2224 = vmatpush.bf16.xpose.msra.mxu0 0
        %2225 = vmatpush.bf16.xpose.msra.mxu0 0
        %2226 = vmatpush.bf16.xpose.msra.mxu0 0
        %2227 = vmatpush.bf16.xpose.msra.mxu0 0
        %2228 = vmatpush.bf16.xpose.msra.mxu0 0
        %2229 = vmatpush.bf16.xpose.msra.mxu0 0
        %2230 = vmatpush.bf16.xpose.msra.mxu0 0
        %2231 = vmatpush.bf16.xpose.msra.mxu0 %v2222
        %2232 = vmatmul.bf16.gmra.mxu0 %v2221
        %v2233 = vpop.f32.mrf.mxu0
        %v2234 = vadd.f32 0.0, %v2233
        %v2235 = vpop.f32.mrf.mxu0
        %v2236 = vadd.f32 0.0, %v2235
        %2237 = vdwg.mxu0
        %v2238 = vsel %vm1008, %v2234, -inf
        %2239 = vmax.xlane.f32.xlu0 %v2238
        %v2240 = vpop.xlane.xlu0 %2239
        %v2241 = vsel %vm1008, %v2236, -inf
        %2242 = vmax.xlane.f32.xlu0 %v2241
        %v2243 = vpop.xlane.xlu0 %2242
        %v2244 = vsub.f32 -inf, %v2240
        %v2245 = vsub.f32 -inf, %v2243
        %v2246 = vmul.f32 %v2244, 1.442695
        %v2247 = vpow.pop %v2246
        %v2248 = vmul.f32 %v2245, 1.442695
        %v2249 = vpow.pop %v2248
        %v2250 = vsub.f32 %v2234, %v2240
        %v2251 = vsub.f32 %v2236, %v2243
        %v2252 = vmul.f32 %v2250, 1.442695
        %v2253 = vpow.pop %v2252
        %v2254 = vmul.f32 %v2251, 1.442695
        %v2255 = vpow.pop %v2254
        %v2256 = vmul.f32 %v2247, 0.0
        %v2257 = vmul.f32 %v2249, 0.0
        %v2258 = vsel %vm1008, %v2253, 0.0
        %2259 = vadd.xlane.f32.xlu0 %v2258
        %v2260 = vpop.xlane.xlu0 %2259
        %v2261 = vsel %vm1008, %v2255, 0.0
        %2262 = vadd.xlane.f32.xlu0 %v2261
        %v2263 = vpop.xlane.xlu0 %2262
        %v2264 = vadd.f32 %v2256, %v2260
        %v2265 = vadd.f32 %v2257, %v2263
        %v2266 = vpack.c.bf16 %v2255, %v2253
        %v2268 = vsel %vm1008, %v2266, 0
        %2270 = vmatpush.bf16.msra.mxu0 0
        %2271 = vmatpush.bf16.msra.mxu0 0
        %2272 = vmatpush.bf16.msra.mxu0 0
        %2273 = vmatpush.bf16.msra.mxu0 0
        %2274 = vmatpush.bf16.msra.mxu0 0
        %2275 = vmatpush.bf16.msra.mxu0 0
        %2276 = vmatpush.bf16.msra.mxu0 0
        %2277 = vmatpush.bf16.msra.mxu0 %v2223
        %2278 = vmatmul.bf16.gmra.mxu0 %v2268
        %v2279 = vpop.f32.mrf.mxu0
        %v2280 = vadd.f32 0.0, %v2279
        %v2281 = vpop.f32.mrf.mxu0
        %v2282 = vadd.f32 0.0, %v2281
        %2283 = vdwg.mxu0
        %v2284 = vadd.f32 %v2256, %v2280
        %v2285 = vadd.f32 %v2257, %v2282
        %v2286 = vrcp.pop %v2264
        %v2287 = vmul.f32 %v2264, %v2286
        %v2288 = vsub.f32 1.0, %v2287
        %v2289 = vmul.f32 %v2286, %v2288
        %v2290 = vadd.f32 %v2286, %v2289
        %vm2291 = vweird.f32 %v2264
        %vm2292 = vweird.f32 %v2286
        %vm2293 = vmor %vm2291, %vm2292
        %v2294 = vsel %vm2293, %v2286, %v2290
        %v2295 = vand.u32 2147483647, %v2264
        %vm2296 = vcmp.eq.f32.partialorder %v2295, 8.507059e+37
        %v2297 = vand.u32 %v2264, 2147483648
        %v2298 = vor.u32 1.1754944e-38, %v2297
        %v2299 = vsel %vm2296, %v2298, %v2294
        %v2300 = vrcp.pop %v2265
        %v2301 = vmul.f32 %v2265, %v2300
        %v2302 = vsub.f32 1.0, %v2301
        %v2303 = vmul.f32 %v2300, %v2302
        %v2304 = vadd.f32 %v2300, %v2303
        %vm2305 = vweird.f32 %v2265
        %vm2306 = vweird.f32 %v2300
        %vm2307 = vmor %vm2305, %vm2306
        %v2308 = vsel %vm2307, %v2300, %v2304
        %v2309 = vand.u32 2147483647, %v2265
        %vm2310 = vcmp.eq.f32.partialorder %v2309, 8.507059e+37
        %v2311 = vand.u32 %v2265, 2147483648
        %v2312 = vor.u32 1.1754944e-38, %v2311
        %v2313 = vsel %vm2310, %v2312, %v2308
        %v2314 = vmul.f32 %v2284, %v2299
        %v2315 = vmul.f32 %v2285, %v2313
        %v2316 = vpack.c.bf16 %v2315, %v2314
        %2317 = vmatpush.bf16.msra.mxu0 %v1212
        %2318 = vmatpush.bf16.msra.mxu0 %v1208
        %2319 = vmatpush.bf16.msra.mxu0 %v1204
        %2320 = vmatpush.bf16.msra.mxu0 %v1200
        %2321 = vmatpush.bf16.msra.mxu0 %v1196
        %2322 = vmatpush.bf16.msra.mxu0 %v1192
        %2323 = vmatpush.bf16.msra.mxu0 %v1188
        %2324 = vmatpush.bf16.msra.mxu0 %v1184
        %2325 = vmatmul.bf16.gmra.mxu0 %v2316
        %v2326 = vpop.f32.mrf.mxu0
        %v2327 = vadd.f32 %v2210, %v2326
        %v2328 = vpop.f32.mrf.mxu0
        %v2329 = vadd.f32 %v2217, %v2328
        %2330 = vdwg.mxu0
        %2331 = vmatpush.bf16.msra.mxu0 %v1213
        %2332 = vmatpush.bf16.msra.mxu0 %v1209
        %2333 = vmatpush.bf16.msra.mxu0 %v1205
        %2334 = vmatpush.bf16.msra.mxu0 %v1201
        %2335 = vmatpush.bf16.msra.mxu0 %v1197
        %2336 = vmatpush.bf16.msra.mxu0 %v1193
        %2337 = vmatpush.bf16.msra.mxu0 %v1189
        %2338 = vmatpush.bf16.msra.mxu0 %v1185
        %2339 = vmatmul.bf16.gmra.mxu0 %v2316
        %v2340 = vpop.f32.mrf.mxu0
        %v2341 = vadd.f32 %v2211, %v2340
        %v2342 = vpop.f32.mrf.mxu0
        %v2343 = vadd.f32 %v2218, %v2342
        %2344 = vdwg.mxu0
        %2345 = vmatpush.bf16.msra.mxu0 %v1214
        %2346 = vmatpush.bf16.msra.mxu0 %v1210
        %2347 = vmatpush.bf16.msra.mxu0 %v1206
        %2348 = vmatpush.bf16.msra.mxu0 %v1202
        %2349 = vmatpush.bf16.msra.mxu0 %v1198
        %2350 = vmatpush.bf16.msra.mxu0 %v1194
        %2351 = vmatpush.bf16.msra.mxu0 %v1190
        %2352 = vmatpush.bf16.msra.mxu0 %v1186
        %2353 = vmatmul.bf16.gmra.mxu0 %v2316
        %v2354 = vpop.f32.mrf.mxu0
        %v2355 = vadd.f32 %v2212, %v2354
        %v2356 = vpop.f32.mrf.mxu0
        %v2357 = vadd.f32 %v2219, %v2356
        %2358 = vdwg.mxu0
        %2359 = vmatpush.bf16.msra.mxu0 %v1215
        %2360 = vmatpush.bf16.msra.mxu0 %v1211
        %2361 = vmatpush.bf16.msra.mxu0 %v1207
        %2362 = vmatpush.bf16.msra.mxu0 %v1203
        %2363 = vmatpush.bf16.msra.mxu0 %v1199
        %2364 = vmatpush.bf16.msra.mxu0 %v1195
        %2365 = vmatpush.bf16.msra.mxu0 %v1191
        %2366 = vmatpush.bf16.msra.mxu0 %v1187
        %2367 = vmatmul.bf16.gmra.mxu0 %v2316
        %v2368 = vpop.f32.mrf.mxu0
        %v2369 = vadd.f32 %v2213, %v2368
        %v2370 = vpop.f32.mrf.mxu0
        %v2371 = vadd.f32 %v2220, %v2370
        %2372 = vdwg.mxu0
        %v2373 = vxor.u32 %v2327, 2147483648
        %v2374 = vxor.u32 %v2329, 2147483648
        %v2375 = vmul.f32 %v2373, 1.442695
        %v2376 = vpow.pop %v2375
        %v2377 = vmul.f32 %v2374, 1.442695
        %v2378 = vpow.pop %v2377
        %v2379 = vadd.f32 %v2376, 1.0
        %v2380 = vadd.f32 %v2378, 1.0
        %v2381 = vrcp.pop %v2379
        %v2382 = vmul.f32 %v2379, %v2381
        %v2383 = vsub.f32 1.0, %v2382
        %v2384 = vmul.f32 %v2381, %v2383
        %v2385 = vadd.f32 %v2381, %v2384
        %vm2386 = vweird.f32 %v2379
        %vm2387 = vweird.f32 %v2381
        %vm2388 = vmor %vm2386, %vm2387
        %v2389 = vsel %vm2388, %v2381, %v2385
        %v2390 = vand.u32 2147483647, %v2379
        %vm2391 = vcmp.eq.f32.partialorder %v2390, 8.507059e+37
        %v2392 = vand.u32 %v2379, 2147483648
        %v2393 = vor.u32 1.1754944e-38, %v2392
        %v2394 = vsel %vm2391, %v2393, %v2389
        %v2395 = vmul.f32 1.0, %v2394
        %v2396 = vrcp.pop %v2380
        %v2397 = vmul.f32 %v2380, %v2396
        %v2398 = vsub.f32 1.0, %v2397
        %v2399 = vmul.f32 %v2396, %v2398
        %v2400 = vadd.f32 %v2396, %v2399
        %vm2401 = vweird.f32 %v2380
        %vm2402 = vweird.f32 %v2396
        %vm2403 = vmor %vm2401, %vm2402
        %v2404 = vsel %vm2403, %v2396, %v2400
        %v2405 = vand.u32 2147483647, %v2380
        %vm2406 = vcmp.eq.f32.partialorder %v2405, 8.507059e+37
        %v2407 = vand.u32 %v2380, 2147483648
        %v2408 = vor.u32 1.1754944e-38, %v2407
        %v2409 = vsel %vm2406, %v2408, %v2404
        %v2410 = vmul.f32 1.0, %v2409
        %v2411 = vxor.u32 %v2341, 2147483648
        %v2412 = vxor.u32 %v2343, 2147483648
        %v2413 = vmul.f32 %v2411, 1.442695
        %v2414 = vpow.pop %v2413
        %v2415 = vmul.f32 %v2412, 1.442695
        %v2416 = vpow.pop %v2415
        %v2417 = vadd.f32 %v2414, 1.0
        %v2418 = vadd.f32 %v2416, 1.0
        %v2419 = vrcp.pop %v2417
        %v2420 = vmul.f32 %v2417, %v2419
        %v2421 = vsub.f32 1.0, %v2420
        %v2422 = vmul.f32 %v2419, %v2421
        %v2423 = vadd.f32 %v2419, %v2422
        %vm2424 = vweird.f32 %v2417
        %vm2425 = vweird.f32 %v2419
        %vm2426 = vmor %vm2424, %vm2425
        %v2427 = vsel %vm2426, %v2419, %v2423
        %v2428 = vand.u32 2147483647, %v2417
        %vm2429 = vcmp.eq.f32.partialorder %v2428, 8.507059e+37
        %v2430 = vand.u32 %v2417, 2147483648
        %v2431 = vor.u32 1.1754944e-38, %v2430
        %v2432 = vsel %vm2429, %v2431, %v2427
        %v2433 = vmul.f32 1.0, %v2432
        %v2434 = vrcp.pop %v2418
        %v2435 = vmul.f32 %v2418, %v2434
        %v2436 = vsub.f32 1.0, %v2435
        %v2437 = vmul.f32 %v2434, %v2436
        %v2438 = vadd.f32 %v2434, %v2437
        %vm2439 = vweird.f32 %v2418
        %vm2440 = vweird.f32 %v2434
        %vm2441 = vmor %vm2439, %vm2440
        %v2442 = vsel %vm2441, %v2434, %v2438
        %v2443 = vand.u32 2147483647, %v2418
        %vm2444 = vcmp.eq.f32.partialorder %v2443, 8.507059e+37
        %v2445 = vand.u32 %v2418, 2147483648
        %v2446 = vor.u32 1.1754944e-38, %v2445
        %v2447 = vsel %vm2444, %v2446, %v2442
        %v2448 = vmul.f32 1.0, %v2447
        %v2449 = vxor.u32 %v2355, 2147483648
        %v2450 = vxor.u32 %v2357, 2147483648
        %v2451 = vmul.f32 %v2449, 1.442695
        %v2452 = vpow.pop %v2451
        %v2453 = vmul.f32 %v2450, 1.442695
        %v2454 = vpow.pop %v2453
        %v2455 = vadd.f32 %v2452, 1.0
        %v2456 = vadd.f32 %v2454, 1.0
        %v2457 = vrcp.pop %v2455
        %v2458 = vmul.f32 %v2455, %v2457
        %v2459 = vsub.f32 1.0, %v2458
        %v2460 = vmul.f32 %v2457, %v2459
        %v2461 = vadd.f32 %v2457, %v2460
        %vm2462 = vweird.f32 %v2455
        %vm2463 = vweird.f32 %v2457
        %vm2464 = vmor %vm2462, %vm2463
        %v2465 = vsel %vm2464, %v2457, %v2461
        %v2466 = vand.u32 2147483647, %v2455
        %vm2467 = vcmp.eq.f32.partialorder %v2466, 8.507059e+37
        %v2468 = vand.u32 %v2455, 2147483648
        %v2469 = vor.u32 1.1754944e-38, %v2468
        %v2470 = vsel %vm2467, %v2469, %v2465
        %v2471 = vmul.f32 1.0, %v2470
        %v2472 = vrcp.pop %v2456
        %v2473 = vmul.f32 %v2456, %v2472
        %v2474 = vsub.f32 1.0, %v2473
        %v2475 = vmul.f32 %v2472, %v2474
        %v2476 = vadd.f32 %v2472, %v2475
        %vm2477 = vweird.f32 %v2456
        %vm2478 = vweird.f32 %v2472
        %vm2479 = vmor %vm2477, %vm2478
        %v2480 = vsel %vm2479, %v2472, %v2476
        %v2481 = vand.u32 2147483647, %v2456
        %vm2482 = vcmp.eq.f32.partialorder %v2481, 8.507059e+37
        %v2483 = vand.u32 %v2456, 2147483648
        %v2484 = vor.u32 1.1754944e-38, %v2483
        %v2485 = vsel %vm2482, %v2484, %v2480
        %v2486 = vmul.f32 1.0, %v2485
        %v2487 = vtanh.pop %v2369
        %v2488 = vtanh.pop %v2371
        %v2489 = vld [vmem:[#allocation3] sm:$0xff]
        %v2490 = vld [vmem:[#allocation3 + $0x8] sm:$0xff]
        %v2491 = vmul.f32 %v2433, %v2489
        %v2492 = vmul.f32 %v2448, %v2490
        %v2493 = vmul.f32 %v2395, %v2487
        %v2494 = vmul.f32 %v2410, %v2488
        %v2495 = vadd.f32 %v2491, %v2493
        %v2496 = vadd.f32 %v2492, %v2494
        %v2497 = vtanh.pop %v2495
        %v2498 = vtanh.pop %v2496
        %v2499 = vmul.f32 %v2471, %v2497
        %v2500 = vmul.f32 %v2486, %v2498
        %2501 = vst [vmem:[#allocation2] sm:$0xff] %v2499
        %2502 = vst [vmem:[#allocation2 + $0x8] sm:$0xff] %v2500
        %2503 = vst [vmem:[#allocation3] sm:$0xff] %v2495
        %2504 = vst [vmem:[#allocation3 + $0x8] sm:$0xff] %v2496
        %s2505 = scalar_lea.vmem %s309, 32 [#allocation9]
        %2506 = vst [vmem:[%s2505] sm:$0xff] %v2499
        %2507 = vst [vmem:[%s2505 + $0x8] sm:$0xff] %v2500
        %s2508 = scalar_lea.vmem %s326, 24
        %v2509 = vld [vmem:[%s2508] sm:$0xf]
        %v2510 = vld [vmem:[%s2508 + $0x4] sm:$0xf]
        %v2511 = vld [vmem:[#allocation2] sm:$0xff]
        %v2512 = vld [vmem:[#allocation2 + $0x8] sm:$0xff]
        %v2513 = vpack.c.bf16 %v2512, %v2511
        %2514 = vmatpush.bf16.msra.mxu0 %v667
        %2515 = vmatpush.bf16.msra.mxu0 %v660
        %2516 = vmatpush.bf16.msra.mxu0 %v653
        %2517 = vmatpush.bf16.msra.mxu0 %v646
        %2518 = vmatpush.bf16.msra.mxu0 %v639
        %2519 = vmatpush.bf16.msra.mxu0 %v632
        %2520 = vmatpush.bf16.msra.mxu0 %v625
        %2521 = vmatpush.bf16.msra.mxu0 %v618
        %2522 = vmatmul.bf16.gmra.mxu0 %v2513
        %v2523 = vpop.f32.mrf.mxu0
        %v2524 = vadd.f32 0.0, %v2523
        %v2525 = vpop.f32.mrf.mxu0
        %v2526 = vadd.f32 0.0, %v2525
        %2527 = vdwg.mxu0
        %2528 = vmatpush.bf16.msra.mxu0 %v668
        %2529 = vmatpush.bf16.msra.mxu0 %v661
        %2530 = vmatpush.bf16.msra.mxu0 %v654
        %2531 = vmatpush.bf16.msra.mxu0 %v647
        %2532 = vmatpush.bf16.msra.mxu0 %v640
        %2533 = vmatpush.bf16.msra.mxu0 %v633
        %2534 = vmatpush.bf16.msra.mxu0 %v626
        %2535 = vmatpush.bf16.msra.mxu0 %v619
        %2536 = vmatmul.bf16.gmra.mxu0 %v2513
        %v2537 = vpop.f32.mrf.mxu0
        %v2538 = vadd.f32 0.0, %v2537
        %v2539 = vpop.f32.mrf.mxu0
        %v2540 = vadd.f32 0.0, %v2539
        %2541 = vdwg.mxu0
        %2542 = vmatpush.bf16.msra.mxu0 %v669
        %2543 = vmatpush.bf16.msra.mxu0 %v662
        %2544 = vmatpush.bf16.msra.mxu0 %v655
        %2545 = vmatpush.bf16.msra.mxu0 %v648
        %2546 = vmatpush.bf16.msra.mxu0 %v641
        %2547 = vmatpush.bf16.msra.mxu0 %v634
        %2548 = vmatpush.bf16.msra.mxu0 %v627
        %2549 = vmatpush.bf16.msra.mxu0 %v620
        %2550 = vmatmul.bf16.gmra.mxu0 %v2513
        %v2551 = vpop.f32.mrf.mxu0
        %v2552 = vadd.f32 0.0, %v2551
        %v2553 = vpop.f32.mrf.mxu0
        %v2554 = vadd.f32 0.0, %v2553
        %2555 = vdwg.mxu0
        %2556 = vmatpush.bf16.msra.mxu0 %v670
        %2557 = vmatpush.bf16.msra.mxu0 %v663
        %2558 = vmatpush.bf16.msra.mxu0 %v656
        %2559 = vmatpush.bf16.msra.mxu0 %v649
        %2560 = vmatpush.bf16.msra.mxu0 %v642
        %2561 = vmatpush.bf16.msra.mxu0 %v635
        %2562 = vmatpush.bf16.msra.mxu0 %v628
        %2563 = vmatpush.bf16.msra.mxu0 %v621
        %2564 = vmatmul.bf16.gmra.mxu0 %v2513
        %v2565 = vpop.f32.mrf.mxu0
        %v2566 = vadd.f32 0.0, %v2565
        %v2567 = vpop.f32.mrf.mxu0
        %v2568 = vadd.f32 0.0, %v2567
        %2569 = vdwg.mxu0
        %2570 = vmatpush.bf16.msra.mxu0 %v671
        %2571 = vmatpush.bf16.msra.mxu0 %v664
        %2572 = vmatpush.bf16.msra.mxu0 %v657
        %2573 = vmatpush.bf16.msra.mxu0 %v650
        %2574 = vmatpush.bf16.msra.mxu0 %v643
        %2575 = vmatpush.bf16.msra.mxu0 %v636
        %2576 = vmatpush.bf16.msra.mxu0 %v629
        %2577 = vmatpush.bf16.msra.mxu0 %v622
        %2578 = vmatmul.bf16.gmra.mxu0 %v2513
        %v2579 = vpop.f32.mrf.mxu0
        %v2580 = vadd.f32 0.0, %v2579
        %v2581 = vpop.f32.mrf.mxu0
        %v2582 = vadd.f32 0.0, %v2581
        %2583 = vdwg.mxu0
        %2584 = vmatpush.bf16.msra.mxu0 %v672
        %2585 = vmatpush.bf16.msra.mxu0 %v665
        %2586 = vmatpush.bf16.msra.mxu0 %v658
        %2587 = vmatpush.bf16.msra.mxu0 %v651
        %2588 = vmatpush.bf16.msra.mxu0 %v644
        %2589 = vmatpush.bf16.msra.mxu0 %v637
        %2590 = vmatpush.bf16.msra.mxu0 %v630
        %2591 = vmatpush.bf16.msra.mxu0 %v623
        %2592 = vmatmul.bf16.gmra.mxu0 %v2513
        %v2593 = vpop.f32.mrf.mxu0
        %v2594 = vadd.f32 0.0, %v2593
        %v2595 = vpop.f32.mrf.mxu0
        %v2596 = vadd.f32 0.0, %v2595
        %2597 = vdwg.mxu0
        %2598 = vmatpush.bf16.msra.mxu0 %v673
        %2599 = vmatpush.bf16.msra.mxu0 %v666
        %2600 = vmatpush.bf16.msra.mxu0 %v659
        %2601 = vmatpush.bf16.msra.mxu0 %v652
        %2602 = vmatpush.bf16.msra.mxu0 %v645
        %2603 = vmatpush.bf16.msra.mxu0 %v638
        %2604 = vmatpush.bf16.msra.mxu0 %v631
        %2605 = vmatpush.bf16.msra.mxu0 %v624
        %2606 = vmatmul.bf16.gmra.mxu0 %v2513
        %v2607 = vpop.f32.mrf.mxu0
        %v2608 = vadd.f32 0.0, %v2607
        %v2609 = vpop.f32.mrf.mxu0
        %v2610 = vadd.f32 0.0, %v2609
        %2611 = vdwg.mxu0
        %v2614 = vunpack.c.l.b16 %v2509
        %v2615 = vunpack.c.l.b16 %v2510
        %v2616 = vpack.c.b16 %v2615, %v2614
        %2617 = vst [vmem:[#allocation1] ss:$4 sm:$0xff] %v338
        %s2618 = scalar_lea.vmem [#allocation1], 32
        %2619 = vst [vmem:[%s2618] ss:$4 sm:$0xff] %v339
        %v2620 = vld.sshfl [vmem:[#allocation1] sm:$0xff pattern:$0x73625140]
        %v2621 = vld.sshfl [vmem:[#allocation1 + $0x8] sm:$0xff pattern:$0x73625140]
        %v2622 = vld.sshfl [vmem:[#allocation1 + $0x10] sm:$0xff pattern:$0x73625140]
        %v2623 = vld.sshfl [vmem:[#allocation1 + $0x18] sm:$0xff pattern:$0x73625140]
        %v2624 = vld.sshfl [vmem:[#allocation1 + $0x20] sm:$0xff pattern:$0x73625140]
        %v2625 = vld.sshfl [vmem:[#allocation1 + $0x28] sm:$0xff pattern:$0x73625140]
        %v2626 = vld.sshfl [vmem:[#allocation1 + $0x30] sm:$0xff pattern:$0x73625140]
        %v2628 = vsel %vm845, %v2616, 0
        %v2630 = vsel %vm849, %v2620, 0
        %v2632 = vsel %vm849, %v2621, 0
        %v2634 = vsel %vm849, %v2622, 0
        %v2636 = vsel %vm849, %v2623, 0
        %v2638 = vsel %vm849, %v2624, 0
        %v2640 = vsel %vm849, %v2625, 0
        %v2642 = vsel %vm849, %v2626, 0
        %2644 = vmatpush.bf16.msra.mxu0 0
        %2645 = vmatpush.bf16.msra.mxu0 0
        %2646 = vmatpush.bf16.msra.mxu0 0
        %2647 = vmatpush.bf16.msra.mxu0 0
        %2648 = vmatpush.bf16.msra.mxu0 0
        %2649 = vmatpush.bf16.msra.mxu0 0
        %2650 = vmatpush.bf16.msra.mxu0 0
        %2651 = vmatpush.bf16.msra.mxu0 %v2630
        %2652 = vmatmul.bf16.gmra.mxu0 %v2628
        %v2653 = vpop.f32.mrf.mxu0
        %v2654 = vadd.f32 %v2524, %v2653
        %v2655 = vpop.f32.mrf.mxu0
        %v2656 = vadd.f32 %v2526, %v2655
        %2657 = vdwg.mxu0
        %2658 = vmatpush.bf16.msra.mxu0 0
        %2659 = vmatpush.bf16.msra.mxu0 0
        %2660 = vmatpush.bf16.msra.mxu0 0
        %2661 = vmatpush.bf16.msra.mxu0 0
        %2662 = vmatpush.bf16.msra.mxu0 0
        %2663 = vmatpush.bf16.msra.mxu0 0
        %2664 = vmatpush.bf16.msra.mxu0 0
        %2665 = vmatpush.bf16.msra.mxu0 %v2632
        %2666 = vmatmul.bf16.gmra.mxu0 %v2628
        %v2667 = vpop.f32.mrf.mxu0
        %v2668 = vadd.f32 %v2538, %v2667
        %v2669 = vpop.f32.mrf.mxu0
        %v2670 = vadd.f32 %v2540, %v2669
        %2671 = vdwg.mxu0
        %2672 = vmatpush.bf16.msra.mxu0 0
        %2673 = vmatpush.bf16.msra.mxu0 0
        %2674 = vmatpush.bf16.msra.mxu0 0
        %2675 = vmatpush.bf16.msra.mxu0 0
        %2676 = vmatpush.bf16.msra.mxu0 0
        %2677 = vmatpush.bf16.msra.mxu0 0
        %2678 = vmatpush.bf16.msra.mxu0 0
        %2679 = vmatpush.bf16.msra.mxu0 %v2634
        %2680 = vmatmul.bf16.gmra.mxu0 %v2628
        %v2681 = vpop.f32.mrf.mxu0
        %v2682 = vadd.f32 %v2552, %v2681
        %v2683 = vpop.f32.mrf.mxu0
        %v2684 = vadd.f32 %v2554, %v2683
        %2685 = vdwg.mxu0
        %2686 = vmatpush.bf16.msra.mxu0 0
        %2687 = vmatpush.bf16.msra.mxu0 0
        %2688 = vmatpush.bf16.msra.mxu0 0
        %2689 = vmatpush.bf16.msra.mxu0 0
        %2690 = vmatpush.bf16.msra.mxu0 0
        %2691 = vmatpush.bf16.msra.mxu0 0
        %2692 = vmatpush.bf16.msra.mxu0 0
        %2693 = vmatpush.bf16.msra.mxu0 %v2636
        %2694 = vmatmul.bf16.gmra.mxu0 %v2628
        %v2695 = vpop.f32.mrf.mxu0
        %v2696 = vadd.f32 %v2566, %v2695
        %v2697 = vpop.f32.mrf.mxu0
        %v2698 = vadd.f32 %v2568, %v2697
        %2699 = vdwg.mxu0
        %2700 = vmatpush.bf16.msra.mxu0 0
        %2701 = vmatpush.bf16.msra.mxu0 0
        %2702 = vmatpush.bf16.msra.mxu0 0
        %2703 = vmatpush.bf16.msra.mxu0 0
        %2704 = vmatpush.bf16.msra.mxu0 0
        %2705 = vmatpush.bf16.msra.mxu0 0
        %2706 = vmatpush.bf16.msra.mxu0 0
        %2707 = vmatpush.bf16.msra.mxu0 %v2638
        %2708 = vmatmul.bf16.gmra.mxu0 %v2628
        %v2709 = vpop.f32.mrf.mxu0
        %v2710 = vadd.f32 %v2580, %v2709
        %v2711 = vpop.f32.mrf.mxu0
        %v2712 = vadd.f32 %v2582, %v2711
        %2713 = vdwg.mxu0
        %2714 = vmatpush.bf16.msra.mxu0 0
        %2715 = vmatpush.bf16.msra.mxu0 0
        %2716 = vmatpush.bf16.msra.mxu0 0
        %2717 = vmatpush.bf16.msra.mxu0 0
        %2718 = vmatpush.bf16.msra.mxu0 0
        %2719 = vmatpush.bf16.msra.mxu0 0
        %2720 = vmatpush.bf16.msra.mxu0 0
        %2721 = vmatpush.bf16.msra.mxu0 %v2640
        %2722 = vmatmul.bf16.gmra.mxu0 %v2628
        %v2723 = vpop.f32.mrf.mxu0
        %v2724 = vadd.f32 %v2594, %v2723
        %v2725 = vpop.f32.mrf.mxu0
        %v2726 = vadd.f32 %v2596, %v2725
        %2727 = vdwg.mxu0
        %2728 = vmatpush.bf16.msra.mxu0 0
        %2729 = vmatpush.bf16.msra.mxu0 0
        %2730 = vmatpush.bf16.msra.mxu0 0
        %2731 = vmatpush.bf16.msra.mxu0 0
        %2732 = vmatpush.bf16.msra.mxu0 0
        %2733 = vmatpush.bf16.msra.mxu0 0
        %2734 = vmatpush.bf16.msra.mxu0 0
        %2735 = vmatpush.bf16.msra.mxu0 %v2642
        %2736 = vmatmul.bf16.gmra.mxu0 %v2628
        %v2737 = vpop.f32.mrf.mxu0
        %v2738 = vadd.f32 %v2608, %v2737
        %v2739 = vpop.f32.mrf.mxu0
        %v2740 = vadd.f32 %v2610, %v2739
        %2741 = vdwg.mxu0
        %v2742 = vadd.f32 %v2654, %v963
        %v2743 = vadd.f32 %v2668, %v964
        %v2744 = vadd.f32 %v2682, %v965
        %v2745 = vadd.f32 %v2696, %v966
        %v2746 = vadd.f32 %v2710, %v967
        %v2747 = vadd.f32 %v2724, %v968
        %v2748 = vadd.f32 %v2738, %v969
        %v2749 = vadd.f32 %v2656, %v963
        %v2750 = vadd.f32 %v2670, %v964
        %v2751 = vadd.f32 %v2684, %v965
        %v2752 = vadd.f32 %v2698, %v966
        %v2753 = vadd.f32 %v2712, %v967
        %v2754 = vadd.f32 %v2726, %v968
        %v2755 = vadd.f32 %v2740, %v969
        %v2756 = vpack.c.bf16 %v2749, %v2742
        %v2757 = vpack.c.bf16 %v2750, %v2743
        %v2758 = vpack.c.bf16 %v2751, %v2744
        %2759 = vmatpush.bf16.xpose.msra.mxu0 0
        %2760 = vmatpush.bf16.xpose.msra.mxu0 0
        %2761 = vmatpush.bf16.xpose.msra.mxu0 0
        %2762 = vmatpush.bf16.xpose.msra.mxu0 0
        %2763 = vmatpush.bf16.xpose.msra.mxu0 0
        %2764 = vmatpush.bf16.xpose.msra.mxu0 0
        %2765 = vmatpush.bf16.xpose.msra.mxu0 0
        %2766 = vmatpush.bf16.xpose.msra.mxu0 %v2757
        %2767 = vmatmul.bf16.gmra.mxu0 %v2756
        %v2768 = vpop.f32.mrf.mxu0
        %v2769 = vadd.f32 0.0, %v2768
        %v2770 = vpop.f32.mrf.mxu0
        %v2771 = vadd.f32 0.0, %v2770
        %2772 = vdwg.mxu0
        %v2773 = vsel %vm1008, %v2769, -inf
        %2774 = vmax.xlane.f32.xlu0 %v2773
        %v2775 = vpop.xlane.xlu0 %2774
        %v2776 = vsel %vm1008, %v2771, -inf
        %2777 = vmax.xlane.f32.xlu0 %v2776
        %v2778 = vpop.xlane.xlu0 %2777
        %v2779 = vsub.f32 -inf, %v2775
        %v2780 = vsub.f32 -inf, %v2778
        %v2781 = vmul.f32 %v2779, 1.442695
        %v2782 = vpow.pop %v2781
        %v2783 = vmul.f32 %v2780, 1.442695
        %v2784 = vpow.pop %v2783
        %v2785 = vsub.f32 %v2769, %v2775
        %v2786 = vsub.f32 %v2771, %v2778
        %v2787 = vmul.f32 %v2785, 1.442695
        %v2788 = vpow.pop %v2787
        %v2789 = vmul.f32 %v2786, 1.442695
        %v2790 = vpow.pop %v2789
        %v2791 = vmul.f32 %v2782, 0.0
        %v2792 = vmul.f32 %v2784, 0.0
        %v2793 = vsel %vm1008, %v2788, 0.0
        %2794 = vadd.xlane.f32.xlu0 %v2793
        %v2795 = vpop.xlane.xlu0 %2794
        %v2796 = vsel %vm1008, %v2790, 0.0
        %2797 = vadd.xlane.f32.xlu0 %v2796
        %v2798 = vpop.xlane.xlu0 %2797
        %v2799 = vadd.f32 %v2791, %v2795
        %v2800 = vadd.f32 %v2792, %v2798
        %v2801 = vpack.c.bf16 %v2790, %v2788
        %v2803 = vsel %vm1008, %v2801, 0
        %2805 = vmatpush.bf16.msra.mxu0 0
        %2806 = vmatpush.bf16.msra.mxu0 0
        %2807 = vmatpush.bf16.msra.mxu0 0
        %2808 = vmatpush.bf16.msra.mxu0 0
        %2809 = vmatpush.bf16.msra.mxu0 0
        %2810 = vmatpush.bf16.msra.mxu0 0
        %2811 = vmatpush.bf16.msra.mxu0 0
        %2812 = vmatpush.bf16.msra.mxu0 %v2758
        %2813 = vmatmul.bf16.gmra.mxu0 %v2803
        %v2814 = vpop.f32.mrf.mxu0
        %v2815 = vadd.f32 0.0, %v2814
        %v2816 = vpop.f32.mrf.mxu0
        %v2817 = vadd.f32 0.0, %v2816
        %2818 = vdwg.mxu0
        %v2819 = vadd.f32 %v2791, %v2815
        %v2820 = vadd.f32 %v2792, %v2817
        %v2821 = vrcp.pop %v2799
        %v2822 = vmul.f32 %v2799, %v2821
        %v2823 = vsub.f32 1.0, %v2822
        %v2824 = vmul.f32 %v2821, %v2823
        %v2825 = vadd.f32 %v2821, %v2824
        %vm2826 = vweird.f32 %v2799
        %vm2827 = vweird.f32 %v2821
        %vm2828 = vmor %vm2826, %vm2827
        %v2829 = vsel %vm2828, %v2821, %v2825
        %v2830 = vand.u32 2147483647, %v2799
        %vm2831 = vcmp.eq.f32.partialorder %v2830, 8.507059e+37
        %v2832 = vand.u32 %v2799, 2147483648
        %v2833 = vor.u32 1.1754944e-38, %v2832
        %v2834 = vsel %vm2831, %v2833, %v2829
        %v2835 = vrcp.pop %v2800
        %v2836 = vmul.f32 %v2800, %v2835
        %v2837 = vsub.f32 1.0, %v2836
        %v2838 = vmul.f32 %v2835, %v2837
        %v2839 = vadd.f32 %v2835, %v2838
        %vm2840 = vweird.f32 %v2800
        %vm2841 = vweird.f32 %v2835
        %vm2842 = vmor %vm2840, %vm2841
        %v2843 = vsel %vm2842, %v2835, %v2839
        %v2844 = vand.u32 2147483647, %v2800
        %vm2845 = vcmp.eq.f32.partialorder %v2844, 8.507059e+37
        %v2846 = vand.u32 %v2800, 2147483648
        %v2847 = vor.u32 1.1754944e-38, %v2846
        %v2848 = vsel %vm2845, %v2847, %v2843
        %v2849 = vmul.f32 %v2819, %v2834
        %v2850 = vmul.f32 %v2820, %v2848
        %v2851 = vpack.c.bf16 %v2850, %v2849
        %2852 = vmatpush.bf16.msra.mxu0 %v1212
        %2853 = vmatpush.bf16.msra.mxu0 %v1208
        %2854 = vmatpush.bf16.msra.mxu0 %v1204
        %2855 = vmatpush.bf16.msra.mxu0 %v1200
        %2856 = vmatpush.bf16.msra.mxu0 %v1196
        %2857 = vmatpush.bf16.msra.mxu0 %v1192
        %2858 = vmatpush.bf16.msra.mxu0 %v1188
        %2859 = vmatpush.bf16.msra.mxu0 %v1184
        %2860 = vmatmul.bf16.gmra.mxu0 %v2851
        %v2861 = vpop.f32.mrf.mxu0
        %v2862 = vadd.f32 %v2745, %v2861
        %v2863 = vpop.f32.mrf.mxu0
        %v2864 = vadd.f32 %v2752, %v2863
        %2865 = vdwg.mxu0
        %2866 = vmatpush.bf16.msra.mxu0 %v1213
        %2867 = vmatpush.bf16.msra.mxu0 %v1209
        %2868 = vmatpush.bf16.msra.mxu0 %v1205
        %2869 = vmatpush.bf16.msra.mxu0 %v1201
        %2870 = vmatpush.bf16.msra.mxu0 %v1197
        %2871 = vmatpush.bf16.msra.mxu0 %v1193
        %2872 = vmatpush.bf16.msra.mxu0 %v1189
        %2873 = vmatpush.bf16.msra.mxu0 %v1185
        %2874 = vmatmul.bf16.gmra.mxu0 %v2851
        %v2875 = vpop.f32.mrf.mxu0
        %v2876 = vadd.f32 %v2746, %v2875
        %v2877 = vpop.f32.mrf.mxu0
        %v2878 = vadd.f32 %v2753, %v2877
        %2879 = vdwg.mxu0
        %2880 = vmatpush.bf16.msra.mxu0 %v1214
        %2881 = vmatpush.bf16.msra.mxu0 %v1210
        %2882 = vmatpush.bf16.msra.mxu0 %v1206
        %2883 = vmatpush.bf16.msra.mxu0 %v1202
        %2884 = vmatpush.bf16.msra.mxu0 %v1198
        %2885 = vmatpush.bf16.msra.mxu0 %v1194
        %2886 = vmatpush.bf16.msra.mxu0 %v1190
        %2887 = vmatpush.bf16.msra.mxu0 %v1186
        %2888 = vmatmul.bf16.gmra.mxu0 %v2851
        %v2889 = vpop.f32.mrf.mxu0
        %v2890 = vadd.f32 %v2747, %v2889
        %v2891 = vpop.f32.mrf.mxu0
        %v2892 = vadd.f32 %v2754, %v2891
        %2893 = vdwg.mxu0
        %2894 = vmatpush.bf16.msra.mxu0 %v1215
        %2895 = vmatpush.bf16.msra.mxu0 %v1211
        %2896 = vmatpush.bf16.msra.mxu0 %v1207
        %2897 = vmatpush.bf16.msra.mxu0 %v1203
        %2898 = vmatpush.bf16.msra.mxu0 %v1199
        %2899 = vmatpush.bf16.msra.mxu0 %v1195
        %2900 = vmatpush.bf16.msra.mxu0 %v1191
        %2901 = vmatpush.bf16.msra.mxu0 %v1187
        %2902 = vmatmul.bf16.gmra.mxu0 %v2851
        %v2903 = vpop.f32.mrf.mxu0
        %v2904 = vadd.f32 %v2748, %v2903
        %v2905 = vpop.f32.mrf.mxu0
        %v2906 = vadd.f32 %v2755, %v2905
        %2907 = vdwg.mxu0
        %v2908 = vxor.u32 %v2862, 2147483648
        %v2909 = vxor.u32 %v2864, 2147483648
        %v2910 = vmul.f32 %v2908, 1.442695
        %v2911 = vpow.pop %v2910
        %v2912 = vmul.f32 %v2909, 1.442695
        %v2913 = vpow.pop %v2912
        %v2914 = vadd.f32 %v2911, 1.0
        %v2915 = vadd.f32 %v2913, 1.0
        %v2916 = vrcp.pop %v2914
        %v2917 = vmul.f32 %v2914, %v2916
        %v2918 = vsub.f32 1.0, %v2917
        %v2919 = vmul.f32 %v2916, %v2918
        %v2920 = vadd.f32 %v2916, %v2919
        %vm2921 = vweird.f32 %v2914
        %vm2922 = vweird.f32 %v2916
        %vm2923 = vmor %vm2921, %vm2922
        %v2924 = vsel %vm2923, %v2916, %v2920
        %v2925 = vand.u32 2147483647, %v2914
        %vm2926 = vcmp.eq.f32.partialorder %v2925, 8.507059e+37
        %v2927 = vand.u32 %v2914, 2147483648
        %v2928 = vor.u32 1.1754944e-38, %v2927
        %v2929 = vsel %vm2926, %v2928, %v2924
        %v2930 = vmul.f32 1.0, %v2929
        %v2931 = vrcp.pop %v2915
        %v2932 = vmul.f32 %v2915, %v2931
        %v2933 = vsub.f32 1.0, %v2932
        %v2934 = vmul.f32 %v2931, %v2933
        %v2935 = vadd.f32 %v2931, %v2934
        %vm2936 = vweird.f32 %v2915
        %vm2937 = vweird.f32 %v2931
        %vm2938 = vmor %vm2936, %vm2937
        %v2939 = vsel %vm2938, %v2931, %v2935
        %v2940 = vand.u32 2147483647, %v2915
        %vm2941 = vcmp.eq.f32.partialorder %v2940, 8.507059e+37
        %v2942 = vand.u32 %v2915, 2147483648
        %v2943 = vor.u32 1.1754944e-38, %v2942
        %v2944 = vsel %vm2941, %v2943, %v2939
        %v2945 = vmul.f32 1.0, %v2944
        %v2946 = vxor.u32 %v2876, 2147483648
        %v2947 = vxor.u32 %v2878, 2147483648
        %v2948 = vmul.f32 %v2946, 1.442695
        %v2949 = vpow.pop %v2948
        %v2950 = vmul.f32 %v2947, 1.442695
        %v2951 = vpow.pop %v2950
        %v2952 = vadd.f32 %v2949, 1.0
        %v2953 = vadd.f32 %v2951, 1.0
        %v2954 = vrcp.pop %v2952
        %v2955 = vmul.f32 %v2952, %v2954
        %v2956 = vsub.f32 1.0, %v2955
        %v2957 = vmul.f32 %v2954, %v2956
        %v2958 = vadd.f32 %v2954, %v2957
        %vm2959 = vweird.f32 %v2952
        %vm2960 = vweird.f32 %v2954
        %vm2961 = vmor %vm2959, %vm2960
        %v2962 = vsel %vm2961, %v2954, %v2958
        %v2963 = vand.u32 2147483647, %v2952
        %vm2964 = vcmp.eq.f32.partialorder %v2963, 8.507059e+37
        %v2965 = vand.u32 %v2952, 2147483648
        %v2966 = vor.u32 1.1754944e-38, %v2965
        %v2967 = vsel %vm2964, %v2966, %v2962
        %v2968 = vmul.f32 1.0, %v2967
        %v2969 = vrcp.pop %v2953
        %v2970 = vmul.f32 %v2953, %v2969
        %v2971 = vsub.f32 1.0, %v2970
        %v2972 = vmul.f32 %v2969, %v2971
        %v2973 = vadd.f32 %v2969, %v2972
        %vm2974 = vweird.f32 %v2953
        %vm2975 = vweird.f32 %v2969
        %vm2976 = vmor %vm2974, %vm2975
        %v2977 = vsel %vm2976, %v2969, %v2973
        %v2978 = vand.u32 2147483647, %v2953
        %vm2979 = vcmp.eq.f32.partialorder %v2978, 8.507059e+37
        %v2980 = vand.u32 %v2953, 2147483648
        %v2981 = vor.u32 1.1754944e-38, %v2980
        %v2982 = vsel %vm2979, %v2981, %v2977
        %v2983 = vmul.f32 1.0, %v2982
        %v2984 = vxor.u32 %v2890, 2147483648
        %v2985 = vxor.u32 %v2892, 2147483648
        %v2986 = vmul.f32 %v2984, 1.442695
        %v2987 = vpow.pop %v2986
        %v2988 = vmul.f32 %v2985, 1.442695
        %v2989 = vpow.pop %v2988
        %v2990 = vadd.f32 %v2987, 1.0
        %v2991 = vadd.f32 %v2989, 1.0
        %v2992 = vrcp.pop %v2990
        %v2993 = vmul.f32 %v2990, %v2992
        %v2994 = vsub.f32 1.0, %v2993
        %v2995 = vmul.f32 %v2992, %v2994
        %v2996 = vadd.f32 %v2992, %v2995
        %vm2997 = vweird.f32 %v2990
        %vm2998 = vweird.f32 %v2992
        %vm2999 = vmor %vm2997, %vm2998
        %v3000 = vsel %vm2999, %v2992, %v2996
        %v3001 = vand.u32 2147483647, %v2990
        %vm3002 = vcmp.eq.f32.partialorder %v3001, 8.507059e+37
        %v3003 = vand.u32 %v2990, 2147483648
        %v3004 = vor.u32 1.1754944e-38, %v3003
        %v3005 = vsel %vm3002, %v3004, %v3000
        %v3006 = vmul.f32 1.0, %v3005
        %v3007 = vrcp.pop %v2991
        %v3008 = vmul.f32 %v2991, %v3007
        %v3009 = vsub.f32 1.0, %v3008
        %v3010 = vmul.f32 %v3007, %v3009
        %v3011 = vadd.f32 %v3007, %v3010
        %vm3012 = vweird.f32 %v2991
        %vm3013 = vweird.f32 %v3007
        %vm3014 = vmor %vm3012, %vm3013
        %v3015 = vsel %vm3014, %v3007, %v3011
        %v3016 = vand.u32 2147483647, %v2991
        %vm3017 = vcmp.eq.f32.partialorder %v3016, 8.507059e+37
        %v3018 = vand.u32 %v2991, 2147483648
        %v3019 = vor.u32 1.1754944e-38, %v3018
        %v3020 = vsel %vm3017, %v3019, %v3015
        %v3021 = vmul.f32 1.0, %v3020
        %v3022 = vtanh.pop %v2904
        %v3023 = vtanh.pop %v2906
        %v3024 = vld [vmem:[#allocation3] sm:$0xff]
        %v3025 = vld [vmem:[#allocation3 + $0x8] sm:$0xff]
        %v3026 = vmul.f32 %v2968, %v3024
        %v3027 = vmul.f32 %v2983, %v3025
        %v3028 = vmul.f32 %v2930, %v3022
        %v3029 = vmul.f32 %v2945, %v3023
        %v3030 = vadd.f32 %v3026, %v3028
        %v3031 = vadd.f32 %v3027, %v3029
        %v3032 = vtanh.pop %v3030
        %v3033 = vtanh.pop %v3031
        %v3034 = vmul.f32 %v3006, %v3032
        %v3035 = vmul.f32 %v3021, %v3033
        %3036 = vst [vmem:[#allocation2] sm:$0xff] %v3034
        %3037 = vst [vmem:[#allocation2 + $0x8] sm:$0xff] %v3035
        %3038 = vst [vmem:[#allocation3] sm:$0xff] %v3030
        %3039 = vst [vmem:[#allocation3 + $0x8] sm:$0xff] %v3031
        %s3040 = scalar_lea.vmem %s309, 48 [#allocation9]
        %3041 = vst [vmem:[%s3040] sm:$0xff] %v3034
        %3042 = vst [vmem:[%s3040 + $0x8] sm:$0xff] %v3035
        %p3043 = scmp.eq.s32.totalorder %s31, 1
        // Predicated region
        $region53: #{tpu_custom_call.1} parent=39 // pred_check
          %p3044 = pneg %p3043
        $region54: #{tpu_custom_call.1} parent=39 // pred_check_branch
          %3046 = sbr.rel (%p3044) target = $region56
        $region55: #{tpu_custom_call.1} parent=39 // pred_region
          %v3047 = vld [vmem:[#allocation3] sm:$0xff]
          %v3048 = vld [vmem:[#allocation3 + $0x8] sm:$0xff]
          %3049 = vst [vmem:[%s316] sm:$0xff] %v3047
          %3050 = vst [vmem:[%s316 + $0x8] sm:$0xff] %v3048
        $region56: #{tpu_custom_call.1} parent=39 // pred_fallthru
          _
        %s3051 = sand.u32 %s160, 1
        %s3052 = scalar_lea.sflag [#allocation6], %s3051
        %s3053 = sand.u32 %s160, 1
        %s3054 = smul.addr %s3053, 64
        %s3055 = scalar_lea.vmem [#allocation9], %s3054
        %s3056 = sand.u32 %s186, 1
        %s3057 = scalar_lea.sflag [#allocation11], %s3056
        %s3058 = sand.u32 %s186, 1
        %s3059 = smul.addr %s3058, 16
        %s3060 = scalar_lea.vmem [#allocation10], %s3059
        // Predicated region
        $region57: #{tpu_custom_call.1} parent=39 // pred_check
          %p3061 = pneg %p170
        $region58: #{tpu_custom_call.1} parent=39 // pred_check_branch
          %3063 = sbr.rel (%p3061) target = $region60
        $region59: #{tpu_custom_call.1} parent=39 // pred_region
          %s3064 = smul.u32 4, %s31
          %3066 = vsyncadd %s3052, 0
          %s3067 = smul.addr %s3064, 2
          %s3068 = smul.addr %s30, 16
          %s3069 = sadd.s32 %s3067, %s3068
          %s3070 = smul.addr %s3069, 8
          %s3071 = scalar_lea.hbm %s5, %s3070
          %s3072 = sshll.u32 %s3055, 4
          %s3073 = int_to_ptr.vmem [resolvable:$true] %s3072
          %s3074 = sshll.u32 %s3071, 4
          %s3075 = int_to_ptr.hbm [resolvable:$true] %s3074
          %3080 = dma.vmem_to_hbm [thread:$0]  %s3073, 1024, %s3075, %s3052, 128, 128, 8
        $region60: #{tpu_custom_call.1} parent=39 // pred_fallthru
          _
        // Predicated region
        $region61: #{tpu_custom_call.1} parent=39 // pred_check
          %p3081 = pneg %p196
        $region62: #{tpu_custom_call.1} parent=39 // pred_check_branch
          %3083 = sbr.rel (%p3081) target = $region64
        $region63: #{tpu_custom_call.1} parent=39 // pred_region
          %3085 = vsyncadd %s3057, 0
          %s3086 = smul.addr %s30, 2
          %s3087 = smul.addr %s3086, 8
          %s3088 = scalar_lea.hbm %s6, %s3087
          %s3089 = sshll.u32 %s3060, 4
          %s3090 = int_to_ptr.vmem [resolvable:$true] %s3089
          %s3091 = sshll.u32 %s3088, 4
          %s3092 = int_to_ptr.hbm [resolvable:$true] %s3091
          %3097 = dma.vmem_to_hbm [thread:$0]  %s3090, 256, %s3092, %s3057, 128, 128, 8
        $region64: #{tpu_custom_call.1} parent=39 // pred_fallthru
          _
      $region40: #{tpu_custom_call.1} parent=5 // pred_fallthru
        _
      %p3098 = scmp.le.s32.totalorder 2, %s21
      // Predicated region
      $region65: #{tpu_custom_call.1} parent=5 // pred_check
        %p3099 = pneg %p3098
      $region66: #{tpu_custom_call.1} parent=5 // pred_check_branch
        %3101 = sbr.rel (%p3099) target = $region68
      $region67: #{tpu_custom_call.1} parent=5 // pred_region
        %s3102 = ssub.s32 %s21, 2
        // Predicated region
        $region69: #{tpu_custom_call.1} parent=67 // pred_check
          %p3103 = pneg %p176
        $region70: #{tpu_custom_call.1} parent=67 // pred_check_branch
          %3105 = sbr.rel (%p3103) target = $region72
        $region71: #{tpu_custom_call.1} parent=67 // pred_region
          %s3106 = sand.u32 %s161, 1
          %s3107 = scalar_lea.sflag [#allocation6], %s3106
          %s3108 = sand.u32 %s161, 1
          %s3109 = smul.addr %s3108, 64
          %s3110 = scalar_lea.vmem [#allocation9], %s3109
          %3112 = dma.done %s3107, 1024
        $region72: #{tpu_custom_call.1} parent=67 // pred_fallthru
          _
        // Predicated region
        $region73: #{tpu_custom_call.1} parent=67 // pred_check
          %p3113 = pneg %p202
        $region74: #{tpu_custom_call.1} parent=67 // pred_check_branch
          %3115 = sbr.rel (%p3113) target = $region76
        $region75: #{tpu_custom_call.1} parent=67 // pred_region
          %s3116 = sand.u32 %s187, 1
          %s3117 = scalar_lea.sflag [#allocation11], %s3116
          %s3118 = sand.u32 %s187, 1
          %s3119 = smul.addr %s3118, 16
          %s3120 = scalar_lea.vmem [#allocation10], %s3119
          %3122 = dma.done %s3117, 256
        $region76: #{tpu_custom_call.1} parent=67 // pred_fallthru
          _
      $region68: #{tpu_custom_call.1} parent=5 // pred_fallthru
        _
    $region6: #{tpu_custom_call.1} parent=1 // loop_footer
      %s25 = sadd.s32 1, %s21
    $region7: #{tpu_custom_call.1} parent=1 // loop_footer_branch
      %20 = sbr.rel target = $region3
    $region8: #{tpu_custom_call.1} parent=1 // loop_exit
      _
    %3123 = vsyncpa [#allocation5], 1
    %s3124 = scalar_lea.sflag [#allocation5], 1
    %3125 = vsyncpa %s3124, 1
    %3126 = vsyncpa [#allocation8], 1
    %3127 = vsyncpa [#allocation6], 1
    %s3128 = scalar_lea.sflag [#allocation6], 1
    %3129 = vsyncpa %s3128, 1
    %3130 = vsyncpa [#allocation11], 1
    %s3131 = scalar_lea.sflag [#allocation11], 1
    %3132 = vsyncpa %s3131, 1

</llo_original>
